<compile_context>
chip_gen: v7x
topology: tpu7x:2x2x1
jax: 0.10.0
libtpu: 0.0.40
codegen_flags: <defaults>
</compile_context>

<pallas_src>
import jax
import jax.numpy as jnp
import numpy as np
from jax import lax
from jax.experimental import pallas as pl
from jax.experimental.pallas import tpu as pltpu

H = 50                  # torch hidden_size
HP = 64                 # per-direction hidden padded to a lane-friendly width
HC = 2 * HP             # fused state width: [h_fwd | h_bwd]  (one full vreg row)
GC = 8 * HP             # fused gate width:  [i_f,i_b,f_f,f_b,o_f,o_b,g_f,g_b]
_GATE_ORDER = (0, 1, 3, 2)   # torch gate blocks are (i,f,g,o); kernel order is (i,f,o,g)


def bilstm_linear_kernel(x_ref,       # (T, BT, 1)   raw inputs, time-major
                         whh_ref,     # (HC, GC)     block-structured recurrent weights
                         wvec_ref,    # (8, GC)      row0: fwd x->gate w, row1: bwd, row2: bias
                         wlin_ref,    # (1, HC)      final linear weights [w_fwd | w_bwd]
                         blin_ref,    # (1, 1) SMEM  final linear bias
                         out_ref,     # (BT, T)      lane-dense output for this batch tile
                         h_ref, c_ref):               # (BT, HC) scratch: fused h / c state
    T = x_ref.shape[0]
    BT = x_ref.shape[1]

    h_ref[...] = jnp.zeros_like(h_ref)
    c_ref[...] = jnp.zeros_like(c_ref)

    # Loop-invariant loads / broadcasts hoisted once (JAX does not CSE broadcast_in_dim).
    wxf = wvec_ref[0:1, :]                                    # (1, GC)
    wxb = wvec_ref[1:2, :]                                    # (1, GC)
    bias = jnp.broadcast_to(wvec_ref[2:3, :], (BT, GC))       # (BT, GC)
    wlin = jnp.broadcast_to(wlin_ref[...], (BT, HC))          # (BT, HC)
    lane_t = lax.broadcasted_iota(jnp.int32, (BT, T), 1)      # time index along lanes

    # Output accumulated in place (lane-dense); start from the linear bias.
    out_ref[...] = jnp.full((BT, T), blin_ref[0, 0], jnp.float32)

    def step(s, carry):
        # One fused step: forward direction at time s, backward direction at time T-1-s.
        x_f = x_ref[s]                                        # (BT, 1)
        x_b = x_ref[T - 1 - s]                                # (BT, 1)
        gates = (x_f * wxf + x_b * wxb + bias
                 + jnp.dot(h_ref[...], whh_ref[...],
                           preferred_element_type=jnp.float32))          # (BT, GC)
        sig = jax.nn.sigmoid(gates[:, :6 * HP])   # i|f|o gates, both dirs: one EUP launch
        g = jnp.tanh(gates[:, 6 * HP:])           # g gate, both dirs
        i = sig[:, 0:HC]                          # 128-lane aligned slices
        f = sig[:, HC:2 * HC]
        o = sig[:, 2 * HC:3 * HC]
        c_new = f * c_ref[...] + i * g
        h_new = o * jnp.tanh(c_new)
        h_ref[...] = h_new
        c_ref[...] = c_new
        # Final Linear folded into the loop: two 64-lane reductions, scattered to lanes
        # s (fwd) and T-1-s (bwd) of the lane-dense output block via an iota select.
        v = h_new * wlin                          # (BT, HC)
        yf = jnp.sum(v[:, :HP], axis=-1, keepdims=True)       # fwd output at time s
        yb = jnp.sum(v[:, HP:], axis=-1, keepdims=True)       # bwd output at time T-1-s
        out_ref[...] = (out_ref[...]
                        + jnp.where(lane_t == s, yf, 0.0)
                        + jnp.where(lane_t == (T - 1 - s), yb, 0.0))
        return carry

    unroll = True if T <= 32 else 4
    lax.fori_loop(0, T, step, 0, unroll=unroll)


# ---------------- parameter packing (plain JAX glue) ----------------

def _round_up(x, m):
    return ((x + m - 1) // m) * m


def _pack_gatevec_dir(v):
    """(4H,) torch gate-vector -> (4, HP) in kernel gate order (i, f, o, g), zero-padded."""
    out = jnp.zeros((4, HP), jnp.float32)
    for gi, g in enumerate(_GATE_ORDER):
        out = out.at[gi, :H].set(v[g * H:(g + 1) * H])
    return out


def _pack_whh_dir(whh):
    """torch weight_hh (4H, H) -> (HP, 4, HP) with [j, gate, k] = whh[gate_row*H + k, j]."""
    out = jnp.zeros((HP, 4, HP), jnp.float32)
    for gi, g in enumerate(_GATE_ORDER):
        blk = whh[g * H:(g + 1) * H, :]          # (H out, H in)
        out = out.at[:H, gi, :H].set(blk.T)      # [in j, gate, out k]
    return out


def _interleave_gatevec(vf, vb):
    """(4, HP) fwd + (4, HP) bwd -> (GC,) with per-gate [fwd | bwd] column layout."""
    return jnp.stack([vf, vb], axis=1).reshape(GC)


def _vmem_budget_bytes(T, bt):
    """Estimated VMEM footprint (lane padding + double buffering included)."""
    x_blk = 2 * T * bt * 128 * 4                       # (T, BT, 1) block, lanes padded to 128
    out_blk = 2 * bt * _round_up(max(T, 1), 128) * 4   # (BT, T) block
    weights = 2 * (HC * GC + 8 * GC + 8 * HC + 8 * 128) * 4
    scratch = 2 * bt * HC * 4
    return x_blk + out_blk + weights + scratch


def air_model_forward(x, params, *, batch_tile=None):
    """x: (B, T, 1) float32 -> (B, T, 1) float32 (matches torch AirModel.forward)."""
    B, T, _ = x.shape
    bt = batch_tile if batch_tile is not None else min(_round_up(B, 8), 64)
    bt = _round_up(bt, 8)
    B_pad = _round_up(B, bt)
    num_b = B_pad // bt

    # --- recurrent weights: block-diagonal [h_f -> fwd gates ; h_b -> bwd gates] ---
    whh_f_p = _pack_whh_dir(params["w_hh_f"])                     # (HP, 4, HP)
    whh_b_p = _pack_whh_dir(params["w_hh_b"])
    zeros_w = jnp.zeros_like(whh_f_p)
    top = jnp.stack([whh_f_p, zeros_w], axis=2).reshape(HP, GC)   # rows for h_fwd lanes
    bot = jnp.stack([zeros_w, whh_b_p], axis=2).reshape(HP, GC)   # rows for h_bwd lanes
    whh_cat = jnp.concatenate([top, bot], axis=0)                 # (HC, GC)

    # --- x-side gate weight vectors + fused bias (input_size == 1 -> pure broadcast) ---
    wih_f_only = _interleave_gatevec(_pack_gatevec_dir(params["w_ih_f"][:, 0]),
                                     jnp.zeros((4, HP), jnp.float32))
    wih_b_only = _interleave_gatevec(jnp.zeros((4, HP), jnp.float32),
                                     _pack_gatevec_dir(params["w_ih_b"][:, 0]))
    b_cat = _interleave_gatevec(_pack_gatevec_dir(params["b_ih_f"] + params["b_hh_f"]),
                                _pack_gatevec_dir(params["b_ih_b"] + params["b_hh_b"]))
    wvec = (jnp.zeros((8, GC), jnp.float32)
            .at[0].set(wih_f_only).at[1].set(wih_b_only).at[2].set(b_cat))

    # --- final linear ---
    lw = params["lin_w"][0]                                       # (2H,)
    wlin_cat = (jnp.zeros((1, HC), jnp.float32)
                .at[0, :H].set(lw[:H])
                .at[0, HP:HP + H].set(lw[H:]))
    blin = params["lin_b"].reshape(1, 1).astype(jnp.float32)

    # --- raw input, time-major, batch padded to the tile ---
    x_tb = jnp.transpose(x, (1, 0, 2)).astype(jnp.float32)        # (T, B, 1)
    x_pad = jnp.zeros((T, B_pad, 1), jnp.float32).at[:, :B, :].set(x_tb)

    vmem_limit = int(min(max(2 * _vmem_budget_bytes(T, bt), 32 * 1024 * 1024),
                         64 * 1024 * 1024))

    out = pl.pallas_call(
        bilstm_linear_kernel,
        out_shape=jax.ShapeDtypeStruct((B_pad, T), jnp.float32),
        grid=(num_b,),
        in_specs=[
            pl.BlockSpec((T, bt, 1), lambda b: (0, b, 0)),
            pl.BlockSpec((HC, GC), lambda b: (0, 0)),
            pl.BlockSpec((8, GC), lambda b: (0, 0)),
            pl.BlockSpec((1, HC), lambda b: (0, 0)),
            pl.BlockSpec((1, 1), lambda b: (0, 0),
                         memory_space=pltpu.MemorySpace.SMEM),
        ],
        out_specs=pl.BlockSpec((bt, T), lambda b: (b, 0)),
        scratch_shapes=[
            pltpu.VMEM((bt, HC), jnp.float32),     # fused h state [h_f | h_b]
            pltpu.VMEM((bt, HC), jnp.float32),     # fused c state [c_f | c_b]
        ],
        compiler_params=pltpu.CompilerParams(
            dimension_semantics=("parallel",),
            vmem_limit_bytes=vmem_limit),
    )(x_pad, whh_cat, wvec, wlin_cat, blin)

    return out[:B, :, None]                                       # (B, T, 1)


# ---------------- pure-JAX reference (for correctness check) ----------------

def _lstm_ref(x, w_ih, w_hh, b_ih, b_hh):
    B = x.shape[0]

    def step(carry, x_t):
        h, c = carry
        gates = x_t @ w_ih.T + h @ w_hh.T + b_ih + b_hh
        i, f, g, o = jnp.split(gates, 4, axis=-1)
        c = jax.nn.sigmoid(f) * c + jax.nn.sigmoid(i) * jnp.tanh(g)
        h = jax.nn.sigmoid(o) * jnp.tanh(c)
        return (h, c), h

    h0 = jnp.zeros((B, H), jnp.float32)
    c0 = jnp.zeros((B, H), jnp.float32)
    _, ys = lax.scan(step, (h0, c0), jnp.swapaxes(x, 0, 1))
    return jnp.swapaxes(ys, 0, 1)


def air_model_reference(x, p):
    yf = _lstm_ref(x, p["w_ih_f"], p["w_hh_f"], p["b_ih_f"], p["b_hh_f"])
    yb = _lstm_ref(x[:, ::-1], p["w_ih_b"], p["w_hh_b"], p["b_ih_b"], p["b_hh_b"])[:, ::-1]
    y = jnp.concatenate([yf, yb], axis=-1)
    return y @ p["lin_w"].T + p["lin_b"]


# ---------------- deterministic parameter init ----------------

def init_params(key):
    k = 1.0 / np.sqrt(H)
    names_shapes = [
        ("w_ih_f", (4 * H, 1)), ("w_hh_f", (4 * H, H)),
        ("b_ih_f", (4 * H,)), ("b_hh_f", (4 * H,)),
        ("w_ih_b", (4 * H, 1)), ("w_hh_b", (4 * H, H)),
        ("b_ih_b", (4 * H,)), ("b_hh_b", (4 * H,)),
        ("lin_w", (1, 2 * H)), ("lin_b", (1,)),
    ]
    keys = jax.random.split(key, len(names_shapes))
    return {n: jax.random.uniform(kk, s, jnp.float32, -k, k)
            for kk, (n, s) in zip(keys, names_shapes)}


if __name__ == "__main__":
    key = jax.random.PRNGKey(0)
    pkey, xkey = jax.random.split(key)
    params = init_params(pkey)

    B, T = 2, 8
    x = jax.random.normal(xkey, (B, T, 1), jnp.float32)

    out = jax.block_until_ready(air_model_forward(x, params))
    ref = jax.block_until_ready(air_model_reference(x, params))

    assert out.shape == (B, T, 1), out.shape
    np.testing.assert_allclose(np.asarray(out), np.asarray(ref), rtol=2e-4, atol=2e-4)
    print("KERNEL_OK")
</pallas_src>

<mosaic_0001>
module attributes {stable_mosaic.version = 11 : i64} {
  func.func @bilstm_linear_kernel(%arg0: i32, %arg1: memref<8x8x1xf32, #tpu.memory_space<vmem>>, %arg2: memref<128x512xf32, #tpu.memory_space<vmem>>, %arg3: memref<8x512xf32, #tpu.memory_space<vmem>>, %arg4: memref<1x128xf32, #tpu.memory_space<vmem>>, %arg5: memref<1x1xf32, #tpu.memory_space<smem>>, %arg6: memref<8x8xf32, #tpu.memory_space<vmem>>, %arg7: memref<8x128xf32, #tpu.memory_space<vmem>>, %arg8: memref<8x128xf32, #tpu.memory_space<vmem>>) attributes {dimension_semantics = [#tpu.dimension_semantics<parallel>], iteration_bounds = array<i64: 1>, scalar_prefetch = 0 : i64, scratch_operands = 2 : i64, tpu.core_type = #tpu.core_type<tc>, window_params = [{transform_indices = @transform_0, window_bounds = array<i64: 8, 8, 1>}, {pipeline_mode = #tpu.pipeline_mode<synchronous>, transform_indices = @transform_1, window_bounds = array<i64: 128, 512>}, {pipeline_mode = #tpu.pipeline_mode<synchronous>, transform_indices = @transform_2, window_bounds = array<i64: 8, 512>}, {pipeline_mode = #tpu.pipeline_mode<synchronous>, transform_indices = @transform_3, window_bounds = array<i64: 1, 128>}, {transform_indices = @transform_4, window_bounds = array<i64: 1, 1>}, {transform_indices = @transform_5, window_bounds = array<i64: 8, 8>}]} {
    %cst = arith.constant 0.000000e+00 : f32
    %0 = vector.broadcast %cst : f32 to vector<8x128xf32>
    %c0 = arith.constant 0 : index
    %c0_0 = arith.constant 0 : index
    %1 = vector.load %arg7[%c0, %c0_0] : memref<8x128xf32, #tpu.memory_space<vmem>>, vector<8x128xf32>
    tpu.vector_store %arg7[%c0, %c0_0], %0 {strides = array<i32>} : memref<8x128xf32, #tpu.memory_space<vmem>>, vector<8x128xf32>,
    %cst_1 = arith.constant 0.000000e+00 : f32
    %2 = vector.broadcast %cst_1 : f32 to vector<8x128xf32>
    %c0_2 = arith.constant 0 : index
    %c0_3 = arith.constant 0 : index
    %3 = vector.load %arg8[%c0_2, %c0_3] : memref<8x128xf32, #tpu.memory_space<vmem>>, vector<8x128xf32>
    tpu.vector_store %arg8[%c0_2, %c0_3], %2 {strides = array<i32>} : memref<8x128xf32, #tpu.memory_space<vmem>>, vector<8x128xf32>,
    %c0_4 = arith.constant 0 : index
    %c0_5 = arith.constant 0 : index
    %4 = vector.load %arg3[%c0_4, %c0_5] : memref<8x512xf32, #tpu.memory_space<vmem>>, vector<1x512xf32>
    %c1 = arith.constant 1 : index
    %c0_6 = arith.constant 0 : index
    %5 = vector.load %arg3[%c1, %c0_6] : memref<8x512xf32, #tpu.memory_space<vmem>>, vector<1x512xf32>
    %c2 = arith.constant 2 : index
    %c0_7 = arith.constant 0 : index
    %6 = vector.load %arg3[%c2, %c0_7] : memref<8x512xf32, #tpu.memory_space<vmem>>, vector<1x512xf32>
    %7 = vector.shape_cast %6 : vector<1x512xf32> to vector<1x512xf32>
    %8 = vector.broadcast %7 : vector<1x512xf32> to vector<8x512xf32>
    %c0_8 = arith.constant 0 : index
    %c0_9 = arith.constant 0 : index
    %9 = vector.load %arg4[%c0_8, %c0_9] : memref<1x128xf32, #tpu.memory_space<vmem>>, vector<1x128xf32>
    %10 = vector.shape_cast %9 : vector<1x128xf32> to vector<1x128xf32>
    %11 = vector.broadcast %10 : vector<1x128xf32> to vector<8x128xf32>
    %12 = tpu.iota {dimensions = array<i32: 1>} : vector<8x8xi32>
    %c0_10 = arith.constant 0 : index
    %c0_11 = arith.constant 0 : index
    %13 = memref.load %arg5[%c0_10, %c0_11] : memref<1x1xf32, #tpu.memory_space<smem>>
    %14 = vector.broadcast %13 : f32 to vector<8x8xf32>
    %c0_12 = arith.constant 0 : index
    %c0_13 = arith.constant 0 : index
    %15 = vector.load %arg6[%c0_12, %c0_13] : memref<8x8xf32, #tpu.memory_space<vmem>>, vector<8x8xf32>
    tpu.vector_store %arg6[%c0_12, %c0_13], %14 {strides = array<i32>} : memref<8x8xf32, #tpu.memory_space<vmem>>, vector<8x8xf32>,
    %c0_i32 = arith.constant 0 : i32
    %16 = arith.index_cast %c0_i32 : i32 to index
    %c0_14 = arith.constant 0 : index
    %c0_15 = arith.constant 0 : index
    %17 = vector.load %arg1[%16, %c0_14, %c0_15] : memref<8x8x1xf32, #tpu.memory_space<vmem>>, vector<1x8x1xf32>
    %18 = vector.shape_cast %17 : vector<1x8x1xf32> to vector<8x1xf32>
    %c7_i32 = arith.constant 7 : i32
    %19 = arith.subi %c7_i32, %c0_i32 : i32
    %20 = arith.index_cast %19 : i32 to index
    %c0_16 = arith.constant 0 : index
    %c0_17 = arith.constant 0 : index
    %21 = vector.load %arg1[%20, %c0_16, %c0_17] : memref<8x8x1xf32, #tpu.memory_space<vmem>>, vector<1x8x1xf32>
    %22 = vector.shape_cast %21 : vector<1x8x1xf32> to vector<8x1xf32>
    %23 = vector.broadcast %18 : vector<8x1xf32> to vector<8x512xf32>
    %24 = vector.broadcast %4 : vector<1x512xf32> to vector<8x512xf32>
    %25 = arith.mulf %23, %24 : vector<8x512xf32>
    %26 = vector.broadcast %22 : vector<8x1xf32> to vector<8x512xf32>
    %27 = vector.broadcast %5 : vector<1x512xf32> to vector<8x512xf32>
    %28 = arith.mulf %26, %27 : vector<8x512xf32>
    %29 = arith.addf %25, %28 : vector<8x512xf32>
    %30 = arith.addf %29, %8 : vector<8x512xf32>
    %c0_18 = arith.constant 0 : index
    %c0_19 = arith.constant 0 : index
    %31 = vector.load %arg7[%c0_18, %c0_19] : memref<8x128xf32, #tpu.memory_space<vmem>>, vector<8x128xf32>
    %c0_20 = arith.constant 0 : index
    %c0_21 = arith.constant 0 : index
    %32 = vector.load %arg2[%c0_20, %c0_21] : memref<128x512xf32, #tpu.memory_space<vmem>>, vector<128x512xf32>
    %cst_22 = arith.constant dense<0.000000e+00> : vector<8x512xf32>
    %33 = tpu.matmul %31, %32, %cst_22 {dimension_numbers = #tpu.dot_dimension_numbers<[1], [0], [0], [1], [0, 0, 1, 1], [], []>} : vector<8x128xf32>, vector<128x512xf32>, vector<8x512xf32> -> vector<8x512xf32>
    %34 = arith.addf %30, %33 : vector<8x512xf32>
    %35 = vector.extract_strided_slice %34 {offsets = [0, 0], sizes = [8, 384], strides = [1, 1]} : vector<8x512xf32> to vector<8x384xf32>
    %36 = arith.negf %35 : vector<8x384xf32>
    %37 = math.exp %36 : vector<8x384xf32>
    %cst_23 = arith.constant 1.000000e+00 : f32
    %38 = vector.broadcast %cst_23 : f32 to vector<8x384xf32>
    %39 = arith.addf %38, %37 : vector<8x384xf32>
    %40 = arith.divf %38, %39 : vector<8x384xf32>
    %41 = vector.extract_strided_slice %34 {offsets = [0, 384], sizes = [8, 128], strides = [1, 1]} : vector<8x512xf32> to vector<8x128xf32>
    %42 = math.tanh %41 : vector<8x128xf32>
    %43 = vector.extract_strided_slice %40 {offsets = [0, 0], sizes = [8, 128], strides = [1, 1]} : vector<8x384xf32> to vector<8x128xf32>
    %44 = vector.extract_strided_slice %40 {offsets = [0, 128], sizes = [8, 128], strides = [1, 1]} : vector<8x384xf32> to vector<8x128xf32>
    %45 = vector.extract_strided_slice %40 {offsets = [0, 256], sizes = [8, 128], strides = [1, 1]} : vector<8x384xf32> to vector<8x128xf32>
    %c0_24 = arith.constant 0 : index
    %c0_25 = arith.constant 0 : index
    %46 = vector.load %arg8[%c0_24, %c0_25] : memref<8x128xf32, #tpu.memory_space<vmem>>, vector<8x128xf32>
    %47 = arith.mulf %44, %46 : vector<8x128xf32>
    %48 = arith.mulf %43, %42 : vector<8x128xf32>
    %49 = arith.addf %47, %48 : vector<8x128xf32>
    %50 = math.tanh %49 : vector<8x128xf32>
    %51 = arith.mulf %45, %50 : vector<8x128xf32>
    %c0_26 = arith.constant 0 : index
    %c0_27 = arith.constant 0 : index
    %52 = vector.load %arg7[%c0_26, %c0_27] : memref<8x128xf32, #tpu.memory_space<vmem>>, vector<8x128xf32>
    tpu.vector_store %arg7[%c0_26, %c0_27], %51 {strides = array<i32>} : memref<8x128xf32, #tpu.memory_space<vmem>>, vector<8x128xf32>,
    %c0_28 = arith.constant 0 : index
    %c0_29 = arith.constant 0 : index
    %53 = vector.load %arg8[%c0_28, %c0_29] : memref<8x128xf32, #tpu.memory_space<vmem>>, vector<8x128xf32>
    tpu.vector_store %arg8[%c0_28, %c0_29], %49 {strides = array<i32>} : memref<8x128xf32, #tpu.memory_space<vmem>>, vector<8x128xf32>,
    %54 = arith.mulf %51, %11 : vector<8x128xf32>
    %55 = vector.extract_strided_slice %54 {offsets = [0, 0], sizes = [8, 64], strides = [1, 1]} : vector<8x128xf32> to vector<8x64xf32>
    %cst_30 = arith.constant dense<0.000000e+00> : vector<8xf32>
    %56 = vector.multi_reduction <add>, %55, %cst_30 [1] : vector<8x64xf32> to vector<8xf32>
    %57 = vector.shape_cast %56 : vector<8xf32> to vector<8x1xf32>
    %58 = vector.extract_strided_slice %54 {offsets = [0, 64], sizes = [8, 64], strides = [1, 1]} : vector<8x128xf32> to vector<8x64xf32>
    %cst_31 = arith.constant dense<0.000000e+00> : vector<8xf32>
    %59 = vector.multi_reduction <add>, %58, %cst_31 [1] : vector<8x64xf32> to vector<8xf32>
    %60 = vector.shape_cast %59 : vector<8xf32> to vector<8x1xf32>
    %c0_32 = arith.constant 0 : index
    %c0_33 = arith.constant 0 : index
    %61 = vector.load %arg6[%c0_32, %c0_33] : memref<8x8xf32, #tpu.memory_space<vmem>>, vector<8x8xf32>
    %62 = vector.broadcast %c0_i32 : i32 to vector<8x8xi32>
    %63 = arith.cmpi eq, %12, %62 : vector<8x8xi32>
    %cst_34 = arith.constant 0.000000e+00 : f32
    %64 = vector.shape_cast %57 : vector<8x1xf32> to vector<8x1xf32>
    %65 = vector.broadcast %64 : vector<8x1xf32> to vector<8x8xf32>
    %66 = vector.broadcast %cst_34 : f32 to vector<8x8xf32>
    %67 = arith.select %63, %65, %66 : vector<8x8xi1>, vector<8x8xf32>
    %68 = arith.addf %61, %67 : vector<8x8xf32>
    %c7_i32_35 = arith.constant 7 : i32
    %69 = arith.subi %c7_i32_35, %c0_i32 : i32
    %70 = vector.broadcast %69 : i32 to vector<8x8xi32>
    %71 = arith.cmpi eq, %12, %70 : vector<8x8xi32>
    %cst_36 = arith.constant 0.000000e+00 : f32
    %72 = vector.shape_cast %60 : vector<8x1xf32> to vector<8x1xf32>
    %73 = vector.broadcast %72 : vector<8x1xf32> to vector<8x8xf32>
    %74 = vector.broadcast %cst_36 : f32 to vector<8x8xf32>
    %75 = arith.select %71, %73, %74 : vector<8x8xi1>, vector<8x8xf32>
    %76 = arith.addf %68, %75 : vector<8x8xf32>
    %c0_37 = arith.constant 0 : index
    %c0_38 = arith.constant 0 : index
    %77 = vector.load %arg6[%c0_37, %c0_38] : memref<8x8xf32, #tpu.memory_space<vmem>>, vector<8x8xf32>
    tpu.vector_store %arg6[%c0_37, %c0_38], %76 {strides = array<i32>} : memref<8x8xf32, #tpu.memory_space<vmem>>, vector<8x8xf32>,
    %c1_i32 = arith.constant 1 : i32
    %78 = arith.index_cast %c1_i32 : i32 to index
    %c0_39 = arith.constant 0 : index
    %c0_40 = arith.constant 0 : index
    %79 = vector.load %arg1[%78, %c0_39, %c0_40] : memref<8x8x1xf32, #tpu.memory_space<vmem>>, vector<1x8x1xf32>
    %80 = vector.shape_cast %79 : vector<1x8x1xf32> to vector<8x1xf32>
    %c7_i32_41 = arith.constant 7 : i32
    %81 = arith.subi %c7_i32_41, %c1_i32 : i32
    %82 = arith.index_cast %81 : i32 to index
    %c0_42 = arith.constant 0 : index
    %c0_43 = arith.constant 0 : index
    %83 = vector.load %arg1[%82, %c0_42, %c0_43] : memref<8x8x1xf32, #tpu.memory_space<vmem>>, vector<1x8x1xf32>
    %84 = vector.shape_cast %83 : vector<1x8x1xf32> to vector<8x1xf32>
    %85 = vector.broadcast %80 : vector<8x1xf32> to vector<8x512xf32>
    %86 = vector.broadcast %4 : vector<1x512xf32> to vector<8x512xf32>
    %87 = arith.mulf %85, %86 : vector<8x512xf32>
    %88 = vector.broadcast %84 : vector<8x1xf32> to vector<8x512xf32>
    %89 = vector.broadcast %5 : vector<1x512xf32> to vector<8x512xf32>
    %90 = arith.mulf %88, %89 : vector<8x512xf32>
    %91 = arith.addf %87, %90 : vector<8x512xf32>
    %92 = arith.addf %91, %8 : vector<8x512xf32>
    %c0_44 = arith.constant 0 : index
    %c0_45 = arith.constant 0 : index
    %93 = vector.load %arg7[%c0_44, %c0_45] : memref<8x128xf32, #tpu.memory_space<vmem>>, vector<8x128xf32>
    %c0_46 = arith.constant 0 : index
    %c0_47 = arith.constant 0 : index
    %94 = vector.load %arg2[%c0_46, %c0_47] : memref<128x512xf32, #tpu.memory_space<vmem>>, vector<128x512xf32>
    %cst_48 = arith.constant dense<0.000000e+00> : vector<8x512xf32>
    %95 = tpu.matmul %93, %94, %cst_48 {dimension_numbers = #tpu.dot_dimension_numbers<[1], [0], [0], [1], [0, 0, 1, 1], [], []>} : vector<8x128xf32>, vector<128x512xf32>, vector<8x512xf32> -> vector<8x512xf32>
    %96 = arith.addf %92, %95 : vector<8x512xf32>
    %97 = vector.extract_strided_slice %96 {offsets = [0, 0], sizes = [8, 384], strides = [1, 1]} : vector<8x512xf32> to vector<8x384xf32>
    %98 = arith.negf %97 : vector<8x384xf32>
    %99 = math.exp %98 : vector<8x384xf32>
    %cst_49 = arith.constant 1.000000e+00 : f32
    %100 = vector.broadcast %cst_49 : f32 to vector<8x384xf32>
    %101 = arith.addf %100, %99 : vector<8x384xf32>
    %102 = arith.divf %100, %101 : vector<8x384xf32>
    %103 = vector.extract_strided_slice %96 {offsets = [0, 384], sizes = [8, 128], strides = [1, 1]} : vector<8x512xf32> to vector<8x128xf32>
    %104 = math.tanh %103 : vector<8x128xf32>
    %105 = vector.extract_strided_slice %102 {offsets = [0, 0], sizes = [8, 128], strides = [1, 1]} : vector<8x384xf32> to vector<8x128xf32>
    %106 = vector.extract_strided_slice %102 {offsets = [0, 128], sizes = [8, 128], strides = [1, 1]} : vector<8x384xf32> to vector<8x128xf32>
    %107 = vector.extract_strided_slice %102 {offsets = [0, 256], sizes = [8, 128], strides = [1, 1]} : vector<8x384xf32> to vector<8x128xf32>
    %c0_50 = arith.constant 0 : index
    %c0_51 = arith.constant 0 : index
    %108 = vector.load %arg8[%c0_50, %c0_51] : memref<8x128xf32, #tpu.memory_space<vmem>>, vector<8x128xf32>
    %109 = arith.mulf %106, %108 : vector<8x128xf32>
    %110 = arith.mulf %105, %104 : vector<8x128xf32>
    %111 = arith.addf %109, %110 : vector<8x128xf32>
    %112 = math.tanh %111 : vector<8x128xf32>
    %113 = arith.mulf %107, %112 : vector<8x128xf32>
    %c0_52 = arith.constant 0 : index
    %c0_53 = arith.constant 0 : index
    %114 = vector.load %arg7[%c0_52, %c0_53] : memref<8x128xf32, #tpu.memory_space<vmem>>, vector<8x128xf32>
    tpu.vector_store %arg7[%c0_52, %c0_53], %113 {strides = array<i32>} : memref<8x128xf32, #tpu.memory_space<vmem>>, vector<8x128xf32>,
    %c0_54 = arith.constant 0 : index
    %c0_55 = arith.constant 0 : index
    %115 = vector.load %arg8[%c0_54, %c0_55] : memref<8x128xf32, #tpu.memory_space<vmem>>, vector<8x128xf32>
    tpu.vector_store %arg8[%c0_54, %c0_55], %111 {strides = array<i32>} : memref<8x128xf32, #tpu.memory_space<vmem>>, vector<8x128xf32>,
    %116 = arith.mulf %113, %11 : vector<8x128xf32>
    %117 = vector.extract_strided_slice %116 {offsets = [0, 0], sizes = [8, 64], strides = [1, 1]} : vector<8x128xf32> to vector<8x64xf32>
    %cst_56 = arith.constant dense<0.000000e+00> : vector<8xf32>
    %118 = vector.multi_reduction <add>, %117, %cst_56 [1] : vector<8x64xf32> to vector<8xf32>
    %119 = vector.shape_cast %118 : vector<8xf32> to vector<8x1xf32>
    %120 = vector.extract_strided_slice %116 {offsets = [0, 64], sizes = [8, 64], strides = [1, 1]} : vector<8x128xf32> to vector<8x64xf32>
    %cst_57 = arith.constant dense<0.000000e+00> : vector<8xf32>
    %121 = vector.multi_reduction <add>, %120, %cst_57 [1] : vector<8x64xf32> to vector<8xf32>
    %122 = vector.shape_cast %121 : vector<8xf32> to vector<8x1xf32>
    %c0_58 = arith.constant 0 : index
    %c0_59 = arith.constant 0 : index
    %123 = vector.load %arg6[%c0_58, %c0_59] : memref<8x8xf32, #tpu.memory_space<vmem>>, vector<8x8xf32>
    %124 = vector.broadcast %c1_i32 : i32 to vector<8x8xi32>
    %125 = arith.cmpi eq, %12, %124 : vector<8x8xi32>
    %cst_60 = arith.constant 0.000000e+00 : f32
    %126 = vector.shape_cast %119 : vector<8x1xf32> to vector<8x1xf32>
    %127 = vector.broadcast %126 : vector<8x1xf32> to vector<8x8xf32>
    %128 = vector.broadcast %cst_60 : f32 to vector<8x8xf32>
    %129 = arith.select %125, %127, %128 : vector<8x8xi1>, vector<8x8xf32>
    %130 = arith.addf %123, %129 : vector<8x8xf32>
    %c7_i32_61 = arith.constant 7 : i32
    %131 = arith.subi %c7_i32_61, %c1_i32 : i32
    %132 = vector.broadcast %131 : i32 to vector<8x8xi32>
    %133 = arith.cmpi eq, %12, %132 : vector<8x8xi32>
    %cst_62 = arith.constant 0.000000e+00 : f32
    %134 = vector.shape_cast %122 : vector<8x1xf32> to vector<8x1xf32>
    %135 = vector.broadcast %134 : vector<8x1xf32> to vector<8x8xf32>
    %136 = vector.broadcast %cst_62 : f32 to vector<8x8xf32>
    %137 = arith.select %133, %135, %136 : vector<8x8xi1>, vector<8x8xf32>
    %138 = arith.addf %130, %137 : vector<8x8xf32>
    %c0_63 = arith.constant 0 : index
    %c0_64 = arith.constant 0 : index
    %139 = vector.load %arg6[%c0_63, %c0_64] : memref<8x8xf32, #tpu.memory_space<vmem>>, vector<8x8xf32>
    tpu.vector_store %arg6[%c0_63, %c0_64], %138 {strides = array<i32>} : memref<8x8xf32, #tpu.memory_space<vmem>>, vector<8x8xf32>,
    %c2_i32 = arith.constant 2 : i32
    %140 = arith.index_cast %c2_i32 : i32 to index
    %c0_65 = arith.constant 0 : index
    %c0_66 = arith.constant 0 : index
    %141 = vector.load %arg1[%140, %c0_65, %c0_66] : memref<8x8x1xf32, #tpu.memory_space<vmem>>, vector<1x8x1xf32>
    %142 = vector.shape_cast %141 : vector<1x8x1xf32> to vector<8x1xf32>
    %c7_i32_67 = arith.constant 7 : i32
    %143 = arith.subi %c7_i32_67, %c2_i32 : i32
    %144 = arith.index_cast %143 : i32 to index
    %c0_68 = arith.constant 0 : index
    %c0_69 = arith.constant 0 : index
    %145 = vector.load %arg1[%144, %c0_68, %c0_69] : memref<8x8x1xf32, #tpu.memory_space<vmem>>, vector<1x8x1xf32>
    %146 = vector.shape_cast %145 : vector<1x8x1xf32> to vector<8x1xf32>
    %147 = vector.broadcast %142 : vector<8x1xf32> to vector<8x512xf32>
    %148 = vector.broadcast %4 : vector<1x512xf32> to vector<8x512xf32>
    %149 = arith.mulf %147, %148 : vector<8x512xf32>
    %150 = vector.broadcast %146 : vector<8x1xf32> to vector<8x512xf32>
    %151 = vector.broadcast %5 : vector<1x512xf32> to vector<8x512xf32>
    %152 = arith.mulf %150, %151 : vector<8x512xf32>
    %153 = arith.addf %149, %152 : vector<8x512xf32>
    %154 = arith.addf %153, %8 : vector<8x512xf32>
    %c0_70 = arith.constant 0 : index
    %c0_71 = arith.constant 0 : index
    %155 = vector.load %arg7[%c0_70, %c0_71] : memref<8x128xf32, #tpu.memory_space<vmem>>, vector<8x128xf32>
    %c0_72 = arith.constant 0 : index
    %c0_73 = arith.constant 0 : index
    %156 = vector.load %arg2[%c0_72, %c0_73] : memref<128x512xf32, #tpu.memory_space<vmem>>, vector<128x512xf32>
    %cst_74 = arith.constant dense<0.000000e+00> : vector<8x512xf32>
    %157 = tpu.matmul %155, %156, %cst_74 {dimension_numbers = #tpu.dot_dimension_numbers<[1], [0], [0], [1], [0, 0, 1, 1], [], []>} : vector<8x128xf32>, vector<128x512xf32>, vector<8x512xf32> -> vector<8x512xf32>
    %158 = arith.addf %154, %157 : vector<8x512xf32>
    %159 = vector.extract_strided_slice %158 {offsets = [0, 0], sizes = [8, 384], strides = [1, 1]} : vector<8x512xf32> to vector<8x384xf32>
    %160 = arith.negf %159 : vector<8x384xf32>
    %161 = math.exp %160 : vector<8x384xf32>
    %cst_75 = arith.constant 1.000000e+00 : f32
    %162 = vector.broadcast %cst_75 : f32 to vector<8x384xf32>
    %163 = arith.addf %162, %161 : vector<8x384xf32>
    %164 = arith.divf %162, %163 : vector<8x384xf32>
    %165 = vector.extract_strided_slice %158 {offsets = [0, 384], sizes = [8, 128], strides = [1, 1]} : vector<8x512xf32> to vector<8x128xf32>
    %166 = math.tanh %165 : vector<8x128xf32>
    %167 = vector.extract_strided_slice %164 {offsets = [0, 0], sizes = [8, 128], strides = [1, 1]} : vector<8x384xf32> to vector<8x128xf32>
    %168 = vector.extract_strided_slice %164 {offsets = [0, 128], sizes = [8, 128], strides = [1, 1]} : vector<8x384xf32> to vector<8x128xf32>
    %169 = vector.extract_strided_slice %164 {offsets = [0, 256], sizes = [8, 128], strides = [1, 1]} : vector<8x384xf32> to vector<8x128xf32>
    %c0_76 = arith.constant 0 : index
    %c0_77 = arith.constant 0 : index
    %170 = vector.load %arg8[%c0_76, %c0_77] : memref<8x128xf32, #tpu.memory_space<vmem>>, vector<8x128xf32>
    %171 = arith.mulf %168, %170 : vector<8x128xf32>
    %172 = arith.mulf %167, %166 : vector<8x128xf32>
    %173 = arith.addf %171, %172 : vector<8x128xf32>
    %174 = math.tanh %173 : vector<8x128xf32>
    %175 = arith.mulf %169, %174 : vector<8x128xf32>
    %c0_78 = arith.constant 0 : index
    %c0_79 = arith.constant 0 : index
    %176 = vector.load %arg7[%c0_78, %c0_79] : memref<8x128xf32, #tpu.memory_space<vmem>>, vector<8x128xf32>
    tpu.vector_store %arg7[%c0_78, %c0_79], %175 {strides = array<i32>} : memref<8x128xf32, #tpu.memory_space<vmem>>, vector<8x128xf32>,
    %c0_80 = arith.constant 0 : index
    %c0_81 = arith.constant 0 : index
    %177 = vector.load %arg8[%c0_80, %c0_81] : memref<8x128xf32, #tpu.memory_space<vmem>>, vector<8x128xf32>
    tpu.vector_store %arg8[%c0_80, %c0_81], %173 {strides = array<i32>} : memref<8x128xf32, #tpu.memory_space<vmem>>, vector<8x128xf32>,
    %178 = arith.mulf %175, %11 : vector<8x128xf32>
    %179 = vector.extract_strided_slice %178 {offsets = [0, 0], sizes = [8, 64], strides = [1, 1]} : vector<8x128xf32> to vector<8x64xf32>
    %cst_82 = arith.constant dense<0.000000e+00> : vector<8xf32>
    %180 = vector.multi_reduction <add>, %179, %cst_82 [1] : vector<8x64xf32> to vector<8xf32>
    %181 = vector.shape_cast %180 : vector<8xf32> to vector<8x1xf32>
    %182 = vector.extract_strided_slice %178 {offsets = [0, 64], sizes = [8, 64], strides = [1, 1]} : vector<8x128xf32> to vector<8x64xf32>
    %cst_83 = arith.constant dense<0.000000e+00> : vector<8xf32>
    %183 = vector.multi_reduction <add>, %182, %cst_83 [1] : vector<8x64xf32> to vector<8xf32>
    %184 = vector.shape_cast %183 : vector<8xf32> to vector<8x1xf32>
    %c0_84 = arith.constant 0 : index
    %c0_85 = arith.constant 0 : index
    %185 = vector.load %arg6[%c0_84, %c0_85] : memref<8x8xf32, #tpu.memory_space<vmem>>, vector<8x8xf32>
    %186 = vector.broadcast %c2_i32 : i32 to vector<8x8xi32>
    %187 = arith.cmpi eq, %12, %186 : vector<8x8xi32>
    %cst_86 = arith.constant 0.000000e+00 : f32
    %188 = vector.shape_cast %181 : vector<8x1xf32> to vector<8x1xf32>
    %189 = vector.broadcast %188 : vector<8x1xf32> to vector<8x8xf32>
    %190 = vector.broadcast %cst_86 : f32 to vector<8x8xf32>
    %191 = arith.select %187, %189, %190 : vector<8x8xi1>, vector<8x8xf32>
    %192 = arith.addf %185, %191 : vector<8x8xf32>
    %c7_i32_87 = arith.constant 7 : i32
    %193 = arith.subi %c7_i32_87, %c2_i32 : i32
    %194 = vector.broadcast %193 : i32 to vector<8x8xi32>
    %195 = arith.cmpi eq, %12, %194 : vector<8x8xi32>
    %cst_88 = arith.constant 0.000000e+00 : f32
    %196 = vector.shape_cast %184 : vector<8x1xf32> to vector<8x1xf32>
    %197 = vector.broadcast %196 : vector<8x1xf32> to vector<8x8xf32>
    %198 = vector.broadcast %cst_88 : f32 to vector<8x8xf32>
    %199 = arith.select %195, %197, %198 : vector<8x8xi1>, vector<8x8xf32>
    %200 = arith.addf %192, %199 : vector<8x8xf32>
    %c0_89 = arith.constant 0 : index
    %c0_90 = arith.constant 0 : index
    %201 = vector.load %arg6[%c0_89, %c0_90] : memref<8x8xf32, #tpu.memory_space<vmem>>, vector<8x8xf32>
    tpu.vector_store %arg6[%c0_89, %c0_90], %200 {strides = array<i32>} : memref<8x8xf32, #tpu.memory_space<vmem>>, vector<8x8xf32>,
    %c3_i32 = arith.constant 3 : i32
    %202 = arith.index_cast %c3_i32 : i32 to index
    %c0_91 = arith.constant 0 : index
    %c0_92 = arith.constant 0 : index
    %203 = vector.load %arg1[%202, %c0_91, %c0_92] : memref<8x8x1xf32, #tpu.memory_space<vmem>>, vector<1x8x1xf32>
    %204 = vector.shape_cast %203 : vector<1x8x1xf32> to vector<8x1xf32>
    %c7_i32_93 = arith.constant 7 : i32
    %205 = arith.subi %c7_i32_93, %c3_i32 : i32
    %206 = arith.index_cast %205 : i32 to index
    %c0_94 = arith.constant 0 : index
    %c0_95 = arith.constant 0 : index
    %207 = vector.load %arg1[%206, %c0_94, %c0_95] : memref<8x8x1xf32, #tpu.memory_space<vmem>>, vector<1x8x1xf32>
    %208 = vector.shape_cast %207 : vector<1x8x1xf32> to vector<8x1xf32>
    %209 = vector.broadcast %204 : vector<8x1xf32> to vector<8x512xf32>
    %210 = vector.broadcast %4 : vector<1x512xf32> to vector<8x512xf32>
    %211 = arith.mulf %209, %210 : vector<8x512xf32>
    %212 = vector.broadcast %208 : vector<8x1xf32> to vector<8x512xf32>
    %213 = vector.broadcast %5 : vector<1x512xf32> to vector<8x512xf32>
    %214 = arith.mulf %212, %213 : vector<8x512xf32>
    %215 = arith.addf %211, %214 : vector<8x512xf32>
    %216 = arith.addf %215, %8 : vector<8x512xf32>
    %c0_96 = arith.constant 0 : index
    %c0_97 = arith.constant 0 : index
    %217 = vector.load %arg7[%c0_96, %c0_97] : memref<8x128xf32, #tpu.memory_space<vmem>>, vector<8x128xf32>
    %c0_98 = arith.constant 0 : index
    %c0_99 = arith.constant 0 : index
    %218 = vector.load %arg2[%c0_98, %c0_99] : memref<128x512xf32, #tpu.memory_space<vmem>>, vector<128x512xf32>
    %cst_100 = arith.constant dense<0.000000e+00> : vector<8x512xf32>
    %219 = tpu.matmul %217, %218, %cst_100 {dimension_numbers = #tpu.dot_dimension_numbers<[1], [0], [0], [1], [0, 0, 1, 1], [], []>} : vector<8x128xf32>, vector<128x512xf32>, vector<8x512xf32> -> vector<8x512xf32>
    %220 = arith.addf %216, %219 : vector<8x512xf32>
    %221 = vector.extract_strided_slice %220 {offsets = [0, 0], sizes = [8, 384], strides = [1, 1]} : vector<8x512xf32> to vector<8x384xf32>
    %222 = arith.negf %221 : vector<8x384xf32>
    %223 = math.exp %222 : vector<8x384xf32>
    %cst_101 = arith.constant 1.000000e+00 : f32
    %224 = vector.broadcast %cst_101 : f32 to vector<8x384xf32>
    %225 = arith.addf %224, %223 : vector<8x384xf32>
    %226 = arith.divf %224, %225 : vector<8x384xf32>
    %227 = vector.extract_strided_slice %220 {offsets = [0, 384], sizes = [8, 128], strides = [1, 1]} : vector<8x512xf32> to vector<8x128xf32>
    %228 = math.tanh %227 : vector<8x128xf32>
    %229 = vector.extract_strided_slice %226 {offsets = [0, 0], sizes = [8, 128], strides = [1, 1]} : vector<8x384xf32> to vector<8x128xf32>
    %230 = vector.extract_strided_slice %226 {offsets = [0, 128], sizes = [8, 128], strides = [1, 1]} : vector<8x384xf32> to vector<8x128xf32>
    %231 = vector.extract_strided_slice %226 {offsets = [0, 256], sizes = [8, 128], strides = [1, 1]} : vector<8x384xf32> to vector<8x128xf32>
    %c0_102 = arith.constant 0 : index
    %c0_103 = arith.constant 0 : index
    %232 = vector.load %arg8[%c0_102, %c0_103] : memref<8x128xf32, #tpu.memory_space<vmem>>, vector<8x128xf32>
    %233 = arith.mulf %230, %232 : vector<8x128xf32>
    %234 = arith.mulf %229, %228 : vector<8x128xf32>
    %235 = arith.addf %233, %234 : vector<8x128xf32>
    %236 = math.tanh %235 : vector<8x128xf32>
    %237 = arith.mulf %231, %236 : vector<8x128xf32>
    %c0_104 = arith.constant 0 : index
    %c0_105 = arith.constant 0 : index
    %238 = vector.load %arg7[%c0_104, %c0_105] : memref<8x128xf32, #tpu.memory_space<vmem>>, vector<8x128xf32>
    tpu.vector_store %arg7[%c0_104, %c0_105], %237 {strides = array<i32>} : memref<8x128xf32, #tpu.memory_space<vmem>>, vector<8x128xf32>,
    %c0_106 = arith.constant 0 : index
    %c0_107 = arith.constant 0 : index
    %239 = vector.load %arg8[%c0_106, %c0_107] : memref<8x128xf32, #tpu.memory_space<vmem>>, vector<8x128xf32>
    tpu.vector_store %arg8[%c0_106, %c0_107], %235 {strides = array<i32>} : memref<8x128xf32, #tpu.memory_space<vmem>>, vector<8x128xf32>,
    %240 = arith.mulf %237, %11 : vector<8x128xf32>
    %241 = vector.extract_strided_slice %240 {offsets = [0, 0], sizes = [8, 64], strides = [1, 1]} : vector<8x128xf32> to vector<8x64xf32>
    %cst_108 = arith.constant dense<0.000000e+00> : vector<8xf32>
    %242 = vector.multi_reduction <add>, %241, %cst_108 [1] : vector<8x64xf32> to vector<8xf32>
    %243 = vector.shape_cast %242 : vector<8xf32> to vector<8x1xf32>
    %244 = vector.extract_strided_slice %240 {offsets = [0, 64], sizes = [8, 64], strides = [1, 1]} : vector<8x128xf32> to vector<8x64xf32>
    %cst_109 = arith.constant dense<0.000000e+00> : vector<8xf32>
    %245 = vector.multi_reduction <add>, %244, %cst_109 [1] : vector<8x64xf32> to vector<8xf32>
    %246 = vector.shape_cast %245 : vector<8xf32> to vector<8x1xf32>
    %c0_110 = arith.constant 0 : index
    %c0_111 = arith.constant 0 : index
    %247 = vector.load %arg6[%c0_110, %c0_111] : memref<8x8xf32, #tpu.memory_space<vmem>>, vector<8x8xf32>
    %248 = vector.broadcast %c3_i32 : i32 to vector<8x8xi32>
    %249 = arith.cmpi eq, %12, %248 : vector<8x8xi32>
    %cst_112 = arith.constant 0.000000e+00 : f32
    %250 = vector.shape_cast %243 : vector<8x1xf32> to vector<8x1xf32>
    %251 = vector.broadcast %250 : vector<8x1xf32> to vector<8x8xf32>
    %252 = vector.broadcast %cst_112 : f32 to vector<8x8xf32>
    %253 = arith.select %249, %251, %252 : vector<8x8xi1>, vector<8x8xf32>
    %254 = arith.addf %247, %253 : vector<8x8xf32>
    %c7_i32_113 = arith.constant 7 : i32
    %255 = arith.subi %c7_i32_113, %c3_i32 : i32
    %256 = vector.broadcast %255 : i32 to vector<8x8xi32>
    %257 = arith.cmpi eq, %12, %256 : vector<8x8xi32>
    %cst_114 = arith.constant 0.000000e+00 : f32
    %258 = vector.shape_cast %246 : vector<8x1xf32> to vector<8x1xf32>
    %259 = vector.broadcast %258 : vector<8x1xf32> to vector<8x8xf32>
    %260 = vector.broadcast %cst_114 : f32 to vector<8x8xf32>
    %261 = arith.select %257, %259, %260 : vector<8x8xi1>, vector<8x8xf32>
    %262 = arith.addf %254, %261 : vector<8x8xf32>
    %c0_115 = arith.constant 0 : index
    %c0_116 = arith.constant 0 : index
    %263 = vector.load %arg6[%c0_115, %c0_116] : memref<8x8xf32, #tpu.memory_space<vmem>>, vector<8x8xf32>
    tpu.vector_store %arg6[%c0_115, %c0_116], %262 {strides = array<i32>} : memref<8x8xf32, #tpu.memory_space<vmem>>, vector<8x8xf32>,
    %c4_i32 = arith.constant 4 : i32
    %264 = arith.index_cast %c4_i32 : i32 to index
    %c0_117 = arith.constant 0 : index
    %c0_118 = arith.constant 0 : index
    %265 = vector.load %arg1[%264, %c0_117, %c0_118] : memref<8x8x1xf32, #tpu.memory_space<vmem>>, vector<1x8x1xf32>
    %266 = vector.shape_cast %265 : vector<1x8x1xf32> to vector<8x1xf32>
    %c7_i32_119 = arith.constant 7 : i32
    %267 = arith.subi %c7_i32_119, %c4_i32 : i32
    %268 = arith.index_cast %267 : i32 to index
    %c0_120 = arith.constant 0 : index
    %c0_121 = arith.constant 0 : index
    %269 = vector.load %arg1[%268, %c0_120, %c0_121] : memref<8x8x1xf32, #tpu.memory_space<vmem>>, vector<1x8x1xf32>
    %270 = vector.shape_cast %269 : vector<1x8x1xf32> to vector<8x1xf32>
    %271 = vector.broadcast %266 : vector<8x1xf32> to vector<8x512xf32>
    %272 = vector.broadcast %4 : vector<1x512xf32> to vector<8x512xf32>
    %273 = arith.mulf %271, %272 : vector<8x512xf32>
    %274 = vector.broadcast %270 : vector<8x1xf32> to vector<8x512xf32>
    %275 = vector.broadcast %5 : vector<1x512xf32> to vector<8x512xf32>
    %276 = arith.mulf %274, %275 : vector<8x512xf32>
    %277 = arith.addf %273, %276 : vector<8x512xf32>
    %278 = arith.addf %277, %8 : vector<8x512xf32>
    %c0_122 = arith.constant 0 : index
    %c0_123 = arith.constant 0 : index
    %279 = vector.load %arg7[%c0_122, %c0_123] : memref<8x128xf32, #tpu.memory_space<vmem>>, vector<8x128xf32>
    %c0_124 = arith.constant 0 : index
    %c0_125 = arith.constant 0 : index
    %280 = vector.load %arg2[%c0_124, %c0_125] : memref<128x512xf32, #tpu.memory_space<vmem>>, vector<128x512xf32>
    %cst_126 = arith.constant dense<0.000000e+00> : vector<8x512xf32>
    %281 = tpu.matmul %279, %280, %cst_126 {dimension_numbers = #tpu.dot_dimension_numbers<[1], [0], [0], [1], [0, 0, 1, 1], [], []>} : vector<8x128xf32>, vector<128x512xf32>, vector<8x512xf32> -> vector<8x512xf32>
    %282 = arith.addf %278, %281 : vector<8x512xf32>
    %283 = vector.extract_strided_slice %282 {offsets = [0, 0], sizes = [8, 384], strides = [1, 1]} : vector<8x512xf32> to vector<8x384xf32>
    %284 = arith.negf %283 : vector<8x384xf32>
    %285 = math.exp %284 : vector<8x384xf32>
    %cst_127 = arith.constant 1.000000e+00 : f32
    %286 = vector.broadcast %cst_127 : f32 to vector<8x384xf32>
    %287 = arith.addf %286, %285 : vector<8x384xf32>
    %288 = arith.divf %286, %287 : vector<8x384xf32>
    %289 = vector.extract_strided_slice %282 {offsets = [0, 384], sizes = [8, 128], strides = [1, 1]} : vector<8x512xf32> to vector<8x128xf32>
    %290 = math.tanh %289 : vector<8x128xf32>
    %291 = vector.extract_strided_slice %288 {offsets = [0, 0], sizes = [8, 128], strides = [1, 1]} : vector<8x384xf32> to vector<8x128xf32>
    %292 = vector.extract_strided_slice %288 {offsets = [0, 128], sizes = [8, 128], strides = [1, 1]} : vector<8x384xf32> to vector<8x128xf32>
    %293 = vector.extract_strided_slice %288 {offsets = [0, 256], sizes = [8, 128], strides = [1, 1]} : vector<8x384xf32> to vector<8x128xf32>
    %c0_128 = arith.constant 0 : index
    %c0_129 = arith.constant 0 : index
    %294 = vector.load %arg8[%c0_128, %c0_129] : memref<8x128xf32, #tpu.memory_space<vmem>>, vector<8x128xf32>
    %295 = arith.mulf %292, %294 : vector<8x128xf32>
    %296 = arith.mulf %291, %290 : vector<8x128xf32>
    %297 = arith.addf %295, %296 : vector<8x128xf32>
    %298 = math.tanh %297 : vector<8x128xf32>
    %299 = arith.mulf %293, %298 : vector<8x128xf32>
    %c0_130 = arith.constant 0 : index
    %c0_131 = arith.constant 0 : index
    %300 = vector.load %arg7[%c0_130, %c0_131] : memref<8x128xf32, #tpu.memory_space<vmem>>, vector<8x128xf32>
    tpu.vector_store %arg7[%c0_130, %c0_131], %299 {strides = array<i32>} : memref<8x128xf32, #tpu.memory_space<vmem>>, vector<8x128xf32>,
    %c0_132 = arith.constant 0 : index
    %c0_133 = arith.constant 0 : index
    %301 = vector.load %arg8[%c0_132, %c0_133] : memref<8x128xf32, #tpu.memory_space<vmem>>, vector<8x128xf32>
    tpu.vector_store %arg8[%c0_132, %c0_133], %297 {strides = array<i32>} : memref<8x128xf32, #tpu.memory_space<vmem>>, vector<8x128xf32>,
    %302 = arith.mulf %299, %11 : vector<8x128xf32>
    %303 = vector.extract_strided_slice %302 {offsets = [0, 0], sizes = [8, 64], strides = [1, 1]} : vector<8x128xf32> to vector<8x64xf32>
    %cst_134 = arith.constant dense<0.000000e+00> : vector<8xf32>
    %304 = vector.multi_reduction <add>, %303, %cst_134 [1] : vector<8x64xf32> to vector<8xf32>
    %305 = vector.shape_cast %304 : vector<8xf32> to vector<8x1xf32>
    %306 = vector.extract_strided_slice %302 {offsets = [0, 64], sizes = [8, 64], strides = [1, 1]} : vector<8x128xf32> to vector<8x64xf32>
    %cst_135 = arith.constant dense<0.000000e+00> : vector<8xf32>
    %307 = vector.multi_reduction <add>, %306, %cst_135 [1] : vector<8x64xf32> to vector<8xf32>
    %308 = vector.shape_cast %307 : vector<8xf32> to vector<8x1xf32>
    %c0_136 = arith.constant 0 : index
    %c0_137 = arith.constant 0 : index
    %309 = vector.load %arg6[%c0_136, %c0_137] : memref<8x8xf32, #tpu.memory_space<vmem>>, vector<8x8xf32>
    %310 = vector.broadcast %c4_i32 : i32 to vector<8x8xi32>
    %311 = arith.cmpi eq, %12, %310 : vector<8x8xi32>
    %cst_138 = arith.constant 0.000000e+00 : f32
    %312 = vector.shape_cast %305 : vector<8x1xf32> to vector<8x1xf32>
    %313 = vector.broadcast %312 : vector<8x1xf32> to vector<8x8xf32>
    %314 = vector.broadcast %cst_138 : f32 to vector<8x8xf32>
    %315 = arith.select %311, %313, %314 : vector<8x8xi1>, vector<8x8xf32>
    %316 = arith.addf %309, %315 : vector<8x8xf32>
    %c7_i32_139 = arith.constant 7 : i32
    %317 = arith.subi %c7_i32_139, %c4_i32 : i32
    %318 = vector.broadcast %317 : i32 to vector<8x8xi32>
    %319 = arith.cmpi eq, %12, %318 : vector<8x8xi32>
    %cst_140 = arith.constant 0.000000e+00 : f32
    %320 = vector.shape_cast %308 : vector<8x1xf32> to vector<8x1xf32>
    %321 = vector.broadcast %320 : vector<8x1xf32> to vector<8x8xf32>
    %322 = vector.broadcast %cst_140 : f32 to vector<8x8xf32>
    %323 = arith.select %319, %321, %322 : vector<8x8xi1>, vector<8x8xf32>
    %324 = arith.addf %316, %323 : vector<8x8xf32>
    %c0_141 = arith.constant 0 : index
    %c0_142 = arith.constant 0 : index
    %325 = vector.load %arg6[%c0_141, %c0_142] : memref<8x8xf32, #tpu.memory_space<vmem>>, vector<8x8xf32>
    tpu.vector_store %arg6[%c0_141, %c0_142], %324 {strides = array<i32>} : memref<8x8xf32, #tpu.memory_space<vmem>>, vector<8x8xf32>,
    %c5_i32 = arith.constant 5 : i32
    %326 = arith.index_cast %c5_i32 : i32 to index
    %c0_143 = arith.constant 0 : index
    %c0_144 = arith.constant 0 : index
    %327 = vector.load %arg1[%326, %c0_143, %c0_144] : memref<8x8x1xf32, #tpu.memory_space<vmem>>, vector<1x8x1xf32>
    %328 = vector.shape_cast %327 : vector<1x8x1xf32> to vector<8x1xf32>
    %c7_i32_145 = arith.constant 7 : i32
    %329 = arith.subi %c7_i32_145, %c5_i32 : i32
    %330 = arith.index_cast %329 : i32 to index
    %c0_146 = arith.constant 0 : index
    %c0_147 = arith.constant 0 : index
    %331 = vector.load %arg1[%330, %c0_146, %c0_147] : memref<8x8x1xf32, #tpu.memory_space<vmem>>, vector<1x8x1xf32>
    %332 = vector.shape_cast %331 : vector<1x8x1xf32> to vector<8x1xf32>
    %333 = vector.broadcast %328 : vector<8x1xf32> to vector<8x512xf32>
    %334 = vector.broadcast %4 : vector<1x512xf32> to vector<8x512xf32>
    %335 = arith.mulf %333, %334 : vector<8x512xf32>
    %336 = vector.broadcast %332 : vector<8x1xf32> to vector<8x512xf32>
    %337 = vector.broadcast %5 : vector<1x512xf32> to vector<8x512xf32>
    %338 = arith.mulf %336, %337 : vector<8x512xf32>
    %339 = arith.addf %335, %338 : vector<8x512xf32>
    %340 = arith.addf %339, %8 : vector<8x512xf32>
    %c0_148 = arith.constant 0 : index
    %c0_149 = arith.constant 0 : index
    %341 = vector.load %arg7[%c0_148, %c0_149] : memref<8x128xf32, #tpu.memory_space<vmem>>, vector<8x128xf32>
    %c0_150 = arith.constant 0 : index
    %c0_151 = arith.constant 0 : index
    %342 = vector.load %arg2[%c0_150, %c0_151] : memref<128x512xf32, #tpu.memory_space<vmem>>, vector<128x512xf32>
    %cst_152 = arith.constant dense<0.000000e+00> : vector<8x512xf32>
    %343 = tpu.matmul %341, %342, %cst_152 {dimension_numbers = #tpu.dot_dimension_numbers<[1], [0], [0], [1], [0, 0, 1, 1], [], []>} : vector<8x128xf32>, vector<128x512xf32>, vector<8x512xf32> -> vector<8x512xf32>
    %344 = arith.addf %340, %343 : vector<8x512xf32>
    %345 = vector.extract_strided_slice %344 {offsets = [0, 0], sizes = [8, 384], strides = [1, 1]} : vector<8x512xf32> to vector<8x384xf32>
    %346 = arith.negf %345 : vector<8x384xf32>
    %347 = math.exp %346 : vector<8x384xf32>
    %cst_153 = arith.constant 1.000000e+00 : f32
    %348 = vector.broadcast %cst_153 : f32 to vector<8x384xf32>
    %349 = arith.addf %348, %347 : vector<8x384xf32>
    %350 = arith.divf %348, %349 : vector<8x384xf32>
    %351 = vector.extract_strided_slice %344 {offsets = [0, 384], sizes = [8, 128], strides = [1, 1]} : vector<8x512xf32> to vector<8x128xf32>
    %352 = math.tanh %351 : vector<8x128xf32>
    %353 = vector.extract_strided_slice %350 {offsets = [0, 0], sizes = [8, 128], strides = [1, 1]} : vector<8x384xf32> to vector<8x128xf32>
    %354 = vector.extract_strided_slice %350 {offsets = [0, 128], sizes = [8, 128], strides = [1, 1]} : vector<8x384xf32> to vector<8x128xf32>
    %355 = vector.extract_strided_slice %350 {offsets = [0, 256], sizes = [8, 128], strides = [1, 1]} : vector<8x384xf32> to vector<8x128xf32>
    %c0_154 = arith.constant 0 : index
    %c0_155 = arith.constant 0 : index
    %356 = vector.load %arg8[%c0_154, %c0_155] : memref<8x128xf32, #tpu.memory_space<vmem>>, vector<8x128xf32>
    %357 = arith.mulf %354, %356 : vector<8x128xf32>
    %358 = arith.mulf %353, %352 : vector<8x128xf32>
    %359 = arith.addf %357, %358 : vector<8x128xf32>
    %360 = math.tanh %359 : vector<8x128xf32>
    %361 = arith.mulf %355, %360 : vector<8x128xf32>
    %c0_156 = arith.constant 0 : index
    %c0_157 = arith.constant 0 : index
    %362 = vector.load %arg7[%c0_156, %c0_157] : memref<8x128xf32, #tpu.memory_space<vmem>>, vector<8x128xf32>
    tpu.vector_store %arg7[%c0_156, %c0_157], %361 {strides = array<i32>} : memref<8x128xf32, #tpu.memory_space<vmem>>, vector<8x128xf32>,
    %c0_158 = arith.constant 0 : index
    %c0_159 = arith.constant 0 : index
    %363 = vector.load %arg8[%c0_158, %c0_159] : memref<8x128xf32, #tpu.memory_space<vmem>>, vector<8x128xf32>
    tpu.vector_store %arg8[%c0_158, %c0_159], %359 {strides = array<i32>} : memref<8x128xf32, #tpu.memory_space<vmem>>, vector<8x128xf32>,
    %364 = arith.mulf %361, %11 : vector<8x128xf32>
    %365 = vector.extract_strided_slice %364 {offsets = [0, 0], sizes = [8, 64], strides = [1, 1]} : vector<8x128xf32> to vector<8x64xf32>
    %cst_160 = arith.constant dense<0.000000e+00> : vector<8xf32>
    %366 = vector.multi_reduction <add>, %365, %cst_160 [1] : vector<8x64xf32> to vector<8xf32>
    %367 = vector.shape_cast %366 : vector<8xf32> to vector<8x1xf32>
    %368 = vector.extract_strided_slice %364 {offsets = [0, 64], sizes = [8, 64], strides = [1, 1]} : vector<8x128xf32> to vector<8x64xf32>
    %cst_161 = arith.constant dense<0.000000e+00> : vector<8xf32>
    %369 = vector.multi_reduction <add>, %368, %cst_161 [1] : vector<8x64xf32> to vector<8xf32>
    %370 = vector.shape_cast %369 : vector<8xf32> to vector<8x1xf32>
    %c0_162 = arith.constant 0 : index
    %c0_163 = arith.constant 0 : index
    %371 = vector.load %arg6[%c0_162, %c0_163] : memref<8x8xf32, #tpu.memory_space<vmem>>, vector<8x8xf32>
    %372 = vector.broadcast %c5_i32 : i32 to vector<8x8xi32>
    %373 = arith.cmpi eq, %12, %372 : vector<8x8xi32>
    %cst_164 = arith.constant 0.000000e+00 : f32
    %374 = vector.shape_cast %367 : vector<8x1xf32> to vector<8x1xf32>
    %375 = vector.broadcast %374 : vector<8x1xf32> to vector<8x8xf32>
    %376 = vector.broadcast %cst_164 : f32 to vector<8x8xf32>
    %377 = arith.select %373, %375, %376 : vector<8x8xi1>, vector<8x8xf32>
    %378 = arith.addf %371, %377 : vector<8x8xf32>
    %c7_i32_165 = arith.constant 7 : i32
    %379 = arith.subi %c7_i32_165, %c5_i32 : i32
    %380 = vector.broadcast %379 : i32 to vector<8x8xi32>
    %381 = arith.cmpi eq, %12, %380 : vector<8x8xi32>
    %cst_166 = arith.constant 0.000000e+00 : f32
    %382 = vector.shape_cast %370 : vector<8x1xf32> to vector<8x1xf32>
    %383 = vector.broadcast %382 : vector<8x1xf32> to vector<8x8xf32>
    %384 = vector.broadcast %cst_166 : f32 to vector<8x8xf32>
    %385 = arith.select %381, %383, %384 : vector<8x8xi1>, vector<8x8xf32>
    %386 = arith.addf %378, %385 : vector<8x8xf32>
    %c0_167 = arith.constant 0 : index
    %c0_168 = arith.constant 0 : index
    %387 = vector.load %arg6[%c0_167, %c0_168] : memref<8x8xf32, #tpu.memory_space<vmem>>, vector<8x8xf32>
    tpu.vector_store %arg6[%c0_167, %c0_168], %386 {strides = array<i32>} : memref<8x8xf32, #tpu.memory_space<vmem>>, vector<8x8xf32>,
    %c6_i32 = arith.constant 6 : i32
    %388 = arith.index_cast %c6_i32 : i32 to index
    %c0_169 = arith.constant 0 : index
    %c0_170 = arith.constant 0 : index
    %389 = vector.load %arg1[%388, %c0_169, %c0_170] : memref<8x8x1xf32, #tpu.memory_space<vmem>>, vector<1x8x1xf32>
    %390 = vector.shape_cast %389 : vector<1x8x1xf32> to vector<8x1xf32>
    %c7_i32_171 = arith.constant 7 : i32
    %391 = arith.subi %c7_i32_171, %c6_i32 : i32
    %392 = arith.index_cast %391 : i32 to index
    %c0_172 = arith.constant 0 : index
    %c0_173 = arith.constant 0 : index
    %393 = vector.load %arg1[%392, %c0_172, %c0_173] : memref<8x8x1xf32, #tpu.memory_space<vmem>>, vector<1x8x1xf32>
    %394 = vector.shape_cast %393 : vector<1x8x1xf32> to vector<8x1xf32>
    %395 = vector.broadcast %390 : vector<8x1xf32> to vector<8x512xf32>
    %396 = vector.broadcast %4 : vector<1x512xf32> to vector<8x512xf32>
    %397 = arith.mulf %395, %396 : vector<8x512xf32>
    %398 = vector.broadcast %394 : vector<8x1xf32> to vector<8x512xf32>
    %399 = vector.broadcast %5 : vector<1x512xf32> to vector<8x512xf32>
    %400 = arith.mulf %398, %399 : vector<8x512xf32>
    %401 = arith.addf %397, %400 : vector<8x512xf32>
    %402 = arith.addf %401, %8 : vector<8x512xf32>
    %c0_174 = arith.constant 0 : index
    %c0_175 = arith.constant 0 : index
    %403 = vector.load %arg7[%c0_174, %c0_175] : memref<8x128xf32, #tpu.memory_space<vmem>>, vector<8x128xf32>
    %c0_176 = arith.constant 0 : index
    %c0_177 = arith.constant 0 : index
    %404 = vector.load %arg2[%c0_176, %c0_177] : memref<128x512xf32, #tpu.memory_space<vmem>>, vector<128x512xf32>
    %cst_178 = arith.constant dense<0.000000e+00> : vector<8x512xf32>
    %405 = tpu.matmul %403, %404, %cst_178 {dimension_numbers = #tpu.dot_dimension_numbers<[1], [0], [0], [1], [0, 0, 1, 1], [], []>} : vector<8x128xf32>, vector<128x512xf32>, vector<8x512xf32> -> vector<8x512xf32>
    %406 = arith.addf %402, %405 : vector<8x512xf32>
    %407 = vector.extract_strided_slice %406 {offsets = [0, 0], sizes = [8, 384], strides = [1, 1]} : vector<8x512xf32> to vector<8x384xf32>
    %408 = arith.negf %407 : vector<8x384xf32>
    %409 = math.exp %408 : vector<8x384xf32>
    %cst_179 = arith.constant 1.000000e+00 : f32
    %410 = vector.broadcast %cst_179 : f32 to vector<8x384xf32>
    %411 = arith.addf %410, %409 : vector<8x384xf32>
    %412 = arith.divf %410, %411 : vector<8x384xf32>
    %413 = vector.extract_strided_slice %406 {offsets = [0, 384], sizes = [8, 128], strides = [1, 1]} : vector<8x512xf32> to vector<8x128xf32>
    %414 = math.tanh %413 : vector<8x128xf32>
    %415 = vector.extract_strided_slice %412 {offsets = [0, 0], sizes = [8, 128], strides = [1, 1]} : vector<8x384xf32> to vector<8x128xf32>
    %416 = vector.extract_strided_slice %412 {offsets = [0, 128], sizes = [8, 128], strides = [1, 1]} : vector<8x384xf32> to vector<8x128xf32>
    %417 = vector.extract_strided_slice %412 {offsets = [0, 256], sizes = [8, 128], strides = [1, 1]} : vector<8x384xf32> to vector<8x128xf32>
    %c0_180 = arith.constant 0 : index
    %c0_181 = arith.constant 0 : index
    %418 = vector.load %arg8[%c0_180, %c0_181] : memref<8x128xf32, #tpu.memory_space<vmem>>, vector<8x128xf32>
    %419 = arith.mulf %416, %418 : vector<8x128xf32>
    %420 = arith.mulf %415, %414 : vector<8x128xf32>
    %421 = arith.addf %419, %420 : vector<8x128xf32>
    %422 = math.tanh %421 : vector<8x128xf32>
    %423 = arith.mulf %417, %422 : vector<8x128xf32>
    %c0_182 = arith.constant 0 : index
    %c0_183 = arith.constant 0 : index
    %424 = vector.load %arg7[%c0_182, %c0_183] : memref<8x128xf32, #tpu.memory_space<vmem>>, vector<8x128xf32>
    tpu.vector_store %arg7[%c0_182, %c0_183], %423 {strides = array<i32>} : memref<8x128xf32, #tpu.memory_space<vmem>>, vector<8x128xf32>,
    %c0_184 = arith.constant 0 : index
    %c0_185 = arith.constant 0 : index
    %425 = vector.load %arg8[%c0_184, %c0_185] : memref<8x128xf32, #tpu.memory_space<vmem>>, vector<8x128xf32>
    tpu.vector_store %arg8[%c0_184, %c0_185], %421 {strides = array<i32>} : memref<8x128xf32, #tpu.memory_space<vmem>>, vector<8x128xf32>,
    %426 = arith.mulf %423, %11 : vector<8x128xf32>
    %427 = vector.extract_strided_slice %426 {offsets = [0, 0], sizes = [8, 64], strides = [1, 1]} : vector<8x128xf32> to vector<8x64xf32>
    %cst_186 = arith.constant dense<0.000000e+00> : vector<8xf32>
    %428 = vector.multi_reduction <add>, %427, %cst_186 [1] : vector<8x64xf32> to vector<8xf32>
    %429 = vector.shape_cast %428 : vector<8xf32> to vector<8x1xf32>
    %430 = vector.extract_strided_slice %426 {offsets = [0, 64], sizes = [8, 64], strides = [1, 1]} : vector<8x128xf32> to vector<8x64xf32>
    %cst_187 = arith.constant dense<0.000000e+00> : vector<8xf32>
    %431 = vector.multi_reduction <add>, %430, %cst_187 [1] : vector<8x64xf32> to vector<8xf32>
    %432 = vector.shape_cast %431 : vector<8xf32> to vector<8x1xf32>
    %c0_188 = arith.constant 0 : index
    %c0_189 = arith.constant 0 : index
    %433 = vector.load %arg6[%c0_188, %c0_189] : memref<8x8xf32, #tpu.memory_space<vmem>>, vector<8x8xf32>
    %434 = vector.broadcast %c6_i32 : i32 to vector<8x8xi32>
    %435 = arith.cmpi eq, %12, %434 : vector<8x8xi32>
    %cst_190 = arith.constant 0.000000e+00 : f32
    %436 = vector.shape_cast %429 : vector<8x1xf32> to vector<8x1xf32>
    %437 = vector.broadcast %436 : vector<8x1xf32> to vector<8x8xf32>
    %438 = vector.broadcast %cst_190 : f32 to vector<8x8xf32>
    %439 = arith.select %435, %437, %438 : vector<8x8xi1>, vector<8x8xf32>
    %440 = arith.addf %433, %439 : vector<8x8xf32>
    %c7_i32_191 = arith.constant 7 : i32
    %441 = arith.subi %c7_i32_191, %c6_i32 : i32
    %442 = vector.broadcast %441 : i32 to vector<8x8xi32>
    %443 = arith.cmpi eq, %12, %442 : vector<8x8xi32>
    %cst_192 = arith.constant 0.000000e+00 : f32
    %444 = vector.shape_cast %432 : vector<8x1xf32> to vector<8x1xf32>
    %445 = vector.broadcast %444 : vector<8x1xf32> to vector<8x8xf32>
    %446 = vector.broadcast %cst_192 : f32 to vector<8x8xf32>
    %447 = arith.select %443, %445, %446 : vector<8x8xi1>, vector<8x8xf32>
    %448 = arith.addf %440, %447 : vector<8x8xf32>
    %c0_193 = arith.constant 0 : index
    %c0_194 = arith.constant 0 : index
    %449 = vector.load %arg6[%c0_193, %c0_194] : memref<8x8xf32, #tpu.memory_space<vmem>>, vector<8x8xf32>
    tpu.vector_store %arg6[%c0_193, %c0_194], %448 {strides = array<i32>} : memref<8x8xf32, #tpu.memory_space<vmem>>, vector<8x8xf32>,
    %c7_i32_195 = arith.constant 7 : i32
    %450 = arith.index_cast %c7_i32_195 : i32 to index
    %c0_196 = arith.constant 0 : index
    %c0_197 = arith.constant 0 : index
    %451 = vector.load %arg1[%450, %c0_196, %c0_197] : memref<8x8x1xf32, #tpu.memory_space<vmem>>, vector<1x8x1xf32>
    %452 = vector.shape_cast %451 : vector<1x8x1xf32> to vector<8x1xf32>
    %c7_i32_198 = arith.constant 7 : i32
    %453 = arith.subi %c7_i32_198, %c7_i32_195 : i32
    %454 = arith.index_cast %453 : i32 to index
    %c0_199 = arith.constant 0 : index
    %c0_200 = arith.constant 0 : index
    %455 = vector.load %arg1[%454, %c0_199, %c0_200] : memref<8x8x1xf32, #tpu.memory_space<vmem>>, vector<1x8x1xf32>
    %456 = vector.shape_cast %455 : vector<1x8x1xf32> to vector<8x1xf32>
    %457 = vector.broadcast %452 : vector<8x1xf32> to vector<8x512xf32>
    %458 = vector.broadcast %4 : vector<1x512xf32> to vector<8x512xf32>
    %459 = arith.mulf %457, %458 : vector<8x512xf32>
    %460 = vector.broadcast %456 : vector<8x1xf32> to vector<8x512xf32>
    %461 = vector.broadcast %5 : vector<1x512xf32> to vector<8x512xf32>
    %462 = arith.mulf %460, %461 : vector<8x512xf32>
    %463 = arith.addf %459, %462 : vector<8x512xf32>
    %464 = arith.addf %463, %8 : vector<8x512xf32>
    %c0_201 = arith.constant 0 : index
    %c0_202 = arith.constant 0 : index
    %465 = vector.load %arg7[%c0_201, %c0_202] : memref<8x128xf32, #tpu.memory_space<vmem>>, vector<8x128xf32>
    %c0_203 = arith.constant 0 : index
    %c0_204 = arith.constant 0 : index
    %466 = vector.load %arg2[%c0_203, %c0_204] : memref<128x512xf32, #tpu.memory_space<vmem>>, vector<128x512xf32>
    %cst_205 = arith.constant dense<0.000000e+00> : vector<8x512xf32>
    %467 = tpu.matmul %465, %466, %cst_205 {dimension_numbers = #tpu.dot_dimension_numbers<[1], [0], [0], [1], [0, 0, 1, 1], [], []>} : vector<8x128xf32>, vector<128x512xf32>, vector<8x512xf32> -> vector<8x512xf32>
    %468 = arith.addf %464, %467 : vector<8x512xf32>
    %469 = vector.extract_strided_slice %468 {offsets = [0, 0], sizes = [8, 384], strides = [1, 1]} : vector<8x512xf32> to vector<8x384xf32>
    %470 = arith.negf %469 : vector<8x384xf32>
    %471 = math.exp %470 : vector<8x384xf32>
    %cst_206 = arith.constant 1.000000e+00 : f32
    %472 = vector.broadcast %cst_206 : f32 to vector<8x384xf32>
    %473 = arith.addf %472, %471 : vector<8x384xf32>
    %474 = arith.divf %472, %473 : vector<8x384xf32>
    %475 = vector.extract_strided_slice %468 {offsets = [0, 384], sizes = [8, 128], strides = [1, 1]} : vector<8x512xf32> to vector<8x128xf32>
    %476 = math.tanh %475 : vector<8x128xf32>
    %477 = vector.extract_strided_slice %474 {offsets = [0, 0], sizes = [8, 128], strides = [1, 1]} : vector<8x384xf32> to vector<8x128xf32>
    %478 = vector.extract_strided_slice %474 {offsets = [0, 128], sizes = [8, 128], strides = [1, 1]} : vector<8x384xf32> to vector<8x128xf32>
    %479 = vector.extract_strided_slice %474 {offsets = [0, 256], sizes = [8, 128], strides = [1, 1]} : vector<8x384xf32> to vector<8x128xf32>
    %c0_207 = arith.constant 0 : index
    %c0_208 = arith.constant 0 : index
    %480 = vector.load %arg8[%c0_207, %c0_208] : memref<8x128xf32, #tpu.memory_space<vmem>>, vector<8x128xf32>
    %481 = arith.mulf %478, %480 : vector<8x128xf32>
    %482 = arith.mulf %477, %476 : vector<8x128xf32>
    %483 = arith.addf %481, %482 : vector<8x128xf32>
    %484 = math.tanh %483 : vector<8x128xf32>
    %485 = arith.mulf %479, %484 : vector<8x128xf32>
    %c0_209 = arith.constant 0 : index
    %c0_210 = arith.constant 0 : index
    %486 = vector.load %arg7[%c0_209, %c0_210] : memref<8x128xf32, #tpu.memory_space<vmem>>, vector<8x128xf32>
    tpu.vector_store %arg7[%c0_209, %c0_210], %485 {strides = array<i32>} : memref<8x128xf32, #tpu.memory_space<vmem>>, vector<8x128xf32>,
    %c0_211 = arith.constant 0 : index
    %c0_212 = arith.constant 0 : index
    %487 = vector.load %arg8[%c0_211, %c0_212] : memref<8x128xf32, #tpu.memory_space<vmem>>, vector<8x128xf32>
    tpu.vector_store %arg8[%c0_211, %c0_212], %483 {strides = array<i32>} : memref<8x128xf32, #tpu.memory_space<vmem>>, vector<8x128xf32>,
    %488 = arith.mulf %485, %11 : vector<8x128xf32>
    %489 = vector.extract_strided_slice %488 {offsets = [0, 0], sizes = [8, 64], strides = [1, 1]} : vector<8x128xf32> to vector<8x64xf32>
    %cst_213 = arith.constant dense<0.000000e+00> : vector<8xf32>
    %490 = vector.multi_reduction <add>, %489, %cst_213 [1] : vector<8x64xf32> to vector<8xf32>
    %491 = vector.shape_cast %490 : vector<8xf32> to vector<8x1xf32>
    %492 = vector.extract_strided_slice %488 {offsets = [0, 64], sizes = [8, 64], strides = [1, 1]} : vector<8x128xf32> to vector<8x64xf32>
    %cst_214 = arith.constant dense<0.000000e+00> : vector<8xf32>
    %493 = vector.multi_reduction <add>, %492, %cst_214 [1] : vector<8x64xf32> to vector<8xf32>
    %494 = vector.shape_cast %493 : vector<8xf32> to vector<8x1xf32>
    %c0_215 = arith.constant 0 : index
    %c0_216 = arith.constant 0 : index
    %495 = vector.load %arg6[%c0_215, %c0_216] : memref<8x8xf32, #tpu.memory_space<vmem>>, vector<8x8xf32>
    %496 = vector.broadcast %c7_i32_195 : i32 to vector<8x8xi32>
    %497 = arith.cmpi eq, %12, %496 : vector<8x8xi32>
    %cst_217 = arith.constant 0.000000e+00 : f32
    %498 = vector.shape_cast %491 : vector<8x1xf32> to vector<8x1xf32>
    %499 = vector.broadcast %498 : vector<8x1xf32> to vector<8x8xf32>
    %500 = vector.broadcast %cst_217 : f32 to vector<8x8xf32>
    %501 = arith.select %497, %499, %500 : vector<8x8xi1>, vector<8x8xf32>
    %502 = arith.addf %495, %501 : vector<8x8xf32>
    %c7_i32_218 = arith.constant 7 : i32
    %503 = arith.subi %c7_i32_218, %c7_i32_195 : i32
    %504 = vector.broadcast %503 : i32 to vector<8x8xi32>
    %505 = arith.cmpi eq, %12, %504 : vector<8x8xi32>
    %cst_219 = arith.constant 0.000000e+00 : f32
    %506 = vector.shape_cast %494 : vector<8x1xf32> to vector<8x1xf32>
    %507 = vector.broadcast %506 : vector<8x1xf32> to vector<8x8xf32>
    %508 = vector.broadcast %cst_219 : f32 to vector<8x8xf32>
    %509 = arith.select %505, %507, %508 : vector<8x8xi1>, vector<8x8xf32>
    %510 = arith.addf %502, %509 : vector<8x8xf32>
    %c0_220 = arith.constant 0 : index
    %c0_221 = arith.constant 0 : index
    %511 = vector.load %arg6[%c0_220, %c0_221] : memref<8x8xf32, #tpu.memory_space<vmem>>, vector<8x8xf32>
    tpu.vector_store %arg6[%c0_220, %c0_221], %510 {strides = array<i32>} : memref<8x8xf32, #tpu.memory_space<vmem>>, vector<8x8xf32>,
    %c8_i32 = arith.constant 8 : i32
    return
  }
  func.func @transform_0(%arg0: i32) -> (i32, i32, i32) {
    %c0_i32 = arith.constant 0 : i32
    %c0_i32_0 = arith.constant 0 : i32
    %c0_i32_1 = arith.constant 0 : i32
    return %c0_i32, %arg0, %c0_i32_0 : i32, i32, i32
  }
  func.func @transform_1(%arg0: i32) -> (i32, i32) {
    %c0_i32 = arith.constant 0 : i32
    %c0_i32_0 = arith.constant 0 : i32
    %c0_i32_1 = arith.constant 0 : i32
    return %c0_i32, %c0_i32_0 : i32, i32
  }
  func.func @transform_2(%arg0: i32) -> (i32, i32) {
    %c0_i32 = arith.constant 0 : i32
    %c0_i32_0 = arith.constant 0 : i32
    %c0_i32_1 = arith.constant 0 : i32
    return %c0_i32, %c0_i32_0 : i32, i32
  }
  func.func @transform_3(%arg0: i32) -> (i32, i32) {
    %c0_i32 = arith.constant 0 : i32
    %c0_i32_0 = arith.constant 0 : i32
    %c0_i32_1 = arith.constant 0 : i32
    return %c0_i32, %c0_i32_0 : i32, i32
  }
  func.func @transform_4(%arg0: i32) -> (i32, i32) {
    %c0_i32 = arith.constant 0 : i32
    %c0_i32_0 = arith.constant 0 : i32
    %c0_i32_1 = arith.constant 0 : i32
    return %c0_i32, %c0_i32_0 : i32, i32
  }
  func.func @transform_5(%arg0: i32) -> (i32, i32) {
    %c0_i32 = arith.constant 0 : i32
    %c0_i32_0 = arith.constant 0 : i32
    return %arg0, %c0_i32 : i32, i32
  }
}

</mosaic_0001>

<llo_original>
// kernel: tpu_custom_call.1
$region0: #{tpu_custom_call.1}
  #allocation0 [shape = 'u32[]', space=smem, size = 0x4, offset = 0x4, fixed_abs, tag = 'smem constant byte address 0x4 - core index']
  #allocation1 [shape = 'u32[144,128]{1,0:T(1,128)}', space=vmem, size = 0x12000, scoped, tag = 'internal scratch']
  #allocation2 [shape = 'f32[8,128]{1,0:T(8,128)}', space=vmem, size = 0x1000, scoped, tag = 'scratch operand']
  #allocation3 [shape = 'f32[8,128]{1,0:T(8,128)}', space=vmem, size = 0x1000, scoped, tag = 'scratch operand']
  #allocation4 [shape = 'f32[1,1]{1,0:T(1,128)S(6)}', space=smem, size = 0x200, scoped, tag = 'scoped memory for tpu_custom_call.1']
  %s0 = inlined_call_operand.vmem [shape: f32[8,8,1], index: 0, kind: input, shape index: {}]
  %s1 = inlined_call_operand.hbm [shape: f32[128,512], index: 1, kind: input, shape index: {}]
  %s2 = inlined_call_operand.vmem [shape: f32[8,512], index: 2, kind: input, shape index: {}]
  %s3 = inlined_call_operand.vmem [shape: f32[1,128], index: 3, kind: input, shape index: {}]
  %s4 = inlined_call_operand.<no memory space> [shape: f32[1,1], index: 4, kind: input, shape index: {}]
  %s5 = inlined_call_operand.hbm [shape: f32[8,8], index: 5, kind: output, shape index: {}]
  %s6 = sld [smem:[#allocation0]]
  $region34: #{tpu_custom_call.1} parent=0
    _
  %s8 = ssub.s32 1, %s6
  %s9 = scalar_select 0, %s8, %s6
  %10 = sst [smem:[#allocation4]] %s4
  $region1: #{tpu_custom_call.1} parent=0
    #allocation5 [shape = 'u8[262144]{0}', space=vmem, size = 0x40000, scoped, tag = 'input window, operand 1, single buffered']
    #allocation6 [shape = 's32[1]{0}', space=sflag, size = 0x4, scoped, tag = 'scoped memory for tpu_custom_call.1']
    #allocation7 [shape = 's32[1]{0}', space=sflag, size = 0x4, scoped, tag = 'scoped memory for tpu_custom_call.1']
    #allocation8 [shape = 'u8[4096]{0}', space=vmem, size = 0x1000, scoped, tag = 'output window, operand 0, single buffered']
    %11 = vsyncpa [#allocation6], 0
    %12 = vsyncpa [#allocation7], 0
    // Predicated region
    $region2: #{tpu_custom_call.1} parent=1 // pred_check
      _
    $region3: #{tpu_custom_call.1} parent=1 // pred_check_branch
      %14 = sbr.rel (0) target = $region5
    $region4: #{tpu_custom_call.1} parent=1 // pred_region
      _
    $region5: #{tpu_custom_call.1} parent=1 // pred_fallthru
      _
    // Predicated region
    $region6: #{tpu_custom_call.1} parent=1 // pred_check
      _
    $region7: #{tpu_custom_call.1} parent=1 // pred_check_branch
      %16 = sbr.rel (0) target = $region9
    $region8: #{tpu_custom_call.1} parent=1 // pred_region
      %s18 = ssub.s32 8192, 8192
      %19 = vsyncadd [#allocation6], %s18
      %s20 = sshll.u32 [#allocation5], 4
      %s21 = int_to_ptr.vmem [resolvable:$true] %s20
      %26 = dma.hbm_to_vmem [thread:$0]  %s1, 8192, %s21, [#allocation6], 512, 512, 32
    $region9: #{tpu_custom_call.1} parent=1 // pred_fallthru
      _
    // Predicated region
    $region10: #{tpu_custom_call.1} parent=1 // pred_check
      _
    $region11: #{tpu_custom_call.1} parent=1 // pred_check_branch
      %28 = sbr.rel (0) target = $region13
    $region12: #{tpu_custom_call.1} parent=1 // pred_region
      _
    $region13: #{tpu_custom_call.1} parent=1 // pred_fallthru
      _
    // Predicated region
    $region14: #{tpu_custom_call.1} parent=1 // pred_check
      _
    $region15: #{tpu_custom_call.1} parent=1 // pred_check_branch
      %30 = sbr.rel (0) target = $region17
    $region16: #{tpu_custom_call.1} parent=1 // pred_region
      _
    $region17: #{tpu_custom_call.1} parent=1 // pred_fallthru
      _
    // Predicated region
    $region18: #{tpu_custom_call.1} parent=1 // pred_check
      _
    $region19: #{tpu_custom_call.1} parent=1 // pred_check_branch
      %32 = sbr.rel (0) target = $region21
    $region20: #{tpu_custom_call.1} parent=1 // pred_region
      _
    $region21: #{tpu_custom_call.1} parent=1 // pred_fallthru
      _
    // Predicated region
    $region22: #{tpu_custom_call.1} parent=1 // pred_check
      _
    $region23: #{tpu_custom_call.1} parent=1 // pred_check_branch
      %34 = sbr.rel (0) target = $region25
    $region24: #{tpu_custom_call.1} parent=1 // pred_region
      %35 = dma.done [#allocation6], 8192
    $region25: #{tpu_custom_call.1} parent=1 // pred_fallthru
      _
    %36 = vst [vmem:[#allocation2] sm:$0xff] 0.0
    %37 = vst [vmem:[#allocation3] sm:$0xff] 0.0
    %v38 = vld [vmem:[%s2] ss:$8 sm:$0xf]
    %s39 = scalar_lea.vmem %s2, 1
    %v40 = vld [vmem:[%s39] ss:$8 sm:$0xf]
    %s41 = scalar_lea.vmem %s2, 2
    %v42 = vld [vmem:[%s41] ss:$8 sm:$0xf]
    %v44 = vlaneseq
    %v45 = vshrl.u32 %v44, 7
    %v46 = vsub.s32 0, %v45
    %v47 = vrot.slane %v42, %v46
    %v48 = vlaneseq
    %v49 = vshrl.u32 %v48, 7
    %v50 = vsub.s32 1, %v49
    %v51 = vrot.slane %v42, %v50
    %v52 = vlaneseq
    %v53 = vshrl.u32 %v52, 7
    %v54 = vsub.s32 2, %v53
    %v55 = vrot.slane %v42, %v54
    %v56 = vlaneseq
    %v57 = vshrl.u32 %v56, 7
    %v58 = vsub.s32 3, %v57
    %v59 = vrot.slane %v42, %v58
    %v64 = vld [vmem:[%s3] sm:$0x1]
    %v66 = vlaneseq
    %v67 = vshrl.u32 %v66, 7
    %v68 = vsub.s32 0, %v67
    %v69 = vrot.slane %v64, %v68
    %v71 = vlaneseq
    %v72 = vand.u32 %v71, 127
    %s73 = sld [smem:[#allocation4]]
    %v74 = vstv %s73
    %vm75 = vcmask 64512
    %76 = vst.msk [vmem:[#allocation8] sm:$0xff] %vm75, %v74
    %v77 = vld [vmem:[%s0] sm:$0xff]
    %s78 = scalar_lea.vmem %s0, 56
    %v79 = vld [vmem:[%s78] sm:$0xff]
    %81 = vset.pattern.permute.xlu0 0
    %82 = vperm.xlu0 %81, %v77
    %v83 = vpop.permute.xlu0 %82
    %v86 = vlaneseq
    %v87 = vshrl.u32 %v86, 7
    %v88 = vsub.s32 0, %v87
    %v89 = vrot.slane %v38, %v88
    %v90 = vlaneseq
    %v91 = vshrl.u32 %v90, 7
    %v92 = vsub.s32 1, %v91
    %v93 = vrot.slane %v38, %v92
    %v94 = vlaneseq
    %v95 = vshrl.u32 %v94, 7
    %v96 = vsub.s32 2, %v95
    %v97 = vrot.slane %v38, %v96
    %v98 = vlaneseq
    %v99 = vshrl.u32 %v98, 7
    %v100 = vsub.s32 3, %v99
    %v101 = vrot.slane %v38, %v100
    %v106 = vmul.f32 %v83, %v89
    %v107 = vmul.f32 %v83, %v93
    %v108 = vmul.f32 %v83, %v97
    %v109 = vmul.f32 %v83, %v101
    %111 = vset.pattern.permute.xlu0 0
    %112 = vperm.xlu0 %111, %v79
    %v113 = vpop.permute.xlu0 %112
    %v116 = vlaneseq
    %v117 = vshrl.u32 %v116, 7
    %v118 = vsub.s32 0, %v117
    %v119 = vrot.slane %v40, %v118
    %v120 = vlaneseq
    %v121 = vshrl.u32 %v120, 7
    %v122 = vsub.s32 1, %v121
    %v123 = vrot.slane %v40, %v122
    %v124 = vlaneseq
    %v125 = vshrl.u32 %v124, 7
    %v126 = vsub.s32 2, %v125
    %v127 = vrot.slane %v40, %v126
    %v128 = vlaneseq
    %v129 = vshrl.u32 %v128, 7
    %v130 = vsub.s32 3, %v129
    %v131 = vrot.slane %v40, %v130
    %v136 = vmul.f32 %v113, %v119
    %v137 = vmul.f32 %v113, %v123
    %v138 = vmul.f32 %v113, %v127
    %v139 = vmul.f32 %v113, %v131
    %v140 = vadd.f32 %v106, %v136
    %v141 = vadd.f32 %v107, %v137
    %v142 = vadd.f32 %v108, %v138
    %v143 = vadd.f32 %v109, %v139
    %v144 = vadd.f32 %v140, %v47
    %v145 = vadd.f32 %v141, %v51
    %v146 = vadd.f32 %v142, %v55
    %v147 = vadd.f32 %v143, %v59
    %v148 = vld [vmem:[#allocation2] sm:$0xff]
    %v149 = vld [vmem:[#allocation5] sm:$0xff]
    %v150 = vld [vmem:[#allocation5 + $0x8] sm:$0xff]
    %v151 = vld [vmem:[#allocation5 + $0x10] sm:$0xff]
    %v152 = vld [vmem:[#allocation5 + $0x18] sm:$0xff]
    %v153 = vld [vmem:[#allocation5 + $0x20] sm:$0xff]
    %v154 = vld [vmem:[#allocation5 + $0x28] sm:$0xff]
    %v155 = vld [vmem:[#allocation5 + $0x30] sm:$0xff]
    %v156 = vld [vmem:[#allocation5 + $0x38] sm:$0xff]
    %v157 = vld [vmem:[#allocation5 + $0x40] sm:$0xff]
    %v158 = vld [vmem:[#allocation5 + $0x48] sm:$0xff]
    %v159 = vld [vmem:[#allocation5 + $0x50] sm:$0xff]
    %v160 = vld [vmem:[#allocation5 + $0x58] sm:$0xff]
    %v161 = vld [vmem:[#allocation5 + $0x60] sm:$0xff]
    %v162 = vld [vmem:[#allocation5 + $0x68] sm:$0xff]
    %v163 = vld [vmem:[#allocation5 + $0x70] sm:$0xff]
    %v164 = vld [vmem:[#allocation5 + $0x78] sm:$0xff]
    %v165 = vld [vmem:[#allocation5 + $0x80] sm:$0xff]
    %v166 = vld [vmem:[#allocation5 + $0x88] sm:$0xff]
    %v167 = vld [vmem:[#allocation5 + $0x90] sm:$0xff]
    %v168 = vld [vmem:[#allocation5 + $0x98] sm:$0xff]
    %v169 = vld [vmem:[#allocation5 + $0xa0] sm:$0xff]
    %v170 = vld [vmem:[#allocation5 + $0xa8] sm:$0xff]
    %v171 = vld [vmem:[#allocation5 + $0xb0] sm:$0xff]
    %v172 = vld [vmem:[#allocation5 + $0xb8] sm:$0xff]
    %v173 = vld [vmem:[#allocation5 + $0xc0] sm:$0xff]
    %v174 = vld [vmem:[#allocation5 + $0xc8] sm:$0xff]
    %v175 = vld [vmem:[#allocation5 + $0xd0] sm:$0xff]
    %v176 = vld [vmem:[#allocation5 + $0xd8] sm:$0xff]
    %v177 = vld [vmem:[#allocation5 + $0xe0] sm:$0xff]
    %v178 = vld [vmem:[#allocation5 + $0xe8] sm:$0xff]
    %v179 = vld [vmem:[#allocation5 + $0xf0] sm:$0xff]
    %v180 = vld [vmem:[#allocation5 + $0xf8] sm:$0xff]
    %v181 = vld [vmem:[#allocation5 + $0x100] sm:$0xff]
    %v182 = vld [vmem:[#allocation5 + $0x108] sm:$0xff]
    %v183 = vld [vmem:[#allocation5 + $0x110] sm:$0xff]
    %v184 = vld [vmem:[#allocation5 + $0x118] sm:$0xff]
    %v185 = vld [vmem:[#allocation5 + $0x120] sm:$0xff]
    %v186 = vld [vmem:[#allocation5 + $0x128] sm:$0xff]
    %v187 = vld [vmem:[#allocation5 + $0x130] sm:$0xff]
    %v188 = vld [vmem:[#allocation5 + $0x138] sm:$0xff]
    %v189 = vld [vmem:[#allocation5 + $0x140] sm:$0xff]
    %v190 = vld [vmem:[#allocation5 + $0x148] sm:$0xff]
    %v191 = vld [vmem:[#allocation5 + $0x150] sm:$0xff]
    %v192 = vld [vmem:[#allocation5 + $0x158] sm:$0xff]
    %v193 = vld [vmem:[#allocation5 + $0x160] sm:$0xff]
    %v194 = vld [vmem:[#allocation5 + $0x168] sm:$0xff]
    %v195 = vld [vmem:[#allocation5 + $0x170] sm:$0xff]
    %v196 = vld [vmem:[#allocation5 + $0x178] sm:$0xff]
    %v197 = vld [vmem:[#allocation5 + $0x180] sm:$0xff]
    %v198 = vld [vmem:[#allocation5 + $0x188] sm:$0xff]
    %v199 = vld [vmem:[#allocation5 + $0x190] sm:$0xff]
    %v200 = vld [vmem:[#allocation5 + $0x198] sm:$0xff]
    %v201 = vld [vmem:[#allocation5 + $0x1a0] sm:$0xff]
    %v202 = vld [vmem:[#allocation5 + $0x1a8] sm:$0xff]
    %v203 = vld [vmem:[#allocation5 + $0x1b0] sm:$0xff]
    %v204 = vld [vmem:[#allocation5 + $0x1b8] sm:$0xff]
    %v205 = vld [vmem:[#allocation5 + $0x1c0] sm:$0xff]
    %v206 = vld [vmem:[#allocation5 + $0x1c8] sm:$0xff]
    %v207 = vld [vmem:[#allocation5 + $0x1d0] sm:$0xff]
    %v208 = vld [vmem:[#allocation5 + $0x1d8] sm:$0xff]
    %v209 = vld [vmem:[#allocation5 + $0x1e0] sm:$0xff]
    %v210 = vld [vmem:[#allocation5 + $0x1e8] sm:$0xff]
    %v211 = vld [vmem:[#allocation5 + $0x1f0] sm:$0xff]
    %v212 = vld [vmem:[#allocation5 + $0x1f8] sm:$0xff]
    %213 = vmatprep.subr.mxu0 %v150
    %214 = vmatpush1.msra.mxu0 %v149
    %215 = vmatprep.subr.mxu0 %v154
    %216 = vmatpush1.msra.mxu0 %v153
    %217 = vmatprep.subr.mxu0 %v158
    %218 = vmatpush1.msra.mxu0 %v157
    %219 = vmatprep.subr.mxu0 %v162
    %220 = vmatpush1.msra.mxu0 %v161
    %221 = vmatprep.subr.mxu0 %v166
    %222 = vmatpush1.msra.mxu0 %v165
    %223 = vmatprep.subr.mxu0 %v170
    %224 = vmatpush1.msra.mxu0 %v169
    %225 = vmatprep.subr.mxu0 %v174
    %226 = vmatpush1.msra.mxu0 %v173
    %227 = vmatprep.subr.mxu0 %v178
    %228 = vmatpush1.msra.mxu0 %v177
    %229 = vmatprep.subr.mxu0 %v182
    %230 = vmatpush1.msra.mxu0 %v181
    %231 = vmatprep.subr.mxu0 %v186
    %232 = vmatpush1.msra.mxu0 %v185
    %233 = vmatprep.subr.mxu0 %v190
    %234 = vmatpush1.msra.mxu0 %v189
    %235 = vmatprep.subr.mxu0 %v194
    %236 = vmatpush1.msra.mxu0 %v193
    %237 = vmatprep.subr.mxu0 %v198
    %238 = vmatpush1.msra.mxu0 %v197
    %239 = vmatprep.subr.mxu0 %v202
    %240 = vmatpush1.msra.mxu0 %v201
    %241 = vmatprep.subr.mxu0 %v206
    %242 = vmatpush1.msra.mxu0 %v205
    %243 = vmatprep.subr.mxu0 %v210
    %244 = vmatpush1.msra.mxu0 %v209
    %245 = vmatprep.subr.mxu0 0.0
    %246 = vmatpush1.msra.mxu0 0.0
    %247 = vmatprep.subr.mxu0 0.0
    %248 = vmatpush1.msra.mxu0 0.0
    %249 = vmatprep.subr.mxu0 0.0
    %250 = vmatpush1.msra.mxu0 0.0
    %251 = vmatprep.subr.mxu0 0.0
    %252 = vmatpush1.msra.mxu0 0.0
    %253 = vmatprep.subr.mxu0 0.0
    %254 = vmatpush1.msra.mxu0 0.0
    %255 = vmatprep.subr.mxu0 0.0
    %256 = vmatpush1.msra.mxu0 0.0
    %257 = vmatprep.subr.mxu0 0.0
    %258 = vmatpush1.msra.mxu0 0.0
    %259 = vmatprep.subr.mxu0 0.0
    %260 = vmatpush1.msra.mxu0 0.0
    %261 = vmatprep.subr.mxu0 0.0
    %262 = vmatpush1.msra.mxu0 0.0
    %263 = vmatprep.subr.mxu0 0.0
    %264 = vmatpush1.msra.mxu0 0.0
    %265 = vmatprep.subr.mxu0 0.0
    %266 = vmatpush1.msra.mxu0 0.0
    %267 = vmatprep.subr.mxu0 0.0
    %268 = vmatpush1.msra.mxu0 0.0
    %269 = vmatprep.subr.mxu0 0.0
    %270 = vmatpush1.msra.mxu0 0.0
    %271 = vmatprep.subr.mxu0 0.0
    %272 = vmatpush1.msra.mxu0 0.0
    %273 = vmatprep.subr.mxu0 0.0
    %274 = vmatpush1.msra.mxu0 0.0
    %275 = vmatprep.subr.mxu0 0.0
    %276 = vmatpush1.msra.mxu0 0.0
    %277 = vmatprep.mubr.f32.mxu0 0.0
    %278 = vmatmul.mubr.f32.gmra.mrb[0].mxu0 %v148
    %v279 = vpop.f32.mrb[0].mxu0
    %v280 = vadd.f32 0.0, %v279
    %v281 = vpop.f32.mrb[0].mxu0
    %v282 = vadd.f32 0.0, %v281
    %283 = vdwg.mxu0
    %284 = vmatprep.subr.mxu0 %v152
    %285 = vmatpush1.msra.mxu0 %v151
    %286 = vmatprep.subr.mxu0 %v156
    %287 = vmatpush1.msra.mxu0 %v155
    %288 = vmatprep.subr.mxu0 %v160
    %289 = vmatpush1.msra.mxu0 %v159
    %290 = vmatprep.subr.mxu0 %v164
    %291 = vmatpush1.msra.mxu0 %v163
    %292 = vmatprep.subr.mxu0 %v168
    %293 = vmatpush1.msra.mxu0 %v167
    %294 = vmatprep.subr.mxu0 %v172
    %295 = vmatpush1.msra.mxu0 %v171
    %296 = vmatprep.subr.mxu0 %v176
    %297 = vmatpush1.msra.mxu0 %v175
    %298 = vmatprep.subr.mxu0 %v180
    %299 = vmatpush1.msra.mxu0 %v179
    %300 = vmatprep.subr.mxu0 %v184
    %301 = vmatpush1.msra.mxu0 %v183
    %302 = vmatprep.subr.mxu0 %v188
    %303 = vmatpush1.msra.mxu0 %v187
    %304 = vmatprep.subr.mxu0 %v192
    %305 = vmatpush1.msra.mxu0 %v191
    %306 = vmatprep.subr.mxu0 %v196
    %307 = vmatpush1.msra.mxu0 %v195
    %308 = vmatprep.subr.mxu0 %v200
    %309 = vmatpush1.msra.mxu0 %v199
    %310 = vmatprep.subr.mxu0 %v204
    %311 = vmatpush1.msra.mxu0 %v203
    %312 = vmatprep.subr.mxu0 %v208
    %313 = vmatpush1.msra.mxu0 %v207
    %314 = vmatprep.subr.mxu0 %v212
    %315 = vmatpush1.msra.mxu0 %v211
    %316 = vmatprep.subr.mxu0 0.0
    %317 = vmatpush1.msra.mxu0 0.0
    %318 = vmatprep.subr.mxu0 0.0
    %319 = vmatpush1.msra.mxu0 0.0
    %320 = vmatprep.subr.mxu0 0.0
    %321 = vmatpush1.msra.mxu0 0.0
    %322 = vmatprep.subr.mxu0 0.0
    %323 = vmatpush1.msra.mxu0 0.0
    %324 = vmatprep.subr.mxu0 0.0
    %325 = vmatpush1.msra.mxu0 0.0
    %326 = vmatprep.subr.mxu0 0.0
    %327 = vmatpush1.msra.mxu0 0.0
    %328 = vmatprep.subr.mxu0 0.0
    %329 = vmatpush1.msra.mxu0 0.0
    %330 = vmatprep.subr.mxu0 0.0
    %331 = vmatpush1.msra.mxu0 0.0
    %332 = vmatprep.subr.mxu0 0.0
    %333 = vmatpush1.msra.mxu0 0.0
    %334 = vmatprep.subr.mxu0 0.0
    %335 = vmatpush1.msra.mxu0 0.0
    %336 = vmatprep.subr.mxu0 0.0
    %337 = vmatpush1.msra.mxu0 0.0
    %338 = vmatprep.subr.mxu0 0.0
    %339 = vmatpush1.msra.mxu0 0.0
    %340 = vmatprep.subr.mxu0 0.0
    %341 = vmatpush1.msra.mxu0 0.0
    %342 = vmatprep.subr.mxu0 0.0
    %343 = vmatpush1.msra.mxu0 0.0
    %344 = vmatprep.subr.mxu0 0.0
    %345 = vmatpush1.msra.mxu0 0.0
    %346 = vmatprep.subr.mxu0 0.0
    %347 = vmatpush1.msra.mxu0 0.0
    %348 = vmatprep.mubr.f32.mxu0 0.0
    %349 = vmatmul.mubr.f32.gmra.mrb[0].mxu0 %v148
    %v350 = vpop.f32.mrb[0].mxu0
    %v351 = vadd.f32 0.0, %v350
    %v352 = vpop.f32.mrb[0].mxu0
    %v353 = vadd.f32 0.0, %v352
    %354 = vdwg.mxu0
    %v355 = vadd.f32 %v144, %v280
    %v356 = vadd.f32 %v145, %v282
    %v357 = vadd.f32 %v146, %v351
    %v358 = vadd.f32 %v147, %v353
    %v359 = vxor.u32 %v355, 2147483648
    %v360 = vxor.u32 %v356, 2147483648
    %v361 = vxor.u32 %v357, 2147483648
    %v362 = vmul.f32 %v359, 1.442695
    %v363 = vpow.pop %v362
    %v364 = vmul.f32 %v360, 1.442695
    %v365 = vpow.pop %v364
    %v366 = vmul.f32 %v361, 1.442695
    %v367 = vpow.pop %v366
    %v368 = vadd.f32 %v363, 1.0
    %v369 = vadd.f32 %v365, 1.0
    %v370 = vadd.f32 %v367, 1.0
    %v371 = vrcp.pop %v368
    %v372 = vmul.f32 1.0, %v371
    %v373 = vrcp.pop %v369
    %v374 = vmul.f32 1.0, %v373
    %v375 = vrcp.pop %v370
    %v376 = vmul.f32 1.0, %v375
    %v377 = vtanh.pop %v358
    %v378 = vld [vmem:[#allocation3] sm:$0xff]
    %v379 = vmul.f32 %v374, %v378
    %v380 = vmul.f32 %v372, %v377
    %v381 = vadd.f32 %v379, %v380
    %v382 = vtanh.pop %v381
    %v383 = vmul.f32 %v376, %v382
    %384 = vst [vmem:[#allocation2] sm:$0xff] %v383
    %385 = vst [vmem:[#allocation3] sm:$0xff] %v381
    %v386 = vmul.f32 %v383, %v69
    %vm387 = vcmask 523264
    %v388 = vsel %vm387, %v386, 0.0
    %389 = vadd.xlane.f32.xlu0 %v388
    %v390 = vpop.xlane.xlu0 %389
    %392 = vrot.lane.b32.xlu0 %v386, 64
    %v393 = vpop.permute.xlu0 %392
    %v395 = vsel %vm387, %v393, 0.0
    %396 = vadd.xlane.f32.xlu0 %v395
    %v397 = vpop.xlane.xlu0 %396
    %v398 = vld [vmem:[#allocation8] sm:$0xff]
    %vm399 = vcmp.eq.s32.totalorder %v72, 0
    %v400 = vsel %vm399, %v390, 0.0
    %v401 = vadd.f32 %v398, %v400
    %vm402 = vcmp.eq.s32.totalorder %v72, 7
    %v403 = vsel %vm402, %v397, 0.0
    %v404 = vadd.f32 %v401, %v403
    %405 = vst.msk [vmem:[#allocation8] sm:$0xff] %vm75, %v404
    %s406 = scalar_lea.vmem %s0, 8
    %v407 = vld [vmem:[%s406] sm:$0xff]
    %s408 = scalar_lea.vmem %s0, 48
    %v409 = vld [vmem:[%s408] sm:$0xff]
    %411 = vset.pattern.permute.xlu0 0
    %412 = vperm.xlu0 %411, %v407
    %v413 = vpop.permute.xlu0 %412
    %v415 = vmul.f32 %v413, %v89
    %v416 = vmul.f32 %v413, %v93
    %v417 = vmul.f32 %v413, %v97
    %v418 = vmul.f32 %v413, %v101
    %420 = vset.pattern.permute.xlu0 0
    %421 = vperm.xlu0 %420, %v409
    %v422 = vpop.permute.xlu0 %421
    %v424 = vmul.f32 %v422, %v119
    %v425 = vmul.f32 %v422, %v123
    %v426 = vmul.f32 %v422, %v127
    %v427 = vmul.f32 %v422, %v131
    %v428 = vadd.f32 %v415, %v424
    %v429 = vadd.f32 %v416, %v425
    %v430 = vadd.f32 %v417, %v426
    %v431 = vadd.f32 %v418, %v427
    %v432 = vadd.f32 %v428, %v47
    %v433 = vadd.f32 %v429, %v51
    %v434 = vadd.f32 %v430, %v55
    %v435 = vadd.f32 %v431, %v59
    %v436 = vld [vmem:[#allocation2] sm:$0xff]
    %v437 = vld [vmem:[#allocation5] sm:$0xff]
    %v438 = vld [vmem:[#allocation5 + $0x8] sm:$0xff]
    %v439 = vld [vmem:[#allocation5 + $0x10] sm:$0xff]
    %v440 = vld [vmem:[#allocation5 + $0x18] sm:$0xff]
    %v441 = vld [vmem:[#allocation5 + $0x20] sm:$0xff]
    %v442 = vld [vmem:[#allocation5 + $0x28] sm:$0xff]
    %v443 = vld [vmem:[#allocation5 + $0x30] sm:$0xff]
    %v444 = vld [vmem:[#allocation5 + $0x38] sm:$0xff]
    %v445 = vld [vmem:[#allocation5 + $0x40] sm:$0xff]
    %v446 = vld [vmem:[#allocation5 + $0x48] sm:$0xff]
    %v447 = vld [vmem:[#allocation5 + $0x50] sm:$0xff]
    %v448 = vld [vmem:[#allocation5 + $0x58] sm:$0xff]
    %v449 = vld [vmem:[#allocation5 + $0x60] sm:$0xff]
    %v450 = vld [vmem:[#allocation5 + $0x68] sm:$0xff]
    %v451 = vld [vmem:[#allocation5 + $0x70] sm:$0xff]
    %v452 = vld [vmem:[#allocation5 + $0x78] sm:$0xff]
    %v453 = vld [vmem:[#allocation5 + $0x80] sm:$0xff]
    %v454 = vld [vmem:[#allocation5 + $0x88] sm:$0xff]
    %v455 = vld [vmem:[#allocation5 + $0x90] sm:$0xff]
    %v456 = vld [vmem:[#allocation5 + $0x98] sm:$0xff]
    %v457 = vld [vmem:[#allocation5 + $0xa0] sm:$0xff]
    %v458 = vld [vmem:[#allocation5 + $0xa8] sm:$0xff]
    %v459 = vld [vmem:[#allocation5 + $0xb0] sm:$0xff]
    %v460 = vld [vmem:[#allocation5 + $0xb8] sm:$0xff]
    %v461 = vld [vmem:[#allocation5 + $0xc0] sm:$0xff]
    %v462 = vld [vmem:[#allocation5 + $0xc8] sm:$0xff]
    %v463 = vld [vmem:[#allocation5 + $0xd0] sm:$0xff]
    %v464 = vld [vmem:[#allocation5 + $0xd8] sm:$0xff]
    %v465 = vld [vmem:[#allocation5 + $0xe0] sm:$0xff]
    %v466 = vld [vmem:[#allocation5 + $0xe8] sm:$0xff]
    %v467 = vld [vmem:[#allocation5 + $0xf0] sm:$0xff]
    %v468 = vld [vmem:[#allocation5 + $0xf8] sm:$0xff]
    %v469 = vld [vmem:[#allocation5 + $0x100] sm:$0xff]
    %v470 = vld [vmem:[#allocation5 + $0x108] sm:$0xff]
    %v471 = vld [vmem:[#allocation5 + $0x110] sm:$0xff]
    %v472 = vld [vmem:[#allocation5 + $0x118] sm:$0xff]
    %v473 = vld [vmem:[#allocation5 + $0x120] sm:$0xff]
    %v474 = vld [vmem:[#allocation5 + $0x128] sm:$0xff]
    %v475 = vld [vmem:[#allocation5 + $0x130] sm:$0xff]
    %v476 = vld [vmem:[#allocation5 + $0x138] sm:$0xff]
    %v477 = vld [vmem:[#allocation5 + $0x140] sm:$0xff]
    %v478 = vld [vmem:[#allocation5 + $0x148] sm:$0xff]
    %v479 = vld [vmem:[#allocation5 + $0x150] sm:$0xff]
    %v480 = vld [vmem:[#allocation5 + $0x158] sm:$0xff]
    %v481 = vld [vmem:[#allocation5 + $0x160] sm:$0xff]
    %v482 = vld [vmem:[#allocation5 + $0x168] sm:$0xff]
    %v483 = vld [vmem:[#allocation5 + $0x170] sm:$0xff]
    %v484 = vld [vmem:[#allocation5 + $0x178] sm:$0xff]
    %v485 = vld [vmem:[#allocation5 + $0x180] sm:$0xff]
    %v486 = vld [vmem:[#allocation5 + $0x188] sm:$0xff]
    %v487 = vld [vmem:[#allocation5 + $0x190] sm:$0xff]
    %v488 = vld [vmem:[#allocation5 + $0x198] sm:$0xff]
    %v489 = vld [vmem:[#allocation5 + $0x1a0] sm:$0xff]
    %v490 = vld [vmem:[#allocation5 + $0x1a8] sm:$0xff]
    %v491 = vld [vmem:[#allocation5 + $0x1b0] sm:$0xff]
    %v492 = vld [vmem:[#allocation5 + $0x1b8] sm:$0xff]
    %v493 = vld [vmem:[#allocation5 + $0x1c0] sm:$0xff]
    %v494 = vld [vmem:[#allocation5 + $0x1c8] sm:$0xff]
    %v495 = vld [vmem:[#allocation5 + $0x1d0] sm:$0xff]
    %v496 = vld [vmem:[#allocation5 + $0x1d8] sm:$0xff]
    %v497 = vld [vmem:[#allocation5 + $0x1e0] sm:$0xff]
    %v498 = vld [vmem:[#allocation5 + $0x1e8] sm:$0xff]
    %v499 = vld [vmem:[#allocation5 + $0x1f0] sm:$0xff]
    %v500 = vld [vmem:[#allocation5 + $0x1f8] sm:$0xff]
    %501 = vmatprep.subr.mxu0 %v438
    %502 = vmatpush1.msra.mxu0 %v437
    %503 = vmatprep.subr.mxu0 %v442
    %504 = vmatpush1.msra.mxu0 %v441
    %505 = vmatprep.subr.mxu0 %v446
    %506 = vmatpush1.msra.mxu0 %v445
    %507 = vmatprep.subr.mxu0 %v450
    %508 = vmatpush1.msra.mxu0 %v449
    %509 = vmatprep.subr.mxu0 %v454
    %510 = vmatpush1.msra.mxu0 %v453
    %511 = vmatprep.subr.mxu0 %v458
    %512 = vmatpush1.msra.mxu0 %v457
    %513 = vmatprep.subr.mxu0 %v462
    %514 = vmatpush1.msra.mxu0 %v461
    %515 = vmatprep.subr.mxu0 %v466
    %516 = vmatpush1.msra.mxu0 %v465
    %517 = vmatprep.subr.mxu0 %v470
    %518 = vmatpush1.msra.mxu0 %v469
    %519 = vmatprep.subr.mxu0 %v474
    %520 = vmatpush1.msra.mxu0 %v473
    %521 = vmatprep.subr.mxu0 %v478
    %522 = vmatpush1.msra.mxu0 %v477
    %523 = vmatprep.subr.mxu0 %v482
    %524 = vmatpush1.msra.mxu0 %v481
    %525 = vmatprep.subr.mxu0 %v486
    %526 = vmatpush1.msra.mxu0 %v485
    %527 = vmatprep.subr.mxu0 %v490
    %528 = vmatpush1.msra.mxu0 %v489
    %529 = vmatprep.subr.mxu0 %v494
    %530 = vmatpush1.msra.mxu0 %v493
    %531 = vmatprep.subr.mxu0 %v498
    %532 = vmatpush1.msra.mxu0 %v497
    %533 = vmatprep.subr.mxu0 0.0
    %534 = vmatpush1.msra.mxu0 0.0
    %535 = vmatprep.subr.mxu0 0.0
    %536 = vmatpush1.msra.mxu0 0.0
    %537 = vmatprep.subr.mxu0 0.0
    %538 = vmatpush1.msra.mxu0 0.0
    %539 = vmatprep.subr.mxu0 0.0
    %540 = vmatpush1.msra.mxu0 0.0
    %541 = vmatprep.subr.mxu0 0.0
    %542 = vmatpush1.msra.mxu0 0.0
    %543 = vmatprep.subr.mxu0 0.0
    %544 = vmatpush1.msra.mxu0 0.0
    %545 = vmatprep.subr.mxu0 0.0
    %546 = vmatpush1.msra.mxu0 0.0
    %547 = vmatprep.subr.mxu0 0.0
    %548 = vmatpush1.msra.mxu0 0.0
    %549 = vmatprep.subr.mxu0 0.0
    %550 = vmatpush1.msra.mxu0 0.0
    %551 = vmatprep.subr.mxu0 0.0
    %552 = vmatpush1.msra.mxu0 0.0
    %553 = vmatprep.subr.mxu0 0.0
    %554 = vmatpush1.msra.mxu0 0.0
    %555 = vmatprep.subr.mxu0 0.0
    %556 = vmatpush1.msra.mxu0 0.0
    %557 = vmatprep.subr.mxu0 0.0
    %558 = vmatpush1.msra.mxu0 0.0
    %559 = vmatprep.subr.mxu0 0.0
    %560 = vmatpush1.msra.mxu0 0.0
    %561 = vmatprep.subr.mxu0 0.0
    %562 = vmatpush1.msra.mxu0 0.0
    %563 = vmatprep.subr.mxu0 0.0
    %564 = vmatpush1.msra.mxu0 0.0
    %565 = vmatprep.mubr.f32.mxu0 0.0
    %566 = vmatmul.mubr.f32.gmra.mrb[0].mxu0 %v436
    %v567 = vpop.f32.mrb[0].mxu0
    %v568 = vadd.f32 0.0, %v567
    %v569 = vpop.f32.mrb[0].mxu0
    %v570 = vadd.f32 0.0, %v569
    %571 = vdwg.mxu0
    %572 = vmatprep.subr.mxu0 %v440
    %573 = vmatpush1.msra.mxu0 %v439
    %574 = vmatprep.subr.mxu0 %v444
    %575 = vmatpush1.msra.mxu0 %v443
    %576 = vmatprep.subr.mxu0 %v448
    %577 = vmatpush1.msra.mxu0 %v447
    %578 = vmatprep.subr.mxu0 %v452
    %579 = vmatpush1.msra.mxu0 %v451
    %580 = vmatprep.subr.mxu0 %v456
    %581 = vmatpush1.msra.mxu0 %v455
    %582 = vmatprep.subr.mxu0 %v460
    %583 = vmatpush1.msra.mxu0 %v459
    %584 = vmatprep.subr.mxu0 %v464
    %585 = vmatpush1.msra.mxu0 %v463
    %586 = vmatprep.subr.mxu0 %v468
    %587 = vmatpush1.msra.mxu0 %v467
    %588 = vmatprep.subr.mxu0 %v472
    %589 = vmatpush1.msra.mxu0 %v471
    %590 = vmatprep.subr.mxu0 %v476
    %591 = vmatpush1.msra.mxu0 %v475
    %592 = vmatprep.subr.mxu0 %v480
    %593 = vmatpush1.msra.mxu0 %v479
    %594 = vmatprep.subr.mxu0 %v484
    %595 = vmatpush1.msra.mxu0 %v483
    %596 = vmatprep.subr.mxu0 %v488
    %597 = vmatpush1.msra.mxu0 %v487
    %598 = vmatprep.subr.mxu0 %v492
    %599 = vmatpush1.msra.mxu0 %v491
    %600 = vmatprep.subr.mxu0 %v496
    %601 = vmatpush1.msra.mxu0 %v495
    %602 = vmatprep.subr.mxu0 %v500
    %603 = vmatpush1.msra.mxu0 %v499
    %604 = vmatprep.subr.mxu0 0.0
    %605 = vmatpush1.msra.mxu0 0.0
    %606 = vmatprep.subr.mxu0 0.0
    %607 = vmatpush1.msra.mxu0 0.0
    %608 = vmatprep.subr.mxu0 0.0
    %609 = vmatpush1.msra.mxu0 0.0
    %610 = vmatprep.subr.mxu0 0.0
    %611 = vmatpush1.msra.mxu0 0.0
    %612 = vmatprep.subr.mxu0 0.0
    %613 = vmatpush1.msra.mxu0 0.0
    %614 = vmatprep.subr.mxu0 0.0
    %615 = vmatpush1.msra.mxu0 0.0
    %616 = vmatprep.subr.mxu0 0.0
    %617 = vmatpush1.msra.mxu0 0.0
    %618 = vmatprep.subr.mxu0 0.0
    %619 = vmatpush1.msra.mxu0 0.0
    %620 = vmatprep.subr.mxu0 0.0
    %621 = vmatpush1.msra.mxu0 0.0
    %622 = vmatprep.subr.mxu0 0.0
    %623 = vmatpush1.msra.mxu0 0.0
    %624 = vmatprep.subr.mxu0 0.0
    %625 = vmatpush1.msra.mxu0 0.0
    %626 = vmatprep.subr.mxu0 0.0
    %627 = vmatpush1.msra.mxu0 0.0
    %628 = vmatprep.subr.mxu0 0.0
    %629 = vmatpush1.msra.mxu0 0.0
    %630 = vmatprep.subr.mxu0 0.0
    %631 = vmatpush1.msra.mxu0 0.0
    %632 = vmatprep.subr.mxu0 0.0
    %633 = vmatpush1.msra.mxu0 0.0
    %634 = vmatprep.subr.mxu0 0.0
    %635 = vmatpush1.msra.mxu0 0.0
    %636 = vmatprep.mubr.f32.mxu0 0.0
    %637 = vmatmul.mubr.f32.gmra.mrb[0].mxu0 %v436
    %v638 = vpop.f32.mrb[0].mxu0
    %v639 = vadd.f32 0.0, %v638
    %v640 = vpop.f32.mrb[0].mxu0
    %v641 = vadd.f32 0.0, %v640
    %642 = vdwg.mxu0
    %v643 = vadd.f32 %v432, %v568
    %v644 = vadd.f32 %v433, %v570
    %v645 = vadd.f32 %v434, %v639
    %v646 = vadd.f32 %v435, %v641
    %v647 = vxor.u32 %v643, 2147483648
    %v648 = vxor.u32 %v644, 2147483648
    %v649 = vxor.u32 %v645, 2147483648
    %v650 = vmul.f32 %v647, 1.442695
    %v651 = vpow.pop %v650
    %v652 = vmul.f32 %v648, 1.442695
    %v653 = vpow.pop %v652
    %v654 = vmul.f32 %v649, 1.442695
    %v655 = vpow.pop %v654
    %v656 = vadd.f32 %v651, 1.0
    %v657 = vadd.f32 %v653, 1.0
    %v658 = vadd.f32 %v655, 1.0
    %v659 = vrcp.pop %v656
    %v660 = vmul.f32 1.0, %v659
    %v661 = vrcp.pop %v657
    %v662 = vmul.f32 1.0, %v661
    %v663 = vrcp.pop %v658
    %v664 = vmul.f32 1.0, %v663
    %v665 = vtanh.pop %v646
    %v666 = vld [vmem:[#allocation3] sm:$0xff]
    %v667 = vmul.f32 %v662, %v666
    %v668 = vmul.f32 %v660, %v665
    %v669 = vadd.f32 %v667, %v668
    %v670 = vtanh.pop %v669
    %v671 = vmul.f32 %v664, %v670
    %672 = vst [vmem:[#allocation2] sm:$0xff] %v671
    %673 = vst [vmem:[#allocation3] sm:$0xff] %v669
    %v674 = vmul.f32 %v671, %v69
    %v675 = vsel %vm387, %v674, 0.0
    %676 = vadd.xlane.f32.xlu0 %v675
    %v677 = vpop.xlane.xlu0 %676
    %679 = vrot.lane.b32.xlu0 %v674, 64
    %v680 = vpop.permute.xlu0 %679
    %v682 = vsel %vm387, %v680, 0.0
    %683 = vadd.xlane.f32.xlu0 %v682
    %v684 = vpop.xlane.xlu0 %683
    %v685 = vld [vmem:[#allocation8] sm:$0xff]
    %vm686 = vcmp.eq.s32.totalorder %v72, 1
    %v687 = vsel %vm686, %v677, 0.0
    %v688 = vadd.f32 %v685, %v687
    %vm689 = vcmp.eq.s32.totalorder %v72, 6
    %v690 = vsel %vm689, %v684, 0.0
    %v691 = vadd.f32 %v688, %v690
    %692 = vst.msk [vmem:[#allocation8] sm:$0xff] %vm75, %v691
    %s693 = scalar_lea.vmem %s0, 16
    %v694 = vld [vmem:[%s693] sm:$0xff]
    %s695 = scalar_lea.vmem %s0, 40
    %v696 = vld [vmem:[%s695] sm:$0xff]
    %698 = vset.pattern.permute.xlu0 0
    %699 = vperm.xlu0 %698, %v694
    %v700 = vpop.permute.xlu0 %699
    %v702 = vmul.f32 %v700, %v89
    %v703 = vmul.f32 %v700, %v93
    %v704 = vmul.f32 %v700, %v97
    %v705 = vmul.f32 %v700, %v101
    %707 = vset.pattern.permute.xlu0 0
    %708 = vperm.xlu0 %707, %v696
    %v709 = vpop.permute.xlu0 %708
    %v711 = vmul.f32 %v709, %v119
    %v712 = vmul.f32 %v709, %v123
    %v713 = vmul.f32 %v709, %v127
    %v714 = vmul.f32 %v709, %v131
    %v715 = vadd.f32 %v702, %v711
    %v716 = vadd.f32 %v703, %v712
    %v717 = vadd.f32 %v704, %v713
    %v718 = vadd.f32 %v705, %v714
    %v719 = vadd.f32 %v715, %v47
    %v720 = vadd.f32 %v716, %v51
    %v721 = vadd.f32 %v717, %v55
    %v722 = vadd.f32 %v718, %v59
    %v723 = vld [vmem:[#allocation2] sm:$0xff]
    %v724 = vld [vmem:[#allocation5] sm:$0xff]
    %v725 = vld [vmem:[#allocation5 + $0x8] sm:$0xff]
    %v726 = vld [vmem:[#allocation5 + $0x10] sm:$0xff]
    %v727 = vld [vmem:[#allocation5 + $0x18] sm:$0xff]
    %v728 = vld [vmem:[#allocation5 + $0x20] sm:$0xff]
    %v729 = vld [vmem:[#allocation5 + $0x28] sm:$0xff]
    %v730 = vld [vmem:[#allocation5 + $0x30] sm:$0xff]
    %v731 = vld [vmem:[#allocation5 + $0x38] sm:$0xff]
    %v732 = vld [vmem:[#allocation5 + $0x40] sm:$0xff]
    %v733 = vld [vmem:[#allocation5 + $0x48] sm:$0xff]
    %v734 = vld [vmem:[#allocation5 + $0x50] sm:$0xff]
    %v735 = vld [vmem:[#allocation5 + $0x58] sm:$0xff]
    %v736 = vld [vmem:[#allocation5 + $0x60] sm:$0xff]
    %v737 = vld [vmem:[#allocation5 + $0x68] sm:$0xff]
    %v738 = vld [vmem:[#allocation5 + $0x70] sm:$0xff]
    %v739 = vld [vmem:[#allocation5 + $0x78] sm:$0xff]
    %v740 = vld [vmem:[#allocation5 + $0x80] sm:$0xff]
    %v741 = vld [vmem:[#allocation5 + $0x88] sm:$0xff]
    %v742 = vld [vmem:[#allocation5 + $0x90] sm:$0xff]
    %v743 = vld [vmem:[#allocation5 + $0x98] sm:$0xff]
    %v744 = vld [vmem:[#allocation5 + $0xa0] sm:$0xff]
    %v745 = vld [vmem:[#allocation5 + $0xa8] sm:$0xff]
    %v746 = vld [vmem:[#allocation5 + $0xb0] sm:$0xff]
    %v747 = vld [vmem:[#allocation5 + $0xb8] sm:$0xff]
    %v748 = vld [vmem:[#allocation5 + $0xc0] sm:$0xff]
    %v749 = vld [vmem:[#allocation5 + $0xc8] sm:$0xff]
    %v750 = vld [vmem:[#allocation5 + $0xd0] sm:$0xff]
    %v751 = vld [vmem:[#allocation5 + $0xd8] sm:$0xff]
    %v752 = vld [vmem:[#allocation5 + $0xe0] sm:$0xff]
    %v753 = vld [vmem:[#allocation5 + $0xe8] sm:$0xff]
    %v754 = vld [vmem:[#allocation5 + $0xf0] sm:$0xff]
    %v755 = vld [vmem:[#allocation5 + $0xf8] sm:$0xff]
    %v756 = vld [vmem:[#allocation5 + $0x100] sm:$0xff]
    %v757 = vld [vmem:[#allocation5 + $0x108] sm:$0xff]
    %v758 = vld [vmem:[#allocation5 + $0x110] sm:$0xff]
    %v759 = vld [vmem:[#allocation5 + $0x118] sm:$0xff]
    %v760 = vld [vmem:[#allocation5 + $0x120] sm:$0xff]
    %v761 = vld [vmem:[#allocation5 + $0x128] sm:$0xff]
    %v762 = vld [vmem:[#allocation5 + $0x130] sm:$0xff]
    %v763 = vld [vmem:[#allocation5 + $0x138] sm:$0xff]
    %v764 = vld [vmem:[#allocation5 + $0x140] sm:$0xff]
    %v765 = vld [vmem:[#allocation5 + $0x148] sm:$0xff]
    %v766 = vld [vmem:[#allocation5 + $0x150] sm:$0xff]
    %v767 = vld [vmem:[#allocation5 + $0x158] sm:$0xff]
    %v768 = vld [vmem:[#allocation5 + $0x160] sm:$0xff]
    %v769 = vld [vmem:[#allocation5 + $0x168] sm:$0xff]
    %v770 = vld [vmem:[#allocation5 + $0x170] sm:$0xff]
    %v771 = vld [vmem:[#allocation5 + $0x178] sm:$0xff]
    %v772 = vld [vmem:[#allocation5 + $0x180] sm:$0xff]
    %v773 = vld [vmem:[#allocation5 + $0x188] sm:$0xff]
    %v774 = vld [vmem:[#allocation5 + $0x190] sm:$0xff]
    %v775 = vld [vmem:[#allocation5 + $0x198] sm:$0xff]
    %v776 = vld [vmem:[#allocation5 + $0x1a0] sm:$0xff]
    %v777 = vld [vmem:[#allocation5 + $0x1a8] sm:$0xff]
    %v778 = vld [vmem:[#allocation5 + $0x1b0] sm:$0xff]
    %v779 = vld [vmem:[#allocation5 + $0x1b8] sm:$0xff]
    %v780 = vld [vmem:[#allocation5 + $0x1c0] sm:$0xff]
    %v781 = vld [vmem:[#allocation5 + $0x1c8] sm:$0xff]
    %v782 = vld [vmem:[#allocation5 + $0x1d0] sm:$0xff]
    %v783 = vld [vmem:[#allocation5 + $0x1d8] sm:$0xff]
    %v784 = vld [vmem:[#allocation5 + $0x1e0] sm:$0xff]
    %v785 = vld [vmem:[#allocation5 + $0x1e8] sm:$0xff]
    %v786 = vld [vmem:[#allocation5 + $0x1f0] sm:$0xff]
    %v787 = vld [vmem:[#allocation5 + $0x1f8] sm:$0xff]
    %788 = vmatprep.subr.mxu0 %v725
    %789 = vmatpush1.msra.mxu0 %v724
    %790 = vmatprep.subr.mxu0 %v729
    %791 = vmatpush1.msra.mxu0 %v728
    %792 = vmatprep.subr.mxu0 %v733
    %793 = vmatpush1.msra.mxu0 %v732
    %794 = vmatprep.subr.mxu0 %v737
    %795 = vmatpush1.msra.mxu0 %v736
    %796 = vmatprep.subr.mxu0 %v741
    %797 = vmatpush1.msra.mxu0 %v740
    %798 = vmatprep.subr.mxu0 %v745
    %799 = vmatpush1.msra.mxu0 %v744
    %800 = vmatprep.subr.mxu0 %v749
    %801 = vmatpush1.msra.mxu0 %v748
    %802 = vmatprep.subr.mxu0 %v753
    %803 = vmatpush1.msra.mxu0 %v752
    %804 = vmatprep.subr.mxu0 %v757
    %805 = vmatpush1.msra.mxu0 %v756
    %806 = vmatprep.subr.mxu0 %v761
    %807 = vmatpush1.msra.mxu0 %v760
    %808 = vmatprep.subr.mxu0 %v765
    %809 = vmatpush1.msra.mxu0 %v764
    %810 = vmatprep.subr.mxu0 %v769
    %811 = vmatpush1.msra.mxu0 %v768
    %812 = vmatprep.subr.mxu0 %v773
    %813 = vmatpush1.msra.mxu0 %v772
    %814 = vmatprep.subr.mxu0 %v777
    %815 = vmatpush1.msra.mxu0 %v776
    %816 = vmatprep.subr.mxu0 %v781
    %817 = vmatpush1.msra.mxu0 %v780
    %818 = vmatprep.subr.mxu0 %v785
    %819 = vmatpush1.msra.mxu0 %v784
    %820 = vmatprep.subr.mxu0 0.0
    %821 = vmatpush1.msra.mxu0 0.0
    %822 = vmatprep.subr.mxu0 0.0
    %823 = vmatpush1.msra.mxu0 0.0
    %824 = vmatprep.subr.mxu0 0.0
    %825 = vmatpush1.msra.mxu0 0.0
    %826 = vmatprep.subr.mxu0 0.0
    %827 = vmatpush1.msra.mxu0 0.0
    %828 = vmatprep.subr.mxu0 0.0
    %829 = vmatpush1.msra.mxu0 0.0
    %830 = vmatprep.subr.mxu0 0.0
    %831 = vmatpush1.msra.mxu0 0.0
    %832 = vmatprep.subr.mxu0 0.0
    %833 = vmatpush1.msra.mxu0 0.0
    %834 = vmatprep.subr.mxu0 0.0
    %835 = vmatpush1.msra.mxu0 0.0
    %836 = vmatprep.subr.mxu0 0.0
    %837 = vmatpush1.msra.mxu0 0.0
    %838 = vmatprep.subr.mxu0 0.0
    %839 = vmatpush1.msra.mxu0 0.0
    %840 = vmatprep.subr.mxu0 0.0
    %841 = vmatpush1.msra.mxu0 0.0
    %842 = vmatprep.subr.mxu0 0.0
    %843 = vmatpush1.msra.mxu0 0.0
    %844 = vmatprep.subr.mxu0 0.0
    %845 = vmatpush1.msra.mxu0 0.0
    %846 = vmatprep.subr.mxu0 0.0
    %847 = vmatpush1.msra.mxu0 0.0
    %848 = vmatprep.subr.mxu0 0.0
    %849 = vmatpush1.msra.mxu0 0.0
    %850 = vmatprep.subr.mxu0 0.0
    %851 = vmatpush1.msra.mxu0 0.0
    %852 = vmatprep.mubr.f32.mxu0 0.0
    %853 = vmatmul.mubr.f32.gmra.mrb[0].mxu0 %v723
    %v854 = vpop.f32.mrb[0].mxu0
    %v855 = vadd.f32 0.0, %v854
    %v856 = vpop.f32.mrb[0].mxu0
    %v857 = vadd.f32 0.0, %v856
    %858 = vdwg.mxu0
    %859 = vmatprep.subr.mxu0 %v727
    %860 = vmatpush1.msra.mxu0 %v726
    %861 = vmatprep.subr.mxu0 %v731
    %862 = vmatpush1.msra.mxu0 %v730
    %863 = vmatprep.subr.mxu0 %v735
    %864 = vmatpush1.msra.mxu0 %v734
    %865 = vmatprep.subr.mxu0 %v739
    %866 = vmatpush1.msra.mxu0 %v738
    %867 = vmatprep.subr.mxu0 %v743
    %868 = vmatpush1.msra.mxu0 %v742
    %869 = vmatprep.subr.mxu0 %v747
    %870 = vmatpush1.msra.mxu0 %v746
    %871 = vmatprep.subr.mxu0 %v751
    %872 = vmatpush1.msra.mxu0 %v750
    %873 = vmatprep.subr.mxu0 %v755
    %874 = vmatpush1.msra.mxu0 %v754
    %875 = vmatprep.subr.mxu0 %v759
    %876 = vmatpush1.msra.mxu0 %v758
    %877 = vmatprep.subr.mxu0 %v763
    %878 = vmatpush1.msra.mxu0 %v762
    %879 = vmatprep.subr.mxu0 %v767
    %880 = vmatpush1.msra.mxu0 %v766
    %881 = vmatprep.subr.mxu0 %v771
    %882 = vmatpush1.msra.mxu0 %v770
    %883 = vmatprep.subr.mxu0 %v775
    %884 = vmatpush1.msra.mxu0 %v774
    %885 = vmatprep.subr.mxu0 %v779
    %886 = vmatpush1.msra.mxu0 %v778
    %887 = vmatprep.subr.mxu0 %v783
    %888 = vmatpush1.msra.mxu0 %v782
    %889 = vmatprep.subr.mxu0 %v787
    %890 = vmatpush1.msra.mxu0 %v786
    %891 = vmatprep.subr.mxu0 0.0
    %892 = vmatpush1.msra.mxu0 0.0
    %893 = vmatprep.subr.mxu0 0.0
    %894 = vmatpush1.msra.mxu0 0.0
    %895 = vmatprep.subr.mxu0 0.0
    %896 = vmatpush1.msra.mxu0 0.0
    %897 = vmatprep.subr.mxu0 0.0
    %898 = vmatpush1.msra.mxu0 0.0
    %899 = vmatprep.subr.mxu0 0.0
    %900 = vmatpush1.msra.mxu0 0.0
    %901 = vmatprep.subr.mxu0 0.0
    %902 = vmatpush1.msra.mxu0 0.0
    %903 = vmatprep.subr.mxu0 0.0
    %904 = vmatpush1.msra.mxu0 0.0
    %905 = vmatprep.subr.mxu0 0.0
    %906 = vmatpush1.msra.mxu0 0.0
    %907 = vmatprep.subr.mxu0 0.0
    %908 = vmatpush1.msra.mxu0 0.0
    %909 = vmatprep.subr.mxu0 0.0
    %910 = vmatpush1.msra.mxu0 0.0
    %911 = vmatprep.subr.mxu0 0.0
    %912 = vmatpush1.msra.mxu0 0.0
    %913 = vmatprep.subr.mxu0 0.0
    %914 = vmatpush1.msra.mxu0 0.0
    %915 = vmatprep.subr.mxu0 0.0
    %916 = vmatpush1.msra.mxu0 0.0
    %917 = vmatprep.subr.mxu0 0.0
    %918 = vmatpush1.msra.mxu0 0.0
    %919 = vmatprep.subr.mxu0 0.0
    %920 = vmatpush1.msra.mxu0 0.0
    %921 = vmatprep.subr.mxu0 0.0
    %922 = vmatpush1.msra.mxu0 0.0
    %923 = vmatprep.mubr.f32.mxu0 0.0
    %924 = vmatmul.mubr.f32.gmra.mrb[0].mxu0 %v723
    %v925 = vpop.f32.mrb[0].mxu0
    %v926 = vadd.f32 0.0, %v925
    %v927 = vpop.f32.mrb[0].mxu0
    %v928 = vadd.f32 0.0, %v927
    %929 = vdwg.mxu0
    %v930 = vadd.f32 %v719, %v855
    %v931 = vadd.f32 %v720, %v857
    %v932 = vadd.f32 %v721, %v926
    %v933 = vadd.f32 %v722, %v928
    %v934 = vxor.u32 %v930, 2147483648
    %v935 = vxor.u32 %v931, 2147483648
    %v936 = vxor.u32 %v932, 2147483648
    %v937 = vmul.f32 %v934, 1.442695
    %v938 = vpow.pop %v937
    %v939 = vmul.f32 %v935, 1.442695
    %v940 = vpow.pop %v939
    %v941 = vmul.f32 %v936, 1.442695
    %v942 = vpow.pop %v941
    %v943 = vadd.f32 %v938, 1.0
    %v944 = vadd.f32 %v940, 1.0
    %v945 = vadd.f32 %v942, 1.0
    %v946 = vrcp.pop %v943
    %v947 = vmul.f32 1.0, %v946
    %v948 = vrcp.pop %v944
    %v949 = vmul.f32 1.0, %v948
    %v950 = vrcp.pop %v945
    %v951 = vmul.f32 1.0, %v950
    %v952 = vtanh.pop %v933
    %v953 = vld [vmem:[#allocation3] sm:$0xff]
    %v954 = vmul.f32 %v949, %v953
    %v955 = vmul.f32 %v947, %v952
    %v956 = vadd.f32 %v954, %v955
    %v957 = vtanh.pop %v956
    %v958 = vmul.f32 %v951, %v957
    %959 = vst [vmem:[#allocation2] sm:$0xff] %v958
    %960 = vst [vmem:[#allocation3] sm:$0xff] %v956
    %v961 = vmul.f32 %v958, %v69
    %v962 = vsel %vm387, %v961, 0.0
    %963 = vadd.xlane.f32.xlu0 %v962
    %v964 = vpop.xlane.xlu0 %963
    %966 = vrot.lane.b32.xlu0 %v961, 64
    %v967 = vpop.permute.xlu0 %966
    %v969 = vsel %vm387, %v967, 0.0
    %970 = vadd.xlane.f32.xlu0 %v969
    %v971 = vpop.xlane.xlu0 %970
    %v972 = vld [vmem:[#allocation8] sm:$0xff]
    %vm973 = vcmp.eq.s32.totalorder %v72, 2
    %v974 = vsel %vm973, %v964, 0.0
    %v975 = vadd.f32 %v972, %v974
    %vm976 = vcmp.eq.s32.totalorder %v72, 5
    %v977 = vsel %vm976, %v971, 0.0
    %v978 = vadd.f32 %v975, %v977
    %979 = vst.msk [vmem:[#allocation8] sm:$0xff] %vm75, %v978
    %s980 = scalar_lea.vmem %s0, 24
    %v981 = vld [vmem:[%s980] sm:$0xff]
    %s982 = scalar_lea.vmem %s0, 32
    %v983 = vld [vmem:[%s982] sm:$0xff]
    %985 = vset.pattern.permute.xlu0 0
    %986 = vperm.xlu0 %985, %v981
    %v987 = vpop.permute.xlu0 %986
    %v989 = vmul.f32 %v987, %v89
    %v990 = vmul.f32 %v987, %v93
    %v991 = vmul.f32 %v987, %v97
    %v992 = vmul.f32 %v987, %v101
    %994 = vset.pattern.permute.xlu0 0
    %995 = vperm.xlu0 %994, %v983
    %v996 = vpop.permute.xlu0 %995
    %v998 = vmul.f32 %v996, %v119
    %v999 = vmul.f32 %v996, %v123
    %v1000 = vmul.f32 %v996, %v127
    %v1001 = vmul.f32 %v996, %v131
    %v1002 = vadd.f32 %v989, %v998
    %v1003 = vadd.f32 %v990, %v999
    %v1004 = vadd.f32 %v991, %v1000
    %v1005 = vadd.f32 %v992, %v1001
    %v1006 = vadd.f32 %v1002, %v47
    %v1007 = vadd.f32 %v1003, %v51
    %v1008 = vadd.f32 %v1004, %v55
    %v1009 = vadd.f32 %v1005, %v59
    %v1010 = vld [vmem:[#allocation2] sm:$0xff]
    %v1011 = vld [vmem:[#allocation5] sm:$0xff]
    %v1012 = vld [vmem:[#allocation5 + $0x8] sm:$0xff]
    %v1013 = vld [vmem:[#allocation5 + $0x10] sm:$0xff]
    %v1014 = vld [vmem:[#allocation5 + $0x18] sm:$0xff]
    %v1015 = vld [vmem:[#allocation5 + $0x20] sm:$0xff]
    %v1016 = vld [vmem:[#allocation5 + $0x28] sm:$0xff]
    %v1017 = vld [vmem:[#allocation5 + $0x30] sm:$0xff]
    %v1018 = vld [vmem:[#allocation5 + $0x38] sm:$0xff]
    %v1019 = vld [vmem:[#allocation5 + $0x40] sm:$0xff]
    %v1020 = vld [vmem:[#allocation5 + $0x48] sm:$0xff]
    %v1021 = vld [vmem:[#allocation5 + $0x50] sm:$0xff]
    %v1022 = vld [vmem:[#allocation5 + $0x58] sm:$0xff]
    %v1023 = vld [vmem:[#allocation5 + $0x60] sm:$0xff]
    %v1024 = vld [vmem:[#allocation5 + $0x68] sm:$0xff]
    %v1025 = vld [vmem:[#allocation5 + $0x70] sm:$0xff]
    %v1026 = vld [vmem:[#allocation5 + $0x78] sm:$0xff]
    %v1027 = vld [vmem:[#allocation5 + $0x80] sm:$0xff]
    %v1028 = vld [vmem:[#allocation5 + $0x88] sm:$0xff]
    %v1029 = vld [vmem:[#allocation5 + $0x90] sm:$0xff]
    %v1030 = vld [vmem:[#allocation5 + $0x98] sm:$0xff]
    %v1031 = vld [vmem:[#allocation5 + $0xa0] sm:$0xff]
    %v1032 = vld [vmem:[#allocation5 + $0xa8] sm:$0xff]
    %v1033 = vld [vmem:[#allocation5 + $0xb0] sm:$0xff]
    %v1034 = vld [vmem:[#allocation5 + $0xb8] sm:$0xff]
    %v1035 = vld [vmem:[#allocation5 + $0xc0] sm:$0xff]
    %v1036 = vld [vmem:[#allocation5 + $0xc8] sm:$0xff]
    %v1037 = vld [vmem:[#allocation5 + $0xd0] sm:$0xff]
    %v1038 = vld [vmem:[#allocation5 + $0xd8] sm:$0xff]
    %v1039 = vld [vmem:[#allocation5 + $0xe0] sm:$0xff]
    %v1040 = vld [vmem:[#allocation5 + $0xe8] sm:$0xff]
    %v1041 = vld [vmem:[#allocation5 + $0xf0] sm:$0xff]
    %v1042 = vld [vmem:[#allocation5 + $0xf8] sm:$0xff]
    %v1043 = vld [vmem:[#allocation5 + $0x100] sm:$0xff]
    %v1044 = vld [vmem:[#allocation5 + $0x108] sm:$0xff]
    %v1045 = vld [vmem:[#allocation5 + $0x110] sm:$0xff]
    %v1046 = vld [vmem:[#allocation5 + $0x118] sm:$0xff]
    %v1047 = vld [vmem:[#allocation5 + $0x120] sm:$0xff]
    %v1048 = vld [vmem:[#allocation5 + $0x128] sm:$0xff]
    %v1049 = vld [vmem:[#allocation5 + $0x130] sm:$0xff]
    %v1050 = vld [vmem:[#allocation5 + $0x138] sm:$0xff]
    %v1051 = vld [vmem:[#allocation5 + $0x140] sm:$0xff]
    %v1052 = vld [vmem:[#allocation5 + $0x148] sm:$0xff]
    %v1053 = vld [vmem:[#allocation5 + $0x150] sm:$0xff]
    %v1054 = vld [vmem:[#allocation5 + $0x158] sm:$0xff]
    %v1055 = vld [vmem:[#allocation5 + $0x160] sm:$0xff]
    %v1056 = vld [vmem:[#allocation5 + $0x168] sm:$0xff]
    %v1057 = vld [vmem:[#allocation5 + $0x170] sm:$0xff]
    %v1058 = vld [vmem:[#allocation5 + $0x178] sm:$0xff]
    %v1059 = vld [vmem:[#allocation5 + $0x180] sm:$0xff]
    %v1060 = vld [vmem:[#allocation5 + $0x188] sm:$0xff]
    %v1061 = vld [vmem:[#allocation5 + $0x190] sm:$0xff]
    %v1062 = vld [vmem:[#allocation5 + $0x198] sm:$0xff]
    %v1063 = vld [vmem:[#allocation5 + $0x1a0] sm:$0xff]
    %v1064 = vld [vmem:[#allocation5 + $0x1a8] sm:$0xff]
    %v1065 = vld [vmem:[#allocation5 + $0x1b0] sm:$0xff]
    %v1066 = vld [vmem:[#allocation5 + $0x1b8] sm:$0xff]
    %v1067 = vld [vmem:[#allocation5 + $0x1c0] sm:$0xff]
    %v1068 = vld [vmem:[#allocation5 + $0x1c8] sm:$0xff]
    %v1069 = vld [vmem:[#allocation5 + $0x1d0] sm:$0xff]
    %v1070 = vld [vmem:[#allocation5 + $0x1d8] sm:$0xff]
    %v1071 = vld [vmem:[#allocation5 + $0x1e0] sm:$0xff]
    %v1072 = vld [vmem:[#allocation5 + $0x1e8] sm:$0xff]
    %v1073 = vld [vmem:[#allocation5 + $0x1f0] sm:$0xff]
    %v1074 = vld [vmem:[#allocation5 + $0x1f8] sm:$0xff]
    %1075 = vmatprep.subr.mxu0 %v1012
    %1076 = vmatpush1.msra.mxu0 %v1011
    %1077 = vmatprep.subr.mxu0 %v1016
    %1078 = vmatpush1.msra.mxu0 %v1015
    %1079 = vmatprep.subr.mxu0 %v1020
    %1080 = vmatpush1.msra.mxu0 %v1019
    %1081 = vmatprep.subr.mxu0 %v1024
    %1082 = vmatpush1.msra.mxu0 %v1023
    %1083 = vmatprep.subr.mxu0 %v1028
    %1084 = vmatpush1.msra.mxu0 %v1027
    %1085 = vmatprep.subr.mxu0 %v1032
    %1086 = vmatpush1.msra.mxu0 %v1031
    %1087 = vmatprep.subr.mxu0 %v1036
    %1088 = vmatpush1.msra.mxu0 %v1035
    %1089 = vmatprep.subr.mxu0 %v1040
    %1090 = vmatpush1.msra.mxu0 %v1039
    %1091 = vmatprep.subr.mxu0 %v1044
    %1092 = vmatpush1.msra.mxu0 %v1043
    %1093 = vmatprep.subr.mxu0 %v1048
    %1094 = vmatpush1.msra.mxu0 %v1047
    %1095 = vmatprep.subr.mxu0 %v1052
    %1096 = vmatpush1.msra.mxu0 %v1051
    %1097 = vmatprep.subr.mxu0 %v1056
    %1098 = vmatpush1.msra.mxu0 %v1055
    %1099 = vmatprep.subr.mxu0 %v1060
    %1100 = vmatpush1.msra.mxu0 %v1059
    %1101 = vmatprep.subr.mxu0 %v1064
    %1102 = vmatpush1.msra.mxu0 %v1063
    %1103 = vmatprep.subr.mxu0 %v1068
    %1104 = vmatpush1.msra.mxu0 %v1067
    %1105 = vmatprep.subr.mxu0 %v1072
    %1106 = vmatpush1.msra.mxu0 %v1071
    %1107 = vmatprep.subr.mxu0 0.0
    %1108 = vmatpush1.msra.mxu0 0.0
    %1109 = vmatprep.subr.mxu0 0.0
    %1110 = vmatpush1.msra.mxu0 0.0
    %1111 = vmatprep.subr.mxu0 0.0
    %1112 = vmatpush1.msra.mxu0 0.0
    %1113 = vmatprep.subr.mxu0 0.0
    %1114 = vmatpush1.msra.mxu0 0.0
    %1115 = vmatprep.subr.mxu0 0.0
    %1116 = vmatpush1.msra.mxu0 0.0
    %1117 = vmatprep.subr.mxu0 0.0
    %1118 = vmatpush1.msra.mxu0 0.0
    %1119 = vmatprep.subr.mxu0 0.0
    %1120 = vmatpush1.msra.mxu0 0.0
    %1121 = vmatprep.subr.mxu0 0.0
    %1122 = vmatpush1.msra.mxu0 0.0
    %1123 = vmatprep.subr.mxu0 0.0
    %1124 = vmatpush1.msra.mxu0 0.0
    %1125 = vmatprep.subr.mxu0 0.0
    %1126 = vmatpush1.msra.mxu0 0.0
    %1127 = vmatprep.subr.mxu0 0.0
    %1128 = vmatpush1.msra.mxu0 0.0
    %1129 = vmatprep.subr.mxu0 0.0
    %1130 = vmatpush1.msra.mxu0 0.0
    %1131 = vmatprep.subr.mxu0 0.0
    %1132 = vmatpush1.msra.mxu0 0.0
    %1133 = vmatprep.subr.mxu0 0.0
    %1134 = vmatpush1.msra.mxu0 0.0
    %1135 = vmatprep.subr.mxu0 0.0
    %1136 = vmatpush1.msra.mxu0 0.0
    %1137 = vmatprep.subr.mxu0 0.0
    %1138 = vmatpush1.msra.mxu0 0.0
    %1139 = vmatprep.mubr.f32.mxu0 0.0
    %1140 = vmatmul.mubr.f32.gmra.mrb[0].mxu0 %v1010
    %v1141 = vpop.f32.mrb[0].mxu0
    %v1142 = vadd.f32 0.0, %v1141
    %v1143 = vpop.f32.mrb[0].mxu0
    %v1144 = vadd.f32 0.0, %v1143
    %1145 = vdwg.mxu0
    %1146 = vmatprep.subr.mxu0 %v1014
    %1147 = vmatpush1.msra.mxu0 %v1013
    %1148 = vmatprep.subr.mxu0 %v1018
    %1149 = vmatpush1.msra.mxu0 %v1017
    %1150 = vmatprep.subr.mxu0 %v1022
    %1151 = vmatpush1.msra.mxu0 %v1021
    %1152 = vmatprep.subr.mxu0 %v1026
    %1153 = vmatpush1.msra.mxu0 %v1025
    %1154 = vmatprep.subr.mxu0 %v1030
    %1155 = vmatpush1.msra.mxu0 %v1029
    %1156 = vmatprep.subr.mxu0 %v1034
    %1157 = vmatpush1.msra.mxu0 %v1033
    %1158 = vmatprep.subr.mxu0 %v1038
    %1159 = vmatpush1.msra.mxu0 %v1037
    %1160 = vmatprep.subr.mxu0 %v1042
    %1161 = vmatpush1.msra.mxu0 %v1041
    %1162 = vmatprep.subr.mxu0 %v1046
    %1163 = vmatpush1.msra.mxu0 %v1045
    %1164 = vmatprep.subr.mxu0 %v1050
    %1165 = vmatpush1.msra.mxu0 %v1049
    %1166 = vmatprep.subr.mxu0 %v1054
    %1167 = vmatpush1.msra.mxu0 %v1053
    %1168 = vmatprep.subr.mxu0 %v1058
    %1169 = vmatpush1.msra.mxu0 %v1057
    %1170 = vmatprep.subr.mxu0 %v1062
    %1171 = vmatpush1.msra.mxu0 %v1061
    %1172 = vmatprep.subr.mxu0 %v1066
    %1173 = vmatpush1.msra.mxu0 %v1065
    %1174 = vmatprep.subr.mxu0 %v1070
    %1175 = vmatpush1.msra.mxu0 %v1069
    %1176 = vmatprep.subr.mxu0 %v1074
    %1177 = vmatpush1.msra.mxu0 %v1073
    %1178 = vmatprep.subr.mxu0 0.0
    %1179 = vmatpush1.msra.mxu0 0.0
    %1180 = vmatprep.subr.mxu0 0.0
    %1181 = vmatpush1.msra.mxu0 0.0
    %1182 = vmatprep.subr.mxu0 0.0
    %1183 = vmatpush1.msra.mxu0 0.0
    %1184 = vmatprep.subr.mxu0 0.0
    %1185 = vmatpush1.msra.mxu0 0.0
    %1186 = vmatprep.subr.mxu0 0.0
    %1187 = vmatpush1.msra.mxu0 0.0
    %1188 = vmatprep.subr.mxu0 0.0
    %1189 = vmatpush1.msra.mxu0 0.0
    %1190 = vmatprep.subr.mxu0 0.0
    %1191 = vmatpush1.msra.mxu0 0.0
    %1192 = vmatprep.subr.mxu0 0.0
    %1193 = vmatpush1.msra.mxu0 0.0
    %1194 = vmatprep.subr.mxu0 0.0
    %1195 = vmatpush1.msra.mxu0 0.0
    %1196 = vmatprep.subr.mxu0 0.0
    %1197 = vmatpush1.msra.mxu0 0.0
    %1198 = vmatprep.subr.mxu0 0.0
    %1199 = vmatpush1.msra.mxu0 0.0
    %1200 = vmatprep.subr.mxu0 0.0
    %1201 = vmatpush1.msra.mxu0 0.0
    %1202 = vmatprep.subr.mxu0 0.0
    %1203 = vmatpush1.msra.mxu0 0.0
    %1204 = vmatprep.subr.mxu0 0.0
    %1205 = vmatpush1.msra.mxu0 0.0
    %1206 = vmatprep.subr.mxu0 0.0
    %1207 = vmatpush1.msra.mxu0 0.0
    %1208 = vmatprep.subr.mxu0 0.0
    %1209 = vmatpush1.msra.mxu0 0.0
    %1210 = vmatprep.mubr.f32.mxu0 0.0
    %1211 = vmatmul.mubr.f32.gmra.mrb[0].mxu0 %v1010
    %v1212 = vpop.f32.mrb[0].mxu0
    %v1213 = vadd.f32 0.0, %v1212
    %v1214 = vpop.f32.mrb[0].mxu0
    %v1215 = vadd.f32 0.0, %v1214
    %1216 = vdwg.mxu0
    %v1217 = vadd.f32 %v1006, %v1142
    %v1218 = vadd.f32 %v1007, %v1144
    %v1219 = vadd.f32 %v1008, %v1213
    %v1220 = vadd.f32 %v1009, %v1215
    %v1221 = vxor.u32 %v1217, 2147483648
    %v1222 = vxor.u32 %v1218, 2147483648
    %v1223 = vxor.u32 %v1219, 2147483648
    %v1224 = vmul.f32 %v1221, 1.442695
    %v1225 = vpow.pop %v1224
    %v1226 = vmul.f32 %v1222, 1.442695
    %v1227 = vpow.pop %v1226
    %v1228 = vmul.f32 %v1223, 1.442695
    %v1229 = vpow.pop %v1228
    %v1230 = vadd.f32 %v1225, 1.0
    %v1231 = vadd.f32 %v1227, 1.0
    %v1232 = vadd.f32 %v1229, 1.0
    %v1233 = vrcp.pop %v1230
    %v1234 = vmul.f32 1.0, %v1233
    %v1235 = vrcp.pop %v1231
    %v1236 = vmul.f32 1.0, %v1235
    %v1237 = vrcp.pop %v1232
    %v1238 = vmul.f32 1.0, %v1237
    %v1239 = vtanh.pop %v1220
    %v1240 = vld [vmem:[#allocation3] sm:$0xff]
    %v1241 = vmul.f32 %v1236, %v1240
    %v1242 = vmul.f32 %v1234, %v1239
    %v1243 = vadd.f32 %v1241, %v1242
    %v1244 = vtanh.pop %v1243
    %v1245 = vmul.f32 %v1238, %v1244
    %1246 = vst [vmem:[#allocation2] sm:$0xff] %v1245
    %1247 = vst [vmem:[#allocation3] sm:$0xff] %v1243
    %v1248 = vmul.f32 %v1245, %v69
    %v1249 = vsel %vm387, %v1248, 0.0
    %1250 = vadd.xlane.f32.xlu0 %v1249
    %v1251 = vpop.xlane.xlu0 %1250
    %1253 = vrot.lane.b32.xlu0 %v1248, 64
    %v1254 = vpop.permute.xlu0 %1253
    %v1256 = vsel %vm387, %v1254, 0.0
    %1257 = vadd.xlane.f32.xlu0 %v1256
    %v1258 = vpop.xlane.xlu0 %1257
    %v1259 = vld [vmem:[#allocation8] sm:$0xff]
    %vm1260 = vcmp.eq.s32.totalorder %v72, 3
    %v1261 = vsel %vm1260, %v1251, 0.0
    %v1262 = vadd.f32 %v1259, %v1261
    %vm1263 = vcmp.eq.s32.totalorder %v72, 4
    %v1264 = vsel %vm1263, %v1258, 0.0
    %v1265 = vadd.f32 %v1262, %v1264
    %1266 = vst.msk [vmem:[#allocation8] sm:$0xff] %vm75, %v1265
    %v1267 = vld [vmem:[%s982] sm:$0xff]
    %v1268 = vld [vmem:[%s980] sm:$0xff]
    %1270 = vset.pattern.permute.xlu0 0
    %1271 = vperm.xlu0 %1270, %v1267
    %v1272 = vpop.permute.xlu0 %1271
    %v1274 = vmul.f32 %v1272, %v89
    %v1275 = vmul.f32 %v1272, %v93
    %v1276 = vmul.f32 %v1272, %v97
    %v1277 = vmul.f32 %v1272, %v101
    %1279 = vset.pattern.permute.xlu0 0
    %1280 = vperm.xlu0 %1279, %v1268
    %v1281 = vpop.permute.xlu0 %1280
    %v1283 = vmul.f32 %v1281, %v119
    %v1284 = vmul.f32 %v1281, %v123
    %v1285 = vmul.f32 %v1281, %v127
    %v1286 = vmul.f32 %v1281, %v131
    %v1287 = vadd.f32 %v1274, %v1283
    %v1288 = vadd.f32 %v1275, %v1284
    %v1289 = vadd.f32 %v1276, %v1285
    %v1290 = vadd.f32 %v1277, %v1286
    %v1291 = vadd.f32 %v1287, %v47
    %v1292 = vadd.f32 %v1288, %v51
    %v1293 = vadd.f32 %v1289, %v55
    %v1294 = vadd.f32 %v1290, %v59
    %v1295 = vld [vmem:[#allocation2] sm:$0xff]
    %v1296 = vld [vmem:[#allocation5] sm:$0xff]
    %v1297 = vld [vmem:[#allocation5 + $0x8] sm:$0xff]
    %v1298 = vld [vmem:[#allocation5 + $0x10] sm:$0xff]
    %v1299 = vld [vmem:[#allocation5 + $0x18] sm:$0xff]
    %v1300 = vld [vmem:[#allocation5 + $0x20] sm:$0xff]
    %v1301 = vld [vmem:[#allocation5 + $0x28] sm:$0xff]
    %v1302 = vld [vmem:[#allocation5 + $0x30] sm:$0xff]
    %v1303 = vld [vmem:[#allocation5 + $0x38] sm:$0xff]
    %v1304 = vld [vmem:[#allocation5 + $0x40] sm:$0xff]
    %v1305 = vld [vmem:[#allocation5 + $0x48] sm:$0xff]
    %v1306 = vld [vmem:[#allocation5 + $0x50] sm:$0xff]
    %v1307 = vld [vmem:[#allocation5 + $0x58] sm:$0xff]
    %v1308 = vld [vmem:[#allocation5 + $0x60] sm:$0xff]
    %v1309 = vld [vmem:[#allocation5 + $0x68] sm:$0xff]
    %v1310 = vld [vmem:[#allocation5 + $0x70] sm:$0xff]
    %v1311 = vld [vmem:[#allocation5 + $0x78] sm:$0xff]
    %v1312 = vld [vmem:[#allocation5 + $0x80] sm:$0xff]
    %v1313 = vld [vmem:[#allocation5 + $0x88] sm:$0xff]
    %v1314 = vld [vmem:[#allocation5 + $0x90] sm:$0xff]
    %v1315 = vld [vmem:[#allocation5 + $0x98] sm:$0xff]
    %v1316 = vld [vmem:[#allocation5 + $0xa0] sm:$0xff]
    %v1317 = vld [vmem:[#allocation5 + $0xa8] sm:$0xff]
    %v1318 = vld [vmem:[#allocation5 + $0xb0] sm:$0xff]
    %v1319 = vld [vmem:[#allocation5 + $0xb8] sm:$0xff]
    %v1320 = vld [vmem:[#allocation5 + $0xc0] sm:$0xff]
    %v1321 = vld [vmem:[#allocation5 + $0xc8] sm:$0xff]
    %v1322 = vld [vmem:[#allocation5 + $0xd0] sm:$0xff]
    %v1323 = vld [vmem:[#allocation5 + $0xd8] sm:$0xff]
    %v1324 = vld [vmem:[#allocation5 + $0xe0] sm:$0xff]
    %v1325 = vld [vmem:[#allocation5 + $0xe8] sm:$0xff]
    %v1326 = vld [vmem:[#allocation5 + $0xf0] sm:$0xff]
    %v1327 = vld [vmem:[#allocation5 + $0xf8] sm:$0xff]
    %v1328 = vld [vmem:[#allocation5 + $0x100] sm:$0xff]
    %v1329 = vld [vmem:[#allocation5 + $0x108] sm:$0xff]
    %v1330 = vld [vmem:[#allocation5 + $0x110] sm:$0xff]
    %v1331 = vld [vmem:[#allocation5 + $0x118] sm:$0xff]
    %v1332 = vld [vmem:[#allocation5 + $0x120] sm:$0xff]
    %v1333 = vld [vmem:[#allocation5 + $0x128] sm:$0xff]
    %v1334 = vld [vmem:[#allocation5 + $0x130] sm:$0xff]
    %v1335 = vld [vmem:[#allocation5 + $0x138] sm:$0xff]
    %v1336 = vld [vmem:[#allocation5 + $0x140] sm:$0xff]
    %v1337 = vld [vmem:[#allocation5 + $0x148] sm:$0xff]
    %v1338 = vld [vmem:[#allocation5 + $0x150] sm:$0xff]
    %v1339 = vld [vmem:[#allocation5 + $0x158] sm:$0xff]
    %v1340 = vld [vmem:[#allocation5 + $0x160] sm:$0xff]
    %v1341 = vld [vmem:[#allocation5 + $0x168] sm:$0xff]
    %v1342 = vld [vmem:[#allocation5 + $0x170] sm:$0xff]
    %v1343 = vld [vmem:[#allocation5 + $0x178] sm:$0xff]
    %v1344 = vld [vmem:[#allocation5 + $0x180] sm:$0xff]
    %v1345 = vld [vmem:[#allocation5 + $0x188] sm:$0xff]
    %v1346 = vld [vmem:[#allocation5 + $0x190] sm:$0xff]
    %v1347 = vld [vmem:[#allocation5 + $0x198] sm:$0xff]
    %v1348 = vld [vmem:[#allocation5 + $0x1a0] sm:$0xff]
    %v1349 = vld [vmem:[#allocation5 + $0x1a8] sm:$0xff]
    %v1350 = vld [vmem:[#allocation5 + $0x1b0] sm:$0xff]
    %v1351 = vld [vmem:[#allocation5 + $0x1b8] sm:$0xff]
    %v1352 = vld [vmem:[#allocation5 + $0x1c0] sm:$0xff]
    %v1353 = vld [vmem:[#allocation5 + $0x1c8] sm:$0xff]
    %v1354 = vld [vmem:[#allocation5 + $0x1d0] sm:$0xff]
    %v1355 = vld [vmem:[#allocation5 + $0x1d8] sm:$0xff]
    %v1356 = vld [vmem:[#allocation5 + $0x1e0] sm:$0xff]
    %v1357 = vld [vmem:[#allocation5 + $0x1e8] sm:$0xff]
    %v1358 = vld [vmem:[#allocation5 + $0x1f0] sm:$0xff]
    %v1359 = vld [vmem:[#allocation5 + $0x1f8] sm:$0xff]
    %1360 = vmatprep.subr.mxu0 %v1297
    %1361 = vmatpush1.msra.mxu0 %v1296
    %1362 = vmatprep.subr.mxu0 %v1301
    %1363 = vmatpush1.msra.mxu0 %v1300
    %1364 = vmatprep.subr.mxu0 %v1305
    %1365 = vmatpush1.msra.mxu0 %v1304
    %1366 = vmatprep.subr.mxu0 %v1309
    %1367 = vmatpush1.msra.mxu0 %v1308
    %1368 = vmatprep.subr.mxu0 %v1313
    %1369 = vmatpush1.msra.mxu0 %v1312
    %1370 = vmatprep.subr.mxu0 %v1317
    %1371 = vmatpush1.msra.mxu0 %v1316
    %1372 = vmatprep.subr.mxu0 %v1321
    %1373 = vmatpush1.msra.mxu0 %v1320
    %1374 = vmatprep.subr.mxu0 %v1325
    %1375 = vmatpush1.msra.mxu0 %v1324
    %1376 = vmatprep.subr.mxu0 %v1329
    %1377 = vmatpush1.msra.mxu0 %v1328
    %1378 = vmatprep.subr.mxu0 %v1333
    %1379 = vmatpush1.msra.mxu0 %v1332
    %1380 = vmatprep.subr.mxu0 %v1337
    %1381 = vmatpush1.msra.mxu0 %v1336
    %1382 = vmatprep.subr.mxu0 %v1341
    %1383 = vmatpush1.msra.mxu0 %v1340
    %1384 = vmatprep.subr.mxu0 %v1345
    %1385 = vmatpush1.msra.mxu0 %v1344
    %1386 = vmatprep.subr.mxu0 %v1349
    %1387 = vmatpush1.msra.mxu0 %v1348
    %1388 = vmatprep.subr.mxu0 %v1353
    %1389 = vmatpush1.msra.mxu0 %v1352
    %1390 = vmatprep.subr.mxu0 %v1357
    %1391 = vmatpush1.msra.mxu0 %v1356
    %1392 = vmatprep.subr.mxu0 0.0
    %1393 = vmatpush1.msra.mxu0 0.0
    %1394 = vmatprep.subr.mxu0 0.0
    %1395 = vmatpush1.msra.mxu0 0.0
    %1396 = vmatprep.subr.mxu0 0.0
    %1397 = vmatpush1.msra.mxu0 0.0
    %1398 = vmatprep.subr.mxu0 0.0
    %1399 = vmatpush1.msra.mxu0 0.0
    %1400 = vmatprep.subr.mxu0 0.0
    %1401 = vmatpush1.msra.mxu0 0.0
    %1402 = vmatprep.subr.mxu0 0.0
    %1403 = vmatpush1.msra.mxu0 0.0
    %1404 = vmatprep.subr.mxu0 0.0
    %1405 = vmatpush1.msra.mxu0 0.0
    %1406 = vmatprep.subr.mxu0 0.0
    %1407 = vmatpush1.msra.mxu0 0.0
    %1408 = vmatprep.subr.mxu0 0.0
    %1409 = vmatpush1.msra.mxu0 0.0
    %1410 = vmatprep.subr.mxu0 0.0
    %1411 = vmatpush1.msra.mxu0 0.0
    %1412 = vmatprep.subr.mxu0 0.0
    %1413 = vmatpush1.msra.mxu0 0.0
    %1414 = vmatprep.subr.mxu0 0.0
    %1415 = vmatpush1.msra.mxu0 0.0
    %1416 = vmatprep.subr.mxu0 0.0
    %1417 = vmatpush1.msra.mxu0 0.0
    %1418 = vmatprep.subr.mxu0 0.0
    %1419 = vmatpush1.msra.mxu0 0.0
    %1420 = vmatprep.subr.mxu0 0.0
    %1421 = vmatpush1.msra.mxu0 0.0
    %1422 = vmatprep.subr.mxu0 0.0
    %1423 = vmatpush1.msra.mxu0 0.0
    %1424 = vmatprep.mubr.f32.mxu0 0.0
    %1425 = vmatmul.mubr.f32.gmra.mrb[0].mxu0 %v1295
    %v1426 = vpop.f32.mrb[0].mxu0
    %v1427 = vadd.f32 0.0, %v1426
    %v1428 = vpop.f32.mrb[0].mxu0
    %v1429 = vadd.f32 0.0, %v1428
    %1430 = vdwg.mxu0
    %1431 = vmatprep.subr.mxu0 %v1299
    %1432 = vmatpush1.msra.mxu0 %v1298
    %1433 = vmatprep.subr.mxu0 %v1303
    %1434 = vmatpush1.msra.mxu0 %v1302
    %1435 = vmatprep.subr.mxu0 %v1307
    %1436 = vmatpush1.msra.mxu0 %v1306
    %1437 = vmatprep.subr.mxu0 %v1311
    %1438 = vmatpush1.msra.mxu0 %v1310
    %1439 = vmatprep.subr.mxu0 %v1315
    %1440 = vmatpush1.msra.mxu0 %v1314
    %1441 = vmatprep.subr.mxu0 %v1319
    %1442 = vmatpush1.msra.mxu0 %v1318
    %1443 = vmatprep.subr.mxu0 %v1323
    %1444 = vmatpush1.msra.mxu0 %v1322
    %1445 = vmatprep.subr.mxu0 %v1327
    %1446 = vmatpush1.msra.mxu0 %v1326
    %1447 = vmatprep.subr.mxu0 %v1331
    %1448 = vmatpush1.msra.mxu0 %v1330
    %1449 = vmatprep.subr.mxu0 %v1335
    %1450 = vmatpush1.msra.mxu0 %v1334
    %1451 = vmatprep.subr.mxu0 %v1339
    %1452 = vmatpush1.msra.mxu0 %v1338
    %1453 = vmatprep.subr.mxu0 %v1343
    %1454 = vmatpush1.msra.mxu0 %v1342
    %1455 = vmatprep.subr.mxu0 %v1347
    %1456 = vmatpush1.msra.mxu0 %v1346
    %1457 = vmatprep.subr.mxu0 %v1351
    %1458 = vmatpush1.msra.mxu0 %v1350
    %1459 = vmatprep.subr.mxu0 %v1355
    %1460 = vmatpush1.msra.mxu0 %v1354
    %1461 = vmatprep.subr.mxu0 %v1359
    %1462 = vmatpush1.msra.mxu0 %v1358
    %1463 = vmatprep.subr.mxu0 0.0
    %1464 = vmatpush1.msra.mxu0 0.0
    %1465 = vmatprep.subr.mxu0 0.0
    %1466 = vmatpush1.msra.mxu0 0.0
    %1467 = vmatprep.subr.mxu0 0.0
    %1468 = vmatpush1.msra.mxu0 0.0
    %1469 = vmatprep.subr.mxu0 0.0
    %1470 = vmatpush1.msra.mxu0 0.0
    %1471 = vmatprep.subr.mxu0 0.0
    %1472 = vmatpush1.msra.mxu0 0.0
    %1473 = vmatprep.subr.mxu0 0.0
    %1474 = vmatpush1.msra.mxu0 0.0
    %1475 = vmatprep.subr.mxu0 0.0
    %1476 = vmatpush1.msra.mxu0 0.0
    %1477 = vmatprep.subr.mxu0 0.0
    %1478 = vmatpush1.msra.mxu0 0.0
    %1479 = vmatprep.subr.mxu0 0.0
    %1480 = vmatpush1.msra.mxu0 0.0
    %1481 = vmatprep.subr.mxu0 0.0
    %1482 = vmatpush1.msra.mxu0 0.0
    %1483 = vmatprep.subr.mxu0 0.0
    %1484 = vmatpush1.msra.mxu0 0.0
    %1485 = vmatprep.subr.mxu0 0.0
    %1486 = vmatpush1.msra.mxu0 0.0
    %1487 = vmatprep.subr.mxu0 0.0
    %1488 = vmatpush1.msra.mxu0 0.0
    %1489 = vmatprep.subr.mxu0 0.0
    %1490 = vmatpush1.msra.mxu0 0.0
    %1491 = vmatprep.subr.mxu0 0.0
    %1492 = vmatpush1.msra.mxu0 0.0
    %1493 = vmatprep.subr.mxu0 0.0
    %1494 = vmatpush1.msra.mxu0 0.0
    %1495 = vmatprep.mubr.f32.mxu0 0.0
    %1496 = vmatmul.mubr.f32.gmra.mrb[0].mxu0 %v1295
    %v1497 = vpop.f32.mrb[0].mxu0
    %v1498 = vadd.f32 0.0, %v1497
    %v1499 = vpop.f32.mrb[0].mxu0
    %v1500 = vadd.f32 0.0, %v1499
    %1501 = vdwg.mxu0
    %v1502 = vadd.f32 %v1291, %v1427
    %v1503 = vadd.f32 %v1292, %v1429
    %v1504 = vadd.f32 %v1293, %v1498
    %v1505 = vadd.f32 %v1294, %v1500
    %v1506 = vxor.u32 %v1502, 2147483648
    %v1507 = vxor.u32 %v1503, 2147483648
    %v1508 = vxor.u32 %v1504, 2147483648
    %v1509 = vmul.f32 %v1506, 1.442695
    %v1510 = vpow.pop %v1509
    %v1511 = vmul.f32 %v1507, 1.442695
    %v1512 = vpow.pop %v1511
    %v1513 = vmul.f32 %v1508, 1.442695
    %v1514 = vpow.pop %v1513
    %v1515 = vadd.f32 %v1510, 1.0
    %v1516 = vadd.f32 %v1512, 1.0
    %v1517 = vadd.f32 %v1514, 1.0
    %v1518 = vrcp.pop %v1515
    %v1519 = vmul.f32 1.0, %v1518
    %v1520 = vrcp.pop %v1516
    %v1521 = vmul.f32 1.0, %v1520
    %v1522 = vrcp.pop %v1517
    %v1523 = vmul.f32 1.0, %v1522
    %v1524 = vtanh.pop %v1505
    %v1525 = vld [vmem:[#allocation3] sm:$0xff]
    %v1526 = vmul.f32 %v1521, %v1525
    %v1527 = vmul.f32 %v1519, %v1524
    %v1528 = vadd.f32 %v1526, %v1527
    %v1529 = vtanh.pop %v1528
    %v1530 = vmul.f32 %v1523, %v1529
    %1531 = vst [vmem:[#allocation2] sm:$0xff] %v1530
    %1532 = vst [vmem:[#allocation3] sm:$0xff] %v1528
    %v1533 = vmul.f32 %v1530, %v69
    %v1534 = vsel %vm387, %v1533, 0.0
    %1535 = vadd.xlane.f32.xlu0 %v1534
    %v1536 = vpop.xlane.xlu0 %1535
    %1538 = vrot.lane.b32.xlu0 %v1533, 64
    %v1539 = vpop.permute.xlu0 %1538
    %v1541 = vsel %vm387, %v1539, 0.0
    %1542 = vadd.xlane.f32.xlu0 %v1541
    %v1543 = vpop.xlane.xlu0 %1542
    %v1544 = vld [vmem:[#allocation8] sm:$0xff]
    %v1545 = vsel %vm1263, %v1536, 0.0
    %v1546 = vadd.f32 %v1544, %v1545
    %v1547 = vsel %vm1260, %v1543, 0.0
    %v1548 = vadd.f32 %v1546, %v1547
    %1549 = vst.msk [vmem:[#allocation8] sm:$0xff] %vm75, %v1548
    %v1550 = vld [vmem:[%s695] sm:$0xff]
    %v1551 = vld [vmem:[%s693] sm:$0xff]
    %1553 = vset.pattern.permute.xlu0 0
    %1554 = vperm.xlu0 %1553, %v1550
    %v1555 = vpop.permute.xlu0 %1554
    %v1557 = vmul.f32 %v1555, %v89
    %v1558 = vmul.f32 %v1555, %v93
    %v1559 = vmul.f32 %v1555, %v97
    %v1560 = vmul.f32 %v1555, %v101
    %1562 = vset.pattern.permute.xlu0 0
    %1563 = vperm.xlu0 %1562, %v1551
    %v1564 = vpop.permute.xlu0 %1563
    %v1566 = vmul.f32 %v1564, %v119
    %v1567 = vmul.f32 %v1564, %v123
    %v1568 = vmul.f32 %v1564, %v127
    %v1569 = vmul.f32 %v1564, %v131
    %v1570 = vadd.f32 %v1557, %v1566
    %v1571 = vadd.f32 %v1558, %v1567
    %v1572 = vadd.f32 %v1559, %v1568
    %v1573 = vadd.f32 %v1560, %v1569
    %v1574 = vadd.f32 %v1570, %v47
    %v1575 = vadd.f32 %v1571, %v51
    %v1576 = vadd.f32 %v1572, %v55
    %v1577 = vadd.f32 %v1573, %v59
    %v1578 = vld [vmem:[#allocation2] sm:$0xff]
    %v1579 = vld [vmem:[#allocation5] sm:$0xff]
    %v1580 = vld [vmem:[#allocation5 + $0x8] sm:$0xff]
    %v1581 = vld [vmem:[#allocation5 + $0x10] sm:$0xff]
    %v1582 = vld [vmem:[#allocation5 + $0x18] sm:$0xff]
    %v1583 = vld [vmem:[#allocation5 + $0x20] sm:$0xff]
    %v1584 = vld [vmem:[#allocation5 + $0x28] sm:$0xff]
    %v1585 = vld [vmem:[#allocation5 + $0x30] sm:$0xff]
    %v1586 = vld [vmem:[#allocation5 + $0x38] sm:$0xff]
    %v1587 = vld [vmem:[#allocation5 + $0x40] sm:$0xff]
    %v1588 = vld [vmem:[#allocation5 + $0x48] sm:$0xff]
    %v1589 = vld [vmem:[#allocation5 + $0x50] sm:$0xff]
    %v1590 = vld [vmem:[#allocation5 + $0x58] sm:$0xff]
    %v1591 = vld [vmem:[#allocation5 + $0x60] sm:$0xff]
    %v1592 = vld [vmem:[#allocation5 + $0x68] sm:$0xff]
    %v1593 = vld [vmem:[#allocation5 + $0x70] sm:$0xff]
    %v1594 = vld [vmem:[#allocation5 + $0x78] sm:$0xff]
    %v1595 = vld [vmem:[#allocation5 + $0x80] sm:$0xff]
    %v1596 = vld [vmem:[#allocation5 + $0x88] sm:$0xff]
    %v1597 = vld [vmem:[#allocation5 + $0x90] sm:$0xff]
    %v1598 = vld [vmem:[#allocation5 + $0x98] sm:$0xff]
    %v1599 = vld [vmem:[#allocation5 + $0xa0] sm:$0xff]
    %v1600 = vld [vmem:[#allocation5 + $0xa8] sm:$0xff]
    %v1601 = vld [vmem:[#allocation5 + $0xb0] sm:$0xff]
    %v1602 = vld [vmem:[#allocation5 + $0xb8] sm:$0xff]
    %v1603 = vld [vmem:[#allocation5 + $0xc0] sm:$0xff]
    %v1604 = vld [vmem:[#allocation5 + $0xc8] sm:$0xff]
    %v1605 = vld [vmem:[#allocation5 + $0xd0] sm:$0xff]
    %v1606 = vld [vmem:[#allocation5 + $0xd8] sm:$0xff]
    %v1607 = vld [vmem:[#allocation5 + $0xe0] sm:$0xff]
    %v1608 = vld [vmem:[#allocation5 + $0xe8] sm:$0xff]
    %v1609 = vld [vmem:[#allocation5 + $0xf0] sm:$0xff]
    %v1610 = vld [vmem:[#allocation5 + $0xf8] sm:$0xff]
    %v1611 = vld [vmem:[#allocation5 + $0x100] sm:$0xff]
    %v1612 = vld [vmem:[#allocation5 + $0x108] sm:$0xff]
    %v1613 = vld [vmem:[#allocation5 + $0x110] sm:$0xff]
    %v1614 = vld [vmem:[#allocation5 + $0x118] sm:$0xff]
    %v1615 = vld [vmem:[#allocation5 + $0x120] sm:$0xff]
    %v1616 = vld [vmem:[#allocation5 + $0x128] sm:$0xff]
    %v1617 = vld [vmem:[#allocation5 + $0x130] sm:$0xff]
    %v1618 = vld [vmem:[#allocation5 + $0x138] sm:$0xff]
    %v1619 = vld [vmem:[#allocation5 + $0x140] sm:$0xff]
    %v1620 = vld [vmem:[#allocation5 + $0x148] sm:$0xff]
    %v1621 = vld [vmem:[#allocation5 + $0x150] sm:$0xff]
    %v1622 = vld [vmem:[#allocation5 + $0x158] sm:$0xff]
    %v1623 = vld [vmem:[#allocation5 + $0x160] sm:$0xff]
    %v1624 = vld [vmem:[#allocation5 + $0x168] sm:$0xff]
    %v1625 = vld [vmem:[#allocation5 + $0x170] sm:$0xff]
    %v1626 = vld [vmem:[#allocation5 + $0x178] sm:$0xff]
    %v1627 = vld [vmem:[#allocation5 + $0x180] sm:$0xff]
    %v1628 = vld [vmem:[#allocation5 + $0x188] sm:$0xff]
    %v1629 = vld [vmem:[#allocation5 + $0x190] sm:$0xff]
    %v1630 = vld [vmem:[#allocation5 + $0x198] sm:$0xff]
    %v1631 = vld [vmem:[#allocation5 + $0x1a0] sm:$0xff]
    %v1632 = vld [vmem:[#allocation5 + $0x1a8] sm:$0xff]
    %v1633 = vld [vmem:[#allocation5 + $0x1b0] sm:$0xff]
    %v1634 = vld [vmem:[#allocation5 + $0x1b8] sm:$0xff]
    %v1635 = vld [vmem:[#allocation5 + $0x1c0] sm:$0xff]
    %v1636 = vld [vmem:[#allocation5 + $0x1c8] sm:$0xff]
    %v1637 = vld [vmem:[#allocation5 + $0x1d0] sm:$0xff]
    %v1638 = vld [vmem:[#allocation5 + $0x1d8] sm:$0xff]
    %v1639 = vld [vmem:[#allocation5 + $0x1e0] sm:$0xff]
    %v1640 = vld [vmem:[#allocation5 + $0x1e8] sm:$0xff]
    %v1641 = vld [vmem:[#allocation5 + $0x1f0] sm:$0xff]
    %v1642 = vld [vmem:[#allocation5 + $0x1f8] sm:$0xff]
    %1643 = vmatprep.subr.mxu0 %v1580
    %1644 = vmatpush1.msra.mxu0 %v1579
    %1645 = vmatprep.subr.mxu0 %v1584
    %1646 = vmatpush1.msra.mxu0 %v1583
    %1647 = vmatprep.subr.mxu0 %v1588
    %1648 = vmatpush1.msra.mxu0 %v1587
    %1649 = vmatprep.subr.mxu0 %v1592
    %1650 = vmatpush1.msra.mxu0 %v1591
    %1651 = vmatprep.subr.mxu0 %v1596
    %1652 = vmatpush1.msra.mxu0 %v1595
    %1653 = vmatprep.subr.mxu0 %v1600
    %1654 = vmatpush1.msra.mxu0 %v1599
    %1655 = vmatprep.subr.mxu0 %v1604
    %1656 = vmatpush1.msra.mxu0 %v1603
    %1657 = vmatprep.subr.mxu0 %v1608
    %1658 = vmatpush1.msra.mxu0 %v1607
    %1659 = vmatprep.subr.mxu0 %v1612
    %1660 = vmatpush1.msra.mxu0 %v1611
    %1661 = vmatprep.subr.mxu0 %v1616
    %1662 = vmatpush1.msra.mxu0 %v1615
    %1663 = vmatprep.subr.mxu0 %v1620
    %1664 = vmatpush1.msra.mxu0 %v1619
    %1665 = vmatprep.subr.mxu0 %v1624
    %1666 = vmatpush1.msra.mxu0 %v1623
    %1667 = vmatprep.subr.mxu0 %v1628
    %1668 = vmatpush1.msra.mxu0 %v1627
    %1669 = vmatprep.subr.mxu0 %v1632
    %1670 = vmatpush1.msra.mxu0 %v1631
    %1671 = vmatprep.subr.mxu0 %v1636
    %1672 = vmatpush1.msra.mxu0 %v1635
    %1673 = vmatprep.subr.mxu0 %v1640
    %1674 = vmatpush1.msra.mxu0 %v1639
    %1675 = vmatprep.subr.mxu0 0.0
    %1676 = vmatpush1.msra.mxu0 0.0
    %1677 = vmatprep.subr.mxu0 0.0
    %1678 = vmatpush1.msra.mxu0 0.0
    %1679 = vmatprep.subr.mxu0 0.0
    %1680 = vmatpush1.msra.mxu0 0.0
    %1681 = vmatprep.subr.mxu0 0.0
    %1682 = vmatpush1.msra.mxu0 0.0
    %1683 = vmatprep.subr.mxu0 0.0
    %1684 = vmatpush1.msra.mxu0 0.0
    %1685 = vmatprep.subr.mxu0 0.0
    %1686 = vmatpush1.msra.mxu0 0.0
    %1687 = vmatprep.subr.mxu0 0.0
    %1688 = vmatpush1.msra.mxu0 0.0
    %1689 = vmatprep.subr.mxu0 0.0
    %1690 = vmatpush1.msra.mxu0 0.0
    %1691 = vmatprep.subr.mxu0 0.0
    %1692 = vmatpush1.msra.mxu0 0.0
    %1693 = vmatprep.subr.mxu0 0.0
    %1694 = vmatpush1.msra.mxu0 0.0
    %1695 = vmatprep.subr.mxu0 0.0
    %1696 = vmatpush1.msra.mxu0 0.0
    %1697 = vmatprep.subr.mxu0 0.0
    %1698 = vmatpush1.msra.mxu0 0.0
    %1699 = vmatprep.subr.mxu0 0.0
    %1700 = vmatpush1.msra.mxu0 0.0
    %1701 = vmatprep.subr.mxu0 0.0
    %1702 = vmatpush1.msra.mxu0 0.0
    %1703 = vmatprep.subr.mxu0 0.0
    %1704 = vmatpush1.msra.mxu0 0.0
    %1705 = vmatprep.subr.mxu0 0.0
    %1706 = vmatpush1.msra.mxu0 0.0
    %1707 = vmatprep.mubr.f32.mxu0 0.0
    %1708 = vmatmul.mubr.f32.gmra.mrb[0].mxu0 %v1578
    %v1709 = vpop.f32.mrb[0].mxu0
    %v1710 = vadd.f32 0.0, %v1709
    %v1711 = vpop.f32.mrb[0].mxu0
    %v1712 = vadd.f32 0.0, %v1711
    %1713 = vdwg.mxu0
    %1714 = vmatprep.subr.mxu0 %v1582
    %1715 = vmatpush1.msra.mxu0 %v1581
    %1716 = vmatprep.subr.mxu0 %v1586
    %1717 = vmatpush1.msra.mxu0 %v1585
    %1718 = vmatprep.subr.mxu0 %v1590
    %1719 = vmatpush1.msra.mxu0 %v1589
    %1720 = vmatprep.subr.mxu0 %v1594
    %1721 = vmatpush1.msra.mxu0 %v1593
    %1722 = vmatprep.subr.mxu0 %v1598
    %1723 = vmatpush1.msra.mxu0 %v1597
    %1724 = vmatprep.subr.mxu0 %v1602
    %1725 = vmatpush1.msra.mxu0 %v1601
    %1726 = vmatprep.subr.mxu0 %v1606
    %1727 = vmatpush1.msra.mxu0 %v1605
    %1728 = vmatprep.subr.mxu0 %v1610
    %1729 = vmatpush1.msra.mxu0 %v1609
    %1730 = vmatprep.subr.mxu0 %v1614
    %1731 = vmatpush1.msra.mxu0 %v1613
    %1732 = vmatprep.subr.mxu0 %v1618
    %1733 = vmatpush1.msra.mxu0 %v1617
    %1734 = vmatprep.subr.mxu0 %v1622
    %1735 = vmatpush1.msra.mxu0 %v1621
    %1736 = vmatprep.subr.mxu0 %v1626
    %1737 = vmatpush1.msra.mxu0 %v1625
    %1738 = vmatprep.subr.mxu0 %v1630
    %1739 = vmatpush1.msra.mxu0 %v1629
    %1740 = vmatprep.subr.mxu0 %v1634
    %1741 = vmatpush1.msra.mxu0 %v1633
    %1742 = vmatprep.subr.mxu0 %v1638
    %1743 = vmatpush1.msra.mxu0 %v1637
    %1744 = vmatprep.subr.mxu0 %v1642
    %1745 = vmatpush1.msra.mxu0 %v1641
    %1746 = vmatprep.subr.mxu0 0.0
    %1747 = vmatpush1.msra.mxu0 0.0
    %1748 = vmatprep.subr.mxu0 0.0
    %1749 = vmatpush1.msra.mxu0 0.0
    %1750 = vmatprep.subr.mxu0 0.0
    %1751 = vmatpush1.msra.mxu0 0.0
    %1752 = vmatprep.subr.mxu0 0.0
    %1753 = vmatpush1.msra.mxu0 0.0
    %1754 = vmatprep.subr.mxu0 0.0
    %1755 = vmatpush1.msra.mxu0 0.0
    %1756 = vmatprep.subr.mxu0 0.0
    %1757 = vmatpush1.msra.mxu0 0.0
    %1758 = vmatprep.subr.mxu0 0.0
    %1759 = vmatpush1.msra.mxu0 0.0
    %1760 = vmatprep.subr.mxu0 0.0
    %1761 = vmatpush1.msra.mxu0 0.0
    %1762 = vmatprep.subr.mxu0 0.0
    %1763 = vmatpush1.msra.mxu0 0.0
    %1764 = vmatprep.subr.mxu0 0.0
    %1765 = vmatpush1.msra.mxu0 0.0
    %1766 = vmatprep.subr.mxu0 0.0
    %1767 = vmatpush1.msra.mxu0 0.0
    %1768 = vmatprep.subr.mxu0 0.0
    %1769 = vmatpush1.msra.mxu0 0.0
    %1770 = vmatprep.subr.mxu0 0.0
    %1771 = vmatpush1.msra.mxu0 0.0
    %1772 = vmatprep.subr.mxu0 0.0
    %1773 = vmatpush1.msra.mxu0 0.0
    %1774 = vmatprep.subr.mxu0 0.0
    %1775 = vmatpush1.msra.mxu0 0.0
    %1776 = vmatprep.subr.mxu0 0.0
    %1777 = vmatpush1.msra.mxu0 0.0
    %1778 = vmatprep.mubr.f32.mxu0 0.0
    %1779 = vmatmul.mubr.f32.gmra.mrb[0].mxu0 %v1578
    %v1780 = vpop.f32.mrb[0].mxu0
    %v1781 = vadd.f32 0.0, %v1780
    %v1782 = vpop.f32.mrb[0].mxu0
    %v1783 = vadd.f32 0.0, %v1782
    %1784 = vdwg.mxu0
    %v1785 = vadd.f32 %v1574, %v1710
    %v1786 = vadd.f32 %v1575, %v1712
    %v1787 = vadd.f32 %v1576, %v1781
    %v1788 = vadd.f32 %v1577, %v1783
    %v1789 = vxor.u32 %v1785, 2147483648
    %v1790 = vxor.u32 %v1786, 2147483648
    %v1791 = vxor.u32 %v1787, 2147483648
    %v1792 = vmul.f32 %v1789, 1.442695
    %v1793 = vpow.pop %v1792
    %v1794 = vmul.f32 %v1790, 1.442695
    %v1795 = vpow.pop %v1794
    %v1796 = vmul.f32 %v1791, 1.442695
    %v1797 = vpow.pop %v1796
    %v1798 = vadd.f32 %v1793, 1.0
    %v1799 = vadd.f32 %v1795, 1.0
    %v1800 = vadd.f32 %v1797, 1.0
    %v1801 = vrcp.pop %v1798
    %v1802 = vmul.f32 1.0, %v1801
    %v1803 = vrcp.pop %v1799
    %v1804 = vmul.f32 1.0, %v1803
    %v1805 = vrcp.pop %v1800
    %v1806 = vmul.f32 1.0, %v1805
    %v1807 = vtanh.pop %v1788
    %v1808 = vld [vmem:[#allocation3] sm:$0xff]
    %v1809 = vmul.f32 %v1804, %v1808
    %v1810 = vmul.f32 %v1802, %v1807
    %v1811 = vadd.f32 %v1809, %v1810
    %v1812 = vtanh.pop %v1811
    %v1813 = vmul.f32 %v1806, %v1812
    %1814 = vst [vmem:[#allocation2] sm:$0xff] %v1813
    %1815 = vst [vmem:[#allocation3] sm:$0xff] %v1811
    %v1816 = vmul.f32 %v1813, %v69
    %v1817 = vsel %vm387, %v1816, 0.0
    %1818 = vadd.xlane.f32.xlu0 %v1817
    %v1819 = vpop.xlane.xlu0 %1818
    %1821 = vrot.lane.b32.xlu0 %v1816, 64
    %v1822 = vpop.permute.xlu0 %1821
    %v1824 = vsel %vm387, %v1822, 0.0
    %1825 = vadd.xlane.f32.xlu0 %v1824
    %v1826 = vpop.xlane.xlu0 %1825
    %v1827 = vld [vmem:[#allocation8] sm:$0xff]
    %v1828 = vsel %vm976, %v1819, 0.0
    %v1829 = vadd.f32 %v1827, %v1828
    %v1830 = vsel %vm973, %v1826, 0.0
    %v1831 = vadd.f32 %v1829, %v1830
    %1832 = vst.msk [vmem:[#allocation8] sm:$0xff] %vm75, %v1831
    %v1833 = vld [vmem:[%s408] sm:$0xff]
    %v1834 = vld [vmem:[%s406] sm:$0xff]
    %1836 = vset.pattern.permute.xlu0 0
    %1837 = vperm.xlu0 %1836, %v1833
    %v1838 = vpop.permute.xlu0 %1837
    %v1840 = vmul.f32 %v1838, %v89
    %v1841 = vmul.f32 %v1838, %v93
    %v1842 = vmul.f32 %v1838, %v97
    %v1843 = vmul.f32 %v1838, %v101
    %1845 = vset.pattern.permute.xlu0 0
    %1846 = vperm.xlu0 %1845, %v1834
    %v1847 = vpop.permute.xlu0 %1846
    %v1849 = vmul.f32 %v1847, %v119
    %v1850 = vmul.f32 %v1847, %v123
    %v1851 = vmul.f32 %v1847, %v127
    %v1852 = vmul.f32 %v1847, %v131
    %v1853 = vadd.f32 %v1840, %v1849
    %v1854 = vadd.f32 %v1841, %v1850
    %v1855 = vadd.f32 %v1842, %v1851
    %v1856 = vadd.f32 %v1843, %v1852
    %v1857 = vadd.f32 %v1853, %v47
    %v1858 = vadd.f32 %v1854, %v51
    %v1859 = vadd.f32 %v1855, %v55
    %v1860 = vadd.f32 %v1856, %v59
    %v1861 = vld [vmem:[#allocation2] sm:$0xff]
    %v1862 = vld [vmem:[#allocation5] sm:$0xff]
    %v1863 = vld [vmem:[#allocation5 + $0x8] sm:$0xff]
    %v1864 = vld [vmem:[#allocation5 + $0x10] sm:$0xff]
    %v1865 = vld [vmem:[#allocation5 + $0x18] sm:$0xff]
    %v1866 = vld [vmem:[#allocation5 + $0x20] sm:$0xff]
    %v1867 = vld [vmem:[#allocation5 + $0x28] sm:$0xff]
    %v1868 = vld [vmem:[#allocation5 + $0x30] sm:$0xff]
    %v1869 = vld [vmem:[#allocation5 + $0x38] sm:$0xff]
    %v1870 = vld [vmem:[#allocation5 + $0x40] sm:$0xff]
    %v1871 = vld [vmem:[#allocation5 + $0x48] sm:$0xff]
    %v1872 = vld [vmem:[#allocation5 + $0x50] sm:$0xff]
    %v1873 = vld [vmem:[#allocation5 + $0x58] sm:$0xff]
    %v1874 = vld [vmem:[#allocation5 + $0x60] sm:$0xff]
    %v1875 = vld [vmem:[#allocation5 + $0x68] sm:$0xff]
    %v1876 = vld [vmem:[#allocation5 + $0x70] sm:$0xff]
    %v1877 = vld [vmem:[#allocation5 + $0x78] sm:$0xff]
    %v1878 = vld [vmem:[#allocation5 + $0x80] sm:$0xff]
    %v1879 = vld [vmem:[#allocation5 + $0x88] sm:$0xff]
    %v1880 = vld [vmem:[#allocation5 + $0x90] sm:$0xff]
    %v1881 = vld [vmem:[#allocation5 + $0x98] sm:$0xff]
    %v1882 = vld [vmem:[#allocation5 + $0xa0] sm:$0xff]
    %v1883 = vld [vmem:[#allocation5 + $0xa8] sm:$0xff]
    %v1884 = vld [vmem:[#allocation5 + $0xb0] sm:$0xff]
    %v1885 = vld [vmem:[#allocation5 + $0xb8] sm:$0xff]
    %v1886 = vld [vmem:[#allocation5 + $0xc0] sm:$0xff]
    %v1887 = vld [vmem:[#allocation5 + $0xc8] sm:$0xff]
    %v1888 = vld [vmem:[#allocation5 + $0xd0] sm:$0xff]
    %v1889 = vld [vmem:[#allocation5 + $0xd8] sm:$0xff]
    %v1890 = vld [vmem:[#allocation5 + $0xe0] sm:$0xff]
    %v1891 = vld [vmem:[#allocation5 + $0xe8] sm:$0xff]
    %v1892 = vld [vmem:[#allocation5 + $0xf0] sm:$0xff]
    %v1893 = vld [vmem:[#allocation5 + $0xf8] sm:$0xff]
    %v1894 = vld [vmem:[#allocation5 + $0x100] sm:$0xff]
    %v1895 = vld [vmem:[#allocation5 + $0x108] sm:$0xff]
    %v1896 = vld [vmem:[#allocation5 + $0x110] sm:$0xff]
    %v1897 = vld [vmem:[#allocation5 + $0x118] sm:$0xff]
    %v1898 = vld [vmem:[#allocation5 + $0x120] sm:$0xff]
    %v1899 = vld [vmem:[#allocation5 + $0x128] sm:$0xff]
    %v1900 = vld [vmem:[#allocation5 + $0x130] sm:$0xff]
    %v1901 = vld [vmem:[#allocation5 + $0x138] sm:$0xff]
    %v1902 = vld [vmem:[#allocation5 + $0x140] sm:$0xff]
    %v1903 = vld [vmem:[#allocation5 + $0x148] sm:$0xff]
    %v1904 = vld [vmem:[#allocation5 + $0x150] sm:$0xff]
    %v1905 = vld [vmem:[#allocation5 + $0x158] sm:$0xff]
    %v1906 = vld [vmem:[#allocation5 + $0x160] sm:$0xff]
    %v1907 = vld [vmem:[#allocation5 + $0x168] sm:$0xff]
    %v1908 = vld [vmem:[#allocation5 + $0x170] sm:$0xff]
    %v1909 = vld [vmem:[#allocation5 + $0x178] sm:$0xff]
    %v1910 = vld [vmem:[#allocation5 + $0x180] sm:$0xff]
    %v1911 = vld [vmem:[#allocation5 + $0x188] sm:$0xff]
    %v1912 = vld [vmem:[#allocation5 + $0x190] sm:$0xff]
    %v1913 = vld [vmem:[#allocation5 + $0x198] sm:$0xff]
    %v1914 = vld [vmem:[#allocation5 + $0x1a0] sm:$0xff]
    %v1915 = vld [vmem:[#allocation5 + $0x1a8] sm:$0xff]
    %v1916 = vld [vmem:[#allocation5 + $0x1b0] sm:$0xff]
    %v1917 = vld [vmem:[#allocation5 + $0x1b8] sm:$0xff]
    %v1918 = vld [vmem:[#allocation5 + $0x1c0] sm:$0xff]
    %v1919 = vld [vmem:[#allocation5 + $0x1c8] sm:$0xff]
    %v1920 = vld [vmem:[#allocation5 + $0x1d0] sm:$0xff]
    %v1921 = vld [vmem:[#allocation5 + $0x1d8] sm:$0xff]
    %v1922 = vld [vmem:[#allocation5 + $0x1e0] sm:$0xff]
    %v1923 = vld [vmem:[#allocation5 + $0x1e8] sm:$0xff]
    %v1924 = vld [vmem:[#allocation5 + $0x1f0] sm:$0xff]
    %v1925 = vld [vmem:[#allocation5 + $0x1f8] sm:$0xff]
    %1926 = vmatprep.subr.mxu0 %v1863
    %1927 = vmatpush1.msra.mxu0 %v1862
    %1928 = vmatprep.subr.mxu0 %v1867
    %1929 = vmatpush1.msra.mxu0 %v1866
    %1930 = vmatprep.subr.mxu0 %v1871
    %1931 = vmatpush1.msra.mxu0 %v1870
    %1932 = vmatprep.subr.mxu0 %v1875
    %1933 = vmatpush1.msra.mxu0 %v1874
    %1934 = vmatprep.subr.mxu0 %v1879
    %1935 = vmatpush1.msra.mxu0 %v1878
    %1936 = vmatprep.subr.mxu0 %v1883
    %1937 = vmatpush1.msra.mxu0 %v1882
    %1938 = vmatprep.subr.mxu0 %v1887
    %1939 = vmatpush1.msra.mxu0 %v1886
    %1940 = vmatprep.subr.mxu0 %v1891
    %1941 = vmatpush1.msra.mxu0 %v1890
    %1942 = vmatprep.subr.mxu0 %v1895
    %1943 = vmatpush1.msra.mxu0 %v1894
    %1944 = vmatprep.subr.mxu0 %v1899
    %1945 = vmatpush1.msra.mxu0 %v1898
    %1946 = vmatprep.subr.mxu0 %v1903
    %1947 = vmatpush1.msra.mxu0 %v1902
    %1948 = vmatprep.subr.mxu0 %v1907
    %1949 = vmatpush1.msra.mxu0 %v1906
    %1950 = vmatprep.subr.mxu0 %v1911
    %1951 = vmatpush1.msra.mxu0 %v1910
    %1952 = vmatprep.subr.mxu0 %v1915
    %1953 = vmatpush1.msra.mxu0 %v1914
    %1954 = vmatprep.subr.mxu0 %v1919
    %1955 = vmatpush1.msra.mxu0 %v1918
    %1956 = vmatprep.subr.mxu0 %v1923
    %1957 = vmatpush1.msra.mxu0 %v1922
    %1958 = vmatprep.subr.mxu0 0.0
    %1959 = vmatpush1.msra.mxu0 0.0
    %1960 = vmatprep.subr.mxu0 0.0
    %1961 = vmatpush1.msra.mxu0 0.0
    %1962 = vmatprep.subr.mxu0 0.0
    %1963 = vmatpush1.msra.mxu0 0.0
    %1964 = vmatprep.subr.mxu0 0.0
    %1965 = vmatpush1.msra.mxu0 0.0
    %1966 = vmatprep.subr.mxu0 0.0
    %1967 = vmatpush1.msra.mxu0 0.0
    %1968 = vmatprep.subr.mxu0 0.0
    %1969 = vmatpush1.msra.mxu0 0.0
    %1970 = vmatprep.subr.mxu0 0.0
    %1971 = vmatpush1.msra.mxu0 0.0
    %1972 = vmatprep.subr.mxu0 0.0
    %1973 = vmatpush1.msra.mxu0 0.0
    %1974 = vmatprep.subr.mxu0 0.0
    %1975 = vmatpush1.msra.mxu0 0.0
    %1976 = vmatprep.subr.mxu0 0.0
    %1977 = vmatpush1.msra.mxu0 0.0
    %1978 = vmatprep.subr.mxu0 0.0
    %1979 = vmatpush1.msra.mxu0 0.0
    %1980 = vmatprep.subr.mxu0 0.0
    %1981 = vmatpush1.msra.mxu0 0.0
    %1982 = vmatprep.subr.mxu0 0.0
    %1983 = vmatpush1.msra.mxu0 0.0
    %1984 = vmatprep.subr.mxu0 0.0
    %1985 = vmatpush1.msra.mxu0 0.0
    %1986 = vmatprep.subr.mxu0 0.0
    %1987 = vmatpush1.msra.mxu0 0.0
    %1988 = vmatprep.subr.mxu0 0.0
    %1989 = vmatpush1.msra.mxu0 0.0
    %1990 = vmatprep.mubr.f32.mxu0 0.0
    %1991 = vmatmul.mubr.f32.gmra.mrb[0].mxu0 %v1861
    %v1992 = vpop.f32.mrb[0].mxu0
    %v1993 = vadd.f32 0.0, %v1992
    %v1994 = vpop.f32.mrb[0].mxu0
    %v1995 = vadd.f32 0.0, %v1994
    %1996 = vdwg.mxu0
    %1997 = vmatprep.subr.mxu0 %v1865
    %1998 = vmatpush1.msra.mxu0 %v1864
    %1999 = vmatprep.subr.mxu0 %v1869
    %2000 = vmatpush1.msra.mxu0 %v1868
    %2001 = vmatprep.subr.mxu0 %v1873
    %2002 = vmatpush1.msra.mxu0 %v1872
    %2003 = vmatprep.subr.mxu0 %v1877
    %2004 = vmatpush1.msra.mxu0 %v1876
    %2005 = vmatprep.subr.mxu0 %v1881
    %2006 = vmatpush1.msra.mxu0 %v1880
    %2007 = vmatprep.subr.mxu0 %v1885
    %2008 = vmatpush1.msra.mxu0 %v1884
    %2009 = vmatprep.subr.mxu0 %v1889
    %2010 = vmatpush1.msra.mxu0 %v1888
    %2011 = vmatprep.subr.mxu0 %v1893
    %2012 = vmatpush1.msra.mxu0 %v1892
    %2013 = vmatprep.subr.mxu0 %v1897
    %2014 = vmatpush1.msra.mxu0 %v1896
    %2015 = vmatprep.subr.mxu0 %v1901
    %2016 = vmatpush1.msra.mxu0 %v1900
    %2017 = vmatprep.subr.mxu0 %v1905
    %2018 = vmatpush1.msra.mxu0 %v1904
    %2019 = vmatprep.subr.mxu0 %v1909
    %2020 = vmatpush1.msra.mxu0 %v1908
    %2021 = vmatprep.subr.mxu0 %v1913
    %2022 = vmatpush1.msra.mxu0 %v1912
    %2023 = vmatprep.subr.mxu0 %v1917
    %2024 = vmatpush1.msra.mxu0 %v1916
    %2025 = vmatprep.subr.mxu0 %v1921
    %2026 = vmatpush1.msra.mxu0 %v1920
    %2027 = vmatprep.subr.mxu0 %v1925
    %2028 = vmatpush1.msra.mxu0 %v1924
    %2029 = vmatprep.subr.mxu0 0.0
    %2030 = vmatpush1.msra.mxu0 0.0
    %2031 = vmatprep.subr.mxu0 0.0
    %2032 = vmatpush1.msra.mxu0 0.0
    %2033 = vmatprep.subr.mxu0 0.0
    %2034 = vmatpush1.msra.mxu0 0.0
    %2035 = vmatprep.subr.mxu0 0.0
    %2036 = vmatpush1.msra.mxu0 0.0
    %2037 = vmatprep.subr.mxu0 0.0
    %2038 = vmatpush1.msra.mxu0 0.0
    %2039 = vmatprep.subr.mxu0 0.0
    %2040 = vmatpush1.msra.mxu0 0.0
    %2041 = vmatprep.subr.mxu0 0.0
    %2042 = vmatpush1.msra.mxu0 0.0
    %2043 = vmatprep.subr.mxu0 0.0
    %2044 = vmatpush1.msra.mxu0 0.0
    %2045 = vmatprep.subr.mxu0 0.0
    %2046 = vmatpush1.msra.mxu0 0.0
    %2047 = vmatprep.subr.mxu0 0.0
    %2048 = vmatpush1.msra.mxu0 0.0
    %2049 = vmatprep.subr.mxu0 0.0
    %2050 = vmatpush1.msra.mxu0 0.0
    %2051 = vmatprep.subr.mxu0 0.0
    %2052 = vmatpush1.msra.mxu0 0.0
    %2053 = vmatprep.subr.mxu0 0.0
    %2054 = vmatpush1.msra.mxu0 0.0
    %2055 = vmatprep.subr.mxu0 0.0
    %2056 = vmatpush1.msra.mxu0 0.0
    %2057 = vmatprep.subr.mxu0 0.0
    %2058 = vmatpush1.msra.mxu0 0.0
    %2059 = vmatprep.subr.mxu0 0.0
    %2060 = vmatpush1.msra.mxu0 0.0
    %2061 = vmatprep.mubr.f32.mxu0 0.0
    %2062 = vmatmul.mubr.f32.gmra.mrb[0].mxu0 %v1861
    %v2063 = vpop.f32.mrb[0].mxu0
    %v2064 = vadd.f32 0.0, %v2063
    %v2065 = vpop.f32.mrb[0].mxu0
    %v2066 = vadd.f32 0.0, %v2065
    %2067 = vdwg.mxu0
    %v2068 = vadd.f32 %v1857, %v1993
    %v2069 = vadd.f32 %v1858, %v1995
    %v2070 = vadd.f32 %v1859, %v2064
    %v2071 = vadd.f32 %v1860, %v2066
    %v2072 = vxor.u32 %v2068, 2147483648
    %v2073 = vxor.u32 %v2069, 2147483648
    %v2074 = vxor.u32 %v2070, 2147483648
    %v2075 = vmul.f32 %v2072, 1.442695
    %v2076 = vpow.pop %v2075
    %v2077 = vmul.f32 %v2073, 1.442695
    %v2078 = vpow.pop %v2077
    %v2079 = vmul.f32 %v2074, 1.442695
    %v2080 = vpow.pop %v2079
    %v2081 = vadd.f32 %v2076, 1.0
    %v2082 = vadd.f32 %v2078, 1.0
    %v2083 = vadd.f32 %v2080, 1.0
    %v2084 = vrcp.pop %v2081
    %v2085 = vmul.f32 1.0, %v2084
    %v2086 = vrcp.pop %v2082
    %v2087 = vmul.f32 1.0, %v2086
    %v2088 = vrcp.pop %v2083
    %v2089 = vmul.f32 1.0, %v2088
    %v2090 = vtanh.pop %v2071
    %v2091 = vld [vmem:[#allocation3] sm:$0xff]
    %v2092 = vmul.f32 %v2087, %v2091
    %v2093 = vmul.f32 %v2085, %v2090
    %v2094 = vadd.f32 %v2092, %v2093
    %v2095 = vtanh.pop %v2094
    %v2096 = vmul.f32 %v2089, %v2095
    %2097 = vst [vmem:[#allocation2] sm:$0xff] %v2096
    %2098 = vst [vmem:[#allocation3] sm:$0xff] %v2094
    %v2099 = vmul.f32 %v2096, %v69
    %v2100 = vsel %vm387, %v2099, 0.0
    %2101 = vadd.xlane.f32.xlu0 %v2100
    %v2102 = vpop.xlane.xlu0 %2101
    %2104 = vrot.lane.b32.xlu0 %v2099, 64
    %v2105 = vpop.permute.xlu0 %2104
    %v2107 = vsel %vm387, %v2105, 0.0
    %2108 = vadd.xlane.f32.xlu0 %v2107
    %v2109 = vpop.xlane.xlu0 %2108
    %v2110 = vld [vmem:[#allocation8] sm:$0xff]
    %v2111 = vsel %vm689, %v2102, 0.0
    %v2112 = vadd.f32 %v2110, %v2111
    %v2113 = vsel %vm686, %v2109, 0.0
    %v2114 = vadd.f32 %v2112, %v2113
    %2115 = vst.msk [vmem:[#allocation8] sm:$0xff] %vm75, %v2114
    %v2116 = vld [vmem:[%s78] sm:$0xff]
    %v2117 = vld [vmem:[%s0] sm:$0xff]
    %2119 = vset.pattern.permute.xlu0 0
    %2120 = vperm.xlu0 %2119, %v2116
    %v2121 = vpop.permute.xlu0 %2120
    %v2123 = vmul.f32 %v2121, %v89
    %v2124 = vmul.f32 %v2121, %v93
    %v2125 = vmul.f32 %v2121, %v97
    %v2126 = vmul.f32 %v2121, %v101
    %2128 = vset.pattern.permute.xlu0 0
    %2129 = vperm.xlu0 %2128, %v2117
    %v2130 = vpop.permute.xlu0 %2129
    %v2132 = vmul.f32 %v2130, %v119
    %v2133 = vmul.f32 %v2130, %v123
    %v2134 = vmul.f32 %v2130, %v127
    %v2135 = vmul.f32 %v2130, %v131
    %v2136 = vadd.f32 %v2123, %v2132
    %v2137 = vadd.f32 %v2124, %v2133
    %v2138 = vadd.f32 %v2125, %v2134
    %v2139 = vadd.f32 %v2126, %v2135
    %v2140 = vadd.f32 %v2136, %v47
    %v2141 = vadd.f32 %v2137, %v51
    %v2142 = vadd.f32 %v2138, %v55
    %v2143 = vadd.f32 %v2139, %v59
    %v2144 = vld [vmem:[#allocation2] sm:$0xff]
    %v2145 = vld [vmem:[#allocation5] sm:$0xff]
    %v2146 = vld [vmem:[#allocation5 + $0x8] sm:$0xff]
    %v2147 = vld [vmem:[#allocation5 + $0x10] sm:$0xff]
    %v2148 = vld [vmem:[#allocation5 + $0x18] sm:$0xff]
    %v2149 = vld [vmem:[#allocation5 + $0x20] sm:$0xff]
    %v2150 = vld [vmem:[#allocation5 + $0x28] sm:$0xff]
    %v2151 = vld [vmem:[#allocation5 + $0x30] sm:$0xff]
    %v2152 = vld [vmem:[#allocation5 + $0x38] sm:$0xff]
    %v2153 = vld [vmem:[#allocation5 + $0x40] sm:$0xff]
    %v2154 = vld [vmem:[#allocation5 + $0x48] sm:$0xff]
    %v2155 = vld [vmem:[#allocation5 + $0x50] sm:$0xff]
    %v2156 = vld [vmem:[#allocation5 + $0x58] sm:$0xff]
    %v2157 = vld [vmem:[#allocation5 + $0x60] sm:$0xff]
    %v2158 = vld [vmem:[#allocation5 + $0x68] sm:$0xff]
    %v2159 = vld [vmem:[#allocation5 + $0x70] sm:$0xff]
    %v2160 = vld [vmem:[#allocation5 + $0x78] sm:$0xff]
    %v2161 = vld [vmem:[#allocation5 + $0x80] sm:$0xff]
    %v2162 = vld [vmem:[#allocation5 + $0x88] sm:$0xff]
    %v2163 = vld [vmem:[#allocation5 + $0x90] sm:$0xff]
    %v2164 = vld [vmem:[#allocation5 + $0x98] sm:$0xff]
    %v2165 = vld [vmem:[#allocation5 + $0xa0] sm:$0xff]
    %v2166 = vld [vmem:[#allocation5 + $0xa8] sm:$0xff]
    %v2167 = vld [vmem:[#allocation5 + $0xb0] sm:$0xff]
    %v2168 = vld [vmem:[#allocation5 + $0xb8] sm:$0xff]
    %v2169 = vld [vmem:[#allocation5 + $0xc0] sm:$0xff]
    %v2170 = vld [vmem:[#allocation5 + $0xc8] sm:$0xff]
    %v2171 = vld [vmem:[#allocation5 + $0xd0] sm:$0xff]
    %v2172 = vld [vmem:[#allocation5 + $0xd8] sm:$0xff]
    %v2173 = vld [vmem:[#allocation5 + $0xe0] sm:$0xff]
    %v2174 = vld [vmem:[#allocation5 + $0xe8] sm:$0xff]
    %v2175 = vld [vmem:[#allocation5 + $0xf0] sm:$0xff]
    %v2176 = vld [vmem:[#allocation5 + $0xf8] sm:$0xff]
    %v2177 = vld [vmem:[#allocation5 + $0x100] sm:$0xff]
    %v2178 = vld [vmem:[#allocation5 + $0x108] sm:$0xff]
    %v2179 = vld [vmem:[#allocation5 + $0x110] sm:$0xff]
    %v2180 = vld [vmem:[#allocation5 + $0x118] sm:$0xff]
    %v2181 = vld [vmem:[#allocation5 + $0x120] sm:$0xff]
    %v2182 = vld [vmem:[#allocation5 + $0x128] sm:$0xff]
    %v2183 = vld [vmem:[#allocation5 + $0x130] sm:$0xff]
    %v2184 = vld [vmem:[#allocation5 + $0x138] sm:$0xff]
    %v2185 = vld [vmem:[#allocation5 + $0x140] sm:$0xff]
    %v2186 = vld [vmem:[#allocation5 + $0x148] sm:$0xff]
    %v2187 = vld [vmem:[#allocation5 + $0x150] sm:$0xff]
    %v2188 = vld [vmem:[#allocation5 + $0x158] sm:$0xff]
    %v2189 = vld [vmem:[#allocation5 + $0x160] sm:$0xff]
    %v2190 = vld [vmem:[#allocation5 + $0x168] sm:$0xff]
    %v2191 = vld [vmem:[#allocation5 + $0x170] sm:$0xff]
    %v2192 = vld [vmem:[#allocation5 + $0x178] sm:$0xff]
    %v2193 = vld [vmem:[#allocation5 + $0x180] sm:$0xff]
    %v2194 = vld [vmem:[#allocation5 + $0x188] sm:$0xff]
    %v2195 = vld [vmem:[#allocation5 + $0x190] sm:$0xff]
    %v2196 = vld [vmem:[#allocation5 + $0x198] sm:$0xff]
    %v2197 = vld [vmem:[#allocation5 + $0x1a0] sm:$0xff]
    %v2198 = vld [vmem:[#allocation5 + $0x1a8] sm:$0xff]
    %v2199 = vld [vmem:[#allocation5 + $0x1b0] sm:$0xff]
    %v2200 = vld [vmem:[#allocation5 + $0x1b8] sm:$0xff]
    %v2201 = vld [vmem:[#allocation5 + $0x1c0] sm:$0xff]
    %v2202 = vld [vmem:[#allocation5 + $0x1c8] sm:$0xff]
    %v2203 = vld [vmem:[#allocation5 + $0x1d0] sm:$0xff]
    %v2204 = vld [vmem:[#allocation5 + $0x1d8] sm:$0xff]
    %v2205 = vld [vmem:[#allocation5 + $0x1e0] sm:$0xff]
    %v2206 = vld [vmem:[#allocation5 + $0x1e8] sm:$0xff]
    %v2207 = vld [vmem:[#allocation5 + $0x1f0] sm:$0xff]
    %v2208 = vld [vmem:[#allocation5 + $0x1f8] sm:$0xff]
    %2209 = vmatprep.subr.mxu0 %v2146
    %2210 = vmatpush1.msra.mxu0 %v2145
    %2211 = vmatprep.subr.mxu0 %v2150
    %2212 = vmatpush1.msra.mxu0 %v2149
    %2213 = vmatprep.subr.mxu0 %v2154
    %2214 = vmatpush1.msra.mxu0 %v2153
    %2215 = vmatprep.subr.mxu0 %v2158
    %2216 = vmatpush1.msra.mxu0 %v2157
    %2217 = vmatprep.subr.mxu0 %v2162
    %2218 = vmatpush1.msra.mxu0 %v2161
    %2219 = vmatprep.subr.mxu0 %v2166
    %2220 = vmatpush1.msra.mxu0 %v2165
    %2221 = vmatprep.subr.mxu0 %v2170
    %2222 = vmatpush1.msra.mxu0 %v2169
    %2223 = vmatprep.subr.mxu0 %v2174
    %2224 = vmatpush1.msra.mxu0 %v2173
    %2225 = vmatprep.subr.mxu0 %v2178
    %2226 = vmatpush1.msra.mxu0 %v2177
    %2227 = vmatprep.subr.mxu0 %v2182
    %2228 = vmatpush1.msra.mxu0 %v2181
    %2229 = vmatprep.subr.mxu0 %v2186
    %2230 = vmatpush1.msra.mxu0 %v2185
    %2231 = vmatprep.subr.mxu0 %v2190
    %2232 = vmatpush1.msra.mxu0 %v2189
    %2233 = vmatprep.subr.mxu0 %v2194
    %2234 = vmatpush1.msra.mxu0 %v2193
    %2235 = vmatprep.subr.mxu0 %v2198
    %2236 = vmatpush1.msra.mxu0 %v2197
    %2237 = vmatprep.subr.mxu0 %v2202
    %2238 = vmatpush1.msra.mxu0 %v2201
    %2239 = vmatprep.subr.mxu0 %v2206
    %2240 = vmatpush1.msra.mxu0 %v2205
    %2241 = vmatprep.subr.mxu0 0.0
    %2242 = vmatpush1.msra.mxu0 0.0
    %2243 = vmatprep.subr.mxu0 0.0
    %2244 = vmatpush1.msra.mxu0 0.0
    %2245 = vmatprep.subr.mxu0 0.0
    %2246 = vmatpush1.msra.mxu0 0.0
    %2247 = vmatprep.subr.mxu0 0.0
    %2248 = vmatpush1.msra.mxu0 0.0
    %2249 = vmatprep.subr.mxu0 0.0
    %2250 = vmatpush1.msra.mxu0 0.0
    %2251 = vmatprep.subr.mxu0 0.0
    %2252 = vmatpush1.msra.mxu0 0.0
    %2253 = vmatprep.subr.mxu0 0.0
    %2254 = vmatpush1.msra.mxu0 0.0
    %2255 = vmatprep.subr.mxu0 0.0
    %2256 = vmatpush1.msra.mxu0 0.0
    %2257 = vmatprep.subr.mxu0 0.0
    %2258 = vmatpush1.msra.mxu0 0.0
    %2259 = vmatprep.subr.mxu0 0.0
    %2260 = vmatpush1.msra.mxu0 0.0
    %2261 = vmatprep.subr.mxu0 0.0
    %2262 = vmatpush1.msra.mxu0 0.0
    %2263 = vmatprep.subr.mxu0 0.0
    %2264 = vmatpush1.msra.mxu0 0.0
    %2265 = vmatprep.subr.mxu0 0.0
    %2266 = vmatpush1.msra.mxu0 0.0
    %2267 = vmatprep.subr.mxu0 0.0
    %2268 = vmatpush1.msra.mxu0 0.0
    %2269 = vmatprep.subr.mxu0 0.0
    %2270 = vmatpush1.msra.mxu0 0.0
    %2271 = vmatprep.subr.mxu0 0.0
    %2272 = vmatpush1.msra.mxu0 0.0
    %2273 = vmatprep.mubr.f32.mxu0 0.0
    %2274 = vmatmul.mubr.f32.gmra.mrb[0].mxu0 %v2144
    %v2275 = vpop.f32.mrb[0].mxu0
    %v2276 = vadd.f32 0.0, %v2275
    %v2277 = vpop.f32.mrb[0].mxu0
    %v2278 = vadd.f32 0.0, %v2277
    %2279 = vdwg.mxu0
    %2280 = vmatprep.subr.mxu0 %v2148
    %2281 = vmatpush1.msra.mxu0 %v2147
    %2282 = vmatprep.subr.mxu0 %v2152
    %2283 = vmatpush1.msra.mxu0 %v2151
    %2284 = vmatprep.subr.mxu0 %v2156
    %2285 = vmatpush1.msra.mxu0 %v2155
    %2286 = vmatprep.subr.mxu0 %v2160
    %2287 = vmatpush1.msra.mxu0 %v2159
    %2288 = vmatprep.subr.mxu0 %v2164
    %2289 = vmatpush1.msra.mxu0 %v2163
    %2290 = vmatprep.subr.mxu0 %v2168
    %2291 = vmatpush1.msra.mxu0 %v2167
    %2292 = vmatprep.subr.mxu0 %v2172
    %2293 = vmatpush1.msra.mxu0 %v2171
    %2294 = vmatprep.subr.mxu0 %v2176
    %2295 = vmatpush1.msra.mxu0 %v2175
    %2296 = vmatprep.subr.mxu0 %v2180
    %2297 = vmatpush1.msra.mxu0 %v2179
    %2298 = vmatprep.subr.mxu0 %v2184
    %2299 = vmatpush1.msra.mxu0 %v2183
    %2300 = vmatprep.subr.mxu0 %v2188
    %2301 = vmatpush1.msra.mxu0 %v2187
    %2302 = vmatprep.subr.mxu0 %v2192
    %2303 = vmatpush1.msra.mxu0 %v2191
    %2304 = vmatprep.subr.mxu0 %v2196
    %2305 = vmatpush1.msra.mxu0 %v2195
    %2306 = vmatprep.subr.mxu0 %v2200
    %2307 = vmatpush1.msra.mxu0 %v2199
    %2308 = vmatprep.subr.mxu0 %v2204
    %2309 = vmatpush1.msra.mxu0 %v2203
    %2310 = vmatprep.subr.mxu0 %v2208
    %2311 = vmatpush1.msra.mxu0 %v2207
    %2312 = vmatprep.subr.mxu0 0.0
    %2313 = vmatpush1.msra.mxu0 0.0
    %2314 = vmatprep.subr.mxu0 0.0
    %2315 = vmatpush1.msra.mxu0 0.0
    %2316 = vmatprep.subr.mxu0 0.0
    %2317 = vmatpush1.msra.mxu0 0.0
    %2318 = vmatprep.subr.mxu0 0.0
    %2319 = vmatpush1.msra.mxu0 0.0
    %2320 = vmatprep.subr.mxu0 0.0
    %2321 = vmatpush1.msra.mxu0 0.0
    %2322 = vmatprep.subr.mxu0 0.0
    %2323 = vmatpush1.msra.mxu0 0.0
    %2324 = vmatprep.subr.mxu0 0.0
    %2325 = vmatpush1.msra.mxu0 0.0
    %2326 = vmatprep.subr.mxu0 0.0
    %2327 = vmatpush1.msra.mxu0 0.0
    %2328 = vmatprep.subr.mxu0 0.0
    %2329 = vmatpush1.msra.mxu0 0.0
    %2330 = vmatprep.subr.mxu0 0.0
    %2331 = vmatpush1.msra.mxu0 0.0
    %2332 = vmatprep.subr.mxu0 0.0
    %2333 = vmatpush1.msra.mxu0 0.0
    %2334 = vmatprep.subr.mxu0 0.0
    %2335 = vmatpush1.msra.mxu0 0.0
    %2336 = vmatprep.subr.mxu0 0.0
    %2337 = vmatpush1.msra.mxu0 0.0
    %2338 = vmatprep.subr.mxu0 0.0
    %2339 = vmatpush1.msra.mxu0 0.0
    %2340 = vmatprep.subr.mxu0 0.0
    %2341 = vmatpush1.msra.mxu0 0.0
    %2342 = vmatprep.subr.mxu0 0.0
    %2343 = vmatpush1.msra.mxu0 0.0
    %2344 = vmatprep.mubr.f32.mxu0 0.0
    %2345 = vmatmul.mubr.f32.gmra.mrb[0].mxu0 %v2144
    %v2346 = vpop.f32.mrb[0].mxu0
    %v2347 = vadd.f32 0.0, %v2346
    %v2348 = vpop.f32.mrb[0].mxu0
    %v2349 = vadd.f32 0.0, %v2348
    %2350 = vdwg.mxu0
    %v2351 = vadd.f32 %v2140, %v2276
    %v2352 = vadd.f32 %v2141, %v2278
    %v2353 = vadd.f32 %v2142, %v2347
    %v2354 = vadd.f32 %v2143, %v2349
    %v2355 = vxor.u32 %v2351, 2147483648
    %v2356 = vxor.u32 %v2352, 2147483648
    %v2357 = vxor.u32 %v2353, 2147483648
    %v2358 = vmul.f32 %v2355, 1.442695
    %v2359 = vpow.pop %v2358
    %v2360 = vmul.f32 %v2356, 1.442695
    %v2361 = vpow.pop %v2360
    %v2362 = vmul.f32 %v2357, 1.442695
    %v2363 = vpow.pop %v2362
    %v2364 = vadd.f32 %v2359, 1.0
    %v2365 = vadd.f32 %v2361, 1.0
    %v2366 = vadd.f32 %v2363, 1.0
    %v2367 = vrcp.pop %v2364
    %v2368 = vmul.f32 1.0, %v2367
    %v2369 = vrcp.pop %v2365
    %v2370 = vmul.f32 1.0, %v2369
    %v2371 = vrcp.pop %v2366
    %v2372 = vmul.f32 1.0, %v2371
    %v2373 = vtanh.pop %v2354
    %v2374 = vld [vmem:[#allocation3] sm:$0xff]
    %v2375 = vmul.f32 %v2370, %v2374
    %v2376 = vmul.f32 %v2368, %v2373
    %v2377 = vadd.f32 %v2375, %v2376
    %v2378 = vtanh.pop %v2377
    %v2379 = vmul.f32 %v2372, %v2378
    %2380 = vst [vmem:[#allocation2] sm:$0xff] %v2379
    %2381 = vst [vmem:[#allocation3] sm:$0xff] %v2377
    %v2382 = vmul.f32 %v2379, %v69
    %v2383 = vsel %vm387, %v2382, 0.0
    %2384 = vadd.xlane.f32.xlu0 %v2383
    %v2385 = vpop.xlane.xlu0 %2384
    %2387 = vrot.lane.b32.xlu0 %v2382, 64
    %v2388 = vpop.permute.xlu0 %2387
    %v2390 = vsel %vm387, %v2388, 0.0
    %2391 = vadd.xlane.f32.xlu0 %v2390
    %v2392 = vpop.xlane.xlu0 %2391
    %v2393 = vld [vmem:[#allocation8] sm:$0xff]
    %v2394 = vsel %vm402, %v2385, 0.0
    %v2395 = vadd.f32 %v2393, %v2394
    %v2396 = vsel %vm399, %v2392, 0.0
    %v2397 = vadd.f32 %v2395, %v2396
    %2398 = vst.msk [vmem:[#allocation8] sm:$0xff] %vm75, %v2397
    // Predicated region
    $region26: #{tpu_custom_call.1} parent=1 // pred_check
      _
    $region27: #{tpu_custom_call.1} parent=1 // pred_check_branch
      %2400 = sbr.rel (0) target = $region29
    $region28: #{tpu_custom_call.1} parent=1 // pred_region
      %s2402 = ssub.s32 128, 128
      %2403 = vsyncadd [#allocation7], %s2402
      %s2405 = sshll.u32 [#allocation8], 4
      %s2406 = int_to_ptr.vmem [resolvable:$true] %s2405
      %2408 = dma.vmem_to_hbm [thread:$0]  %s2406, 128, %s5, [#allocation7]
    $region29: #{tpu_custom_call.1} parent=1 // pred_fallthru
      _
    // Predicated region
    $region30: #{tpu_custom_call.1} parent=1 // pred_check
      _
    $region31: #{tpu_custom_call.1} parent=1 // pred_check_branch
      %2410 = sbr.rel (0) target = $region33
    $region32: #{tpu_custom_call.1} parent=1 // pred_region
      %2411 = dma.done [#allocation7], 128
    $region33: #{tpu_custom_call.1} parent=1 // pred_fallthru
      _
    %2412 = vsyncpa [#allocation6], 1
    %2413 = vsyncpa [#allocation7], 1

</llo_original>
